<compile_context>
chip_gen: v6e
topology: v6e:2x2x1
jax: 0.10.0
libtpu: 0.0.40
codegen_flags: <defaults>
</compile_context>

<pallas_src>
import functools

import jax
import jax.numpy as jnp
from jax.experimental import pallas as pl
from jax.experimental.pallas import tpu as pltpu

CHAR_EMBED = 50     # char_embed_size fixed by the module
CONV_K = 5          # a5 CNN kernel width
PAD_IDX = 0         # vocab.char_pad


def _round_up(x, m):
    return ((x + m - 1) // m) * m


# ----------------------------------------------------------------------------
# Pallas kernel: (folded) embedding+Conv1d matmul + ReLU + max-pool + Highway.
# ----------------------------------------------------------------------------
def _char_cnn_highway_kernel(ids_ref, wfold_ref, wpg_ref, bias_ref, out_ref):
    # ids_ref  : (tn, L) int32                char ids for tn words
    # wfold_ref: (k*vocab, e_word) bf16       char table folded into conv weight (tap-major)
    # wpg_ref  : (e_word, 2*e_word) bf16      [w_proj | w_gate], pre-transposed
    # bias_ref : (3, e_word) f32              rows: b_conv, b_proj, b_gate
    # out_ref  : (tn, e_word) f32
    tn, L = ids_ref.shape
    kv, e_word = wfold_ref.shape
    vocab = kv // CONV_K
    t_out = L - CONV_K + 1

    ids = ids_ref[...]                                   # (tn, L) int32
    ids3 = ids.reshape(tn, L, 1)                         # one lane->sublane relayout
    iota = jax.lax.broadcasted_iota(jnp.int32, (tn, t_out, kv), 2)

    # Unfolded one-hot over the tap-major folded vocabulary: lane j = tau*vocab + v
    # is 1 iff ids[n, t+tau] == v.  Per-tap lane ranges are disjoint, so summing the
    # bf16 one-hots is exact.  Out-of-range ids produce an all-zero row (zero
    # embedding) rather than erroring like nn.Embedding — documented, benign.
    unf = None
    for tau in range(CONV_K):                            # static unroll, k = 5
        sid = ids3[:, tau:tau + t_out, :] + tau * vocab  # (tn, t_out, 1)
        hot = (sid == iota).astype(wfold_ref.dtype)      # (tn, t_out, k*vocab) bf16
        unf = hot if unf is None else unf + hot

    # ONE MXU matmul = embedding lookup + all conv taps (K = k*vocab, f32 acc).
    conv = jax.lax.dot_general(                          # (tn, t_out, e_word) f32
        unf, wfold_ref[...],
        dimension_numbers=(((2,), (0,)), ((), ())),
        preferred_element_type=jnp.float32)

    b = bias_ref[...]                                    # (3, e_word) f32
    # Max-pool over time first, then bias + ReLU (== relu(conv+b) then maxpool).
    pooled = jnp.maximum(jnp.max(conv, axis=1) + b[0:1, :], 0.0)    # (tn, e_word)

    # Highway: proj / gate fused into a single (e_word, 2*e_word) contraction.
    pg = jnp.dot(pooled.astype(wpg_ref.dtype), wpg_ref[...],
                 preferred_element_type=jnp.float32)     # (tn, 2*e_word)
    proj = jnp.maximum(pg[:, :e_word] + b[1:2, :], 0.0)
    gate = jax.nn.sigmoid(pg[:, e_word:] + b[2:3, :])
    out = gate * proj + (1.0 - gate) * pooled

    # TODO(synk): dropout is identity (eval mode); a train-mode version would draw a
    # keep-mask with pltpu.prng_seed / pltpu.prng_random_bits here.
    out_ref[...] = out.astype(out_ref.dtype)


# ----------------------------------------------------------------------------
# Wrapper: fold weights, pad word count to the tile, call the kernel.
# ----------------------------------------------------------------------------
@functools.partial(jax.jit, static_argnames=("tn",))
def model_embeddings_forward(char_ids, params, *, tn=256):
    """char_ids: (sentence_length, batch_size, max_word_length) int32
       returns : (sentence_length, batch_size, word_embed_size) float32"""
    s_len, batch, L = char_ids.shape
    vocab, e_char = params["char_emb"].shape
    e_word = params["w_conv"].shape[2]
    n_words = s_len * batch
    t_out = L - CONV_K + 1
    assert t_out >= 1, "max_word_length must be >= conv kernel width"

    # Fold char-embedding table into the conv weight (f32 fold, bf16 for the MXU).
    w_fold = jnp.einsum("vc,kco->kvo",
                        params["char_emb"].astype(jnp.float32),
                        params["w_conv"].astype(jnp.float32),
                        precision=jax.lax.Precision.HIGHEST)
    w_fold = w_fold.reshape(CONV_K * vocab, e_word).astype(jnp.bfloat16)
    # Fused highway weight [w_proj | w_gate] and merged biases [b_conv; b_proj; b_gate].
    w_pg = jnp.concatenate([params["w_proj"], params["w_gate"]],
                           axis=1).astype(jnp.bfloat16)               # (e_word, 2*e_word)
    biases = jnp.concatenate([params["b_conv"], params["b_proj"], params["b_gate"]],
                             axis=0).astype(jnp.float32)              # (3, e_word)

    # Word tile: multiple of 8 (sublane); try to keep >=2 grid steps so v7x's two
    # TensorCores both get work; pad word count with PAD-char words (discarded below).
    tn_eff = min(tn, max(8, _round_up(-(-n_words // 2), 8)))
    tn_eff = _round_up(tn_eff, 8)
    n_pad = _round_up(n_words, tn_eff)
    grid = (n_pad // tn_eff,)

    ids = char_ids.reshape(n_words, L).astype(jnp.int32)
    if n_pad != n_words:
        ids = jnp.concatenate(
            [ids, jnp.full((n_pad - n_words, L), PAD_IDX, jnp.int32)], axis=0)

    cost = pl.CostEstimate(
        flops=2 * n_pad * (t_out * CONV_K * vocab * e_word + 2 * e_word * e_word),
        transcendentals=n_pad * e_word,                       # sigmoid
        bytes_accessed=(4 * n_pad * L + 4 * n_pad * e_word
                        + 2 * (CONV_K * vocab * e_word + 2 * e_word * e_word)
                        + 4 * 3 * e_word))

    out = pl.pallas_call(
        _char_cnn_highway_kernel,
        out_shape=jax.ShapeDtypeStruct((n_pad, e_word), jnp.float32),
        grid_spec=pltpu.PrefetchScalarGridSpec(
            num_scalar_prefetch=0,
            grid=grid,
            in_specs=[
                pl.BlockSpec((tn_eff, L), lambda i: (i, 0)),              # char ids
                pl.BlockSpec((CONV_K * vocab, e_word), lambda i: (0, 0)),  # folded conv
                pl.BlockSpec((e_word, 2 * e_word), lambda i: (0, 0)),      # proj|gate
                pl.BlockSpec((3, e_word), lambda i: (0, 0)),               # biases
            ],
            out_specs=pl.BlockSpec((tn_eff, e_word), lambda i: (i, 0)),
        ),
        compiler_params=pltpu.CompilerParams(
            dimension_semantics=("parallel",),   # lets v7x's 2 TCs split the grid
            vmem_limit_bytes=32 * 1024 * 1024),  # fits tn<=512; safe on v7x (64 MiB VMEM)
        cost_estimate=cost,
    )(ids, w_fold, w_pg, biases)

    return out[:n_words].reshape(s_len, batch, e_word)


# ----------------------------------------------------------------------------
# Deterministic parameter initialization (shapes implied by the module).
# ----------------------------------------------------------------------------
def init_params(key, vocab_size, word_embed_size):
    ks = jax.random.split(key, 7)
    char_emb = 0.1 * jax.random.normal(ks[0], (vocab_size, CHAR_EMBED), jnp.float32)
    char_emb = char_emb.at[PAD_IDX].set(0.0)          # padding_idx row is zero
    # Conv1d weight, stored tap-major and channel-transposed: (k, e_char, e_word)
    w_conv = 0.1 * jax.random.normal(ks[1], (CONV_K, CHAR_EMBED, word_embed_size),
                                     jnp.float32)
    b_conv = 0.1 * jax.random.normal(ks[2], (1, word_embed_size), jnp.float32)
    # Highway Linear weights, pre-transposed to (in, out) so kernel does x @ W + b.
    w_proj = 0.1 * jax.random.normal(ks[3], (word_embed_size, word_embed_size), jnp.float32)
    b_proj = 0.1 * jax.random.normal(ks[4], (1, word_embed_size), jnp.float32)
    w_gate = 0.1 * jax.random.normal(ks[5], (word_embed_size, word_embed_size), jnp.float32)
    b_gate = 0.1 * jax.random.normal(ks[6], (1, word_embed_size), jnp.float32)
    return dict(char_emb=char_emb, w_conv=w_conv, b_conv=b_conv,
                w_proj=w_proj, b_proj=b_proj, w_gate=w_gate, b_gate=b_gate)


# Pure-JAX f32 reference mirroring the PyTorch forward (eval mode).
def reference_forward(char_ids, params):
    s_len, batch, L = char_ids.shape
    e_word = params["w_conv"].shape[2]
    x = jnp.take(params["char_emb"], char_ids.reshape(-1, L), axis=0)   # (N, L, e_char)
    t_out = L - CONV_K + 1
    conv = None
    for tau in range(CONV_K):
        part = jax.lax.dot_general(
            x[:, tau:tau + t_out, :], params["w_conv"][tau],
            dimension_numbers=(((2,), (0,)), ((), ())),
            preferred_element_type=jnp.float32)
        conv = part if conv is None else conv + part
    pooled = jnp.maximum(jnp.max(conv, axis=1) + params["b_conv"], 0.0)
    proj = jnp.maximum(pooled @ params["w_proj"] + params["b_proj"], 0.0)
    gate = jax.nn.sigmoid(pooled @ params["w_gate"] + params["b_gate"])
    out = gate * proj + (1.0 - gate) * pooled
    return out.reshape(s_len, batch, e_word)


if __name__ == "__main__":
    key = jax.random.PRNGKey(0)
    k_param, k_ids = jax.random.split(key)

    vocab_size = 30
    word_embed_size = 32
    sentence_length, batch_size, max_word_length = 16, 4, 12   # 64 words -> 2 grid steps

    params = init_params(k_param, vocab_size, word_embed_size)
    char_ids = jax.random.randint(
        k_ids, (sentence_length, batch_size, max_word_length), 0, vocab_size,
        dtype=jnp.int32)

    out = model_embeddings_forward(char_ids, params, tn=256)
    out = jax.block_until_ready(out)

    ref = reference_forward(char_ids, params)
    assert out.shape == (sentence_length, batch_size, word_embed_size)
    assert jnp.allclose(out, ref, atol=2e-2, rtol=2e-2), "mismatch vs reference"
    print("KERNEL_OK")
</pallas_src>

<mosaic_0001>
module attributes {stable_mosaic.version = 11 : i64} {
  func.func @_char_cnn_highway_kernel(%arg0: i32, %arg1: memref<32x12xi32, #tpu.memory_space<vmem>>, %arg2: memref<150x32xbf16, #tpu.memory_space<vmem>>, %arg3: memref<32x64xbf16, #tpu.memory_space<vmem>>, %arg4: memref<3x32xf32, #tpu.memory_space<vmem>>, %arg5: memref<32x32xf32, #tpu.memory_space<vmem>>) attributes {dimension_semantics = [#tpu.dimension_semantics<parallel>], iteration_bounds = array<i64: 2>, scalar_prefetch = 0 : i64, scratch_operands = 0 : i64, tpu.core_type = #tpu.core_type<tc>, window_params = [{transform_indices = @transform_0, window_bounds = array<i64: 32, 12>}, {pipeline_mode = #tpu.pipeline_mode<synchronous>, transform_indices = @transform_1, window_bounds = array<i64: 150, 32>}, {pipeline_mode = #tpu.pipeline_mode<synchronous>, transform_indices = @transform_2, window_bounds = array<i64: 32, 64>}, {pipeline_mode = #tpu.pipeline_mode<synchronous>, transform_indices = @transform_3, window_bounds = array<i64: 3, 32>}, {transform_indices = @transform_4, window_bounds = array<i64: 32, 32>}]} {
    %c0 = arith.constant 0 : index
    %c0_0 = arith.constant 0 : index
    %0 = vector.load %arg1[%c0, %c0_0] : memref<32x12xi32, #tpu.memory_space<vmem>>, vector<32x12xi32>
    %1 = vector.shape_cast %0 : vector<32x12xi32> to vector<32x12x1xi32>
    %2 = tpu.iota {dimensions = array<i32: 2>} : vector<32x8x150xi32>
    %3 = vector.extract_strided_slice %1 {offsets = [0, 0, 0], sizes = [32, 8, 1], strides = [1, 1, 1]} : vector<32x12x1xi32> to vector<32x8x1xi32>
    %c0_i32 = arith.constant 0 : i32
    %4 = vector.broadcast %c0_i32 : i32 to vector<32x8x1xi32>
    %5 = arith.addi %3, %4 : vector<32x8x1xi32>
    %6 = vector.broadcast %5 : vector<32x8x1xi32> to vector<32x8x150xi32>
    %7 = arith.cmpi eq, %6, %2 : vector<32x8x150xi32>
    %8 = arith.extui %7 : vector<32x8x150xi1> to vector<32x8x150xi32>
    %9 = arith.sitofp %8 : vector<32x8x150xi32> to vector<32x8x150xf32>
    %10 = arith.truncf %9 : vector<32x8x150xf32> to vector<32x8x150xbf16>
    %11 = vector.extract_strided_slice %1 {offsets = [0, 1, 0], sizes = [32, 8, 1], strides = [1, 1, 1]} : vector<32x12x1xi32> to vector<32x8x1xi32>
    %c30_i32 = arith.constant 30 : i32
    %12 = vector.broadcast %c30_i32 : i32 to vector<32x8x1xi32>
    %13 = arith.addi %11, %12 : vector<32x8x1xi32>
    %14 = vector.broadcast %13 : vector<32x8x1xi32> to vector<32x8x150xi32>
    %15 = arith.cmpi eq, %14, %2 : vector<32x8x150xi32>
    %16 = arith.extui %15 : vector<32x8x150xi1> to vector<32x8x150xi32>
    %17 = arith.sitofp %16 : vector<32x8x150xi32> to vector<32x8x150xf32>
    %18 = arith.truncf %17 : vector<32x8x150xf32> to vector<32x8x150xbf16>
    %19 = arith.addf %10, %18 : vector<32x8x150xbf16>
    %20 = vector.extract_strided_slice %1 {offsets = [0, 2, 0], sizes = [32, 8, 1], strides = [1, 1, 1]} : vector<32x12x1xi32> to vector<32x8x1xi32>
    %c60_i32 = arith.constant 60 : i32
    %21 = vector.broadcast %c60_i32 : i32 to vector<32x8x1xi32>
    %22 = arith.addi %20, %21 : vector<32x8x1xi32>
    %23 = vector.broadcast %22 : vector<32x8x1xi32> to vector<32x8x150xi32>
    %24 = arith.cmpi eq, %23, %2 : vector<32x8x150xi32>
    %25 = arith.extui %24 : vector<32x8x150xi1> to vector<32x8x150xi32>
    %26 = arith.sitofp %25 : vector<32x8x150xi32> to vector<32x8x150xf32>
    %27 = arith.truncf %26 : vector<32x8x150xf32> to vector<32x8x150xbf16>
    %28 = arith.addf %19, %27 : vector<32x8x150xbf16>
    %29 = vector.extract_strided_slice %1 {offsets = [0, 3, 0], sizes = [32, 8, 1], strides = [1, 1, 1]} : vector<32x12x1xi32> to vector<32x8x1xi32>
    %c90_i32 = arith.constant 90 : i32
    %30 = vector.broadcast %c90_i32 : i32 to vector<32x8x1xi32>
    %31 = arith.addi %29, %30 : vector<32x8x1xi32>
    %32 = vector.broadcast %31 : vector<32x8x1xi32> to vector<32x8x150xi32>
    %33 = arith.cmpi eq, %32, %2 : vector<32x8x150xi32>
    %34 = arith.extui %33 : vector<32x8x150xi1> to vector<32x8x150xi32>
    %35 = arith.sitofp %34 : vector<32x8x150xi32> to vector<32x8x150xf32>
    %36 = arith.truncf %35 : vector<32x8x150xf32> to vector<32x8x150xbf16>
    %37 = arith.addf %28, %36 : vector<32x8x150xbf16>
    %38 = vector.extract_strided_slice %1 {offsets = [0, 4, 0], sizes = [32, 8, 1], strides = [1, 1, 1]} : vector<32x12x1xi32> to vector<32x8x1xi32>
    %c120_i32 = arith.constant 120 : i32
    %39 = vector.broadcast %c120_i32 : i32 to vector<32x8x1xi32>
    %40 = arith.addi %38, %39 : vector<32x8x1xi32>
    %41 = vector.broadcast %40 : vector<32x8x1xi32> to vector<32x8x150xi32>
    %42 = arith.cmpi eq, %41, %2 : vector<32x8x150xi32>
    %43 = arith.extui %42 : vector<32x8x150xi1> to vector<32x8x150xi32>
    %44 = arith.sitofp %43 : vector<32x8x150xi32> to vector<32x8x150xf32>
    %45 = arith.truncf %44 : vector<32x8x150xf32> to vector<32x8x150xbf16>
    %46 = arith.addf %37, %45 : vector<32x8x150xbf16>
    %c0_1 = arith.constant 0 : index
    %c0_2 = arith.constant 0 : index
    %47 = vector.load %arg2[%c0_1, %c0_2] : memref<150x32xbf16, #tpu.memory_space<vmem>>, vector<150x32xbf16>
    %cst = arith.constant dense<0.000000e+00> : vector<32x8x32xf32>
    %48 = tpu.matmul %46, %47, %cst {dimension_numbers = #tpu.dot_dimension_numbers<[2], [0], [0, 1], [1], [0, 0, 0, 1, 1, 1], [], []>} : vector<32x8x150xbf16>, vector<150x32xbf16>, vector<32x8x32xf32> -> vector<32x8x32xf32>
    %c0_3 = arith.constant 0 : index
    %c0_4 = arith.constant 0 : index
    %49 = vector.load %arg4[%c0_3, %c0_4] : memref<3x32xf32, #tpu.memory_space<vmem>>, vector<3x32xf32>
    %cst_5 = arith.constant dense<0xFF800000> : vector<32x32xf32>
    %50 = vector.multi_reduction <maximumf>, %48, %cst_5 [1] : vector<32x8x32xf32> to vector<32x32xf32>
    %51 = vector.extract_strided_slice %49 {offsets = [0, 0], sizes = [1, 32], strides = [1, 1]} : vector<3x32xf32> to vector<1x32xf32>
    %52 = vector.broadcast %51 : vector<1x32xf32> to vector<32x32xf32>
    %53 = arith.addf %50, %52 : vector<32x32xf32>
    %cst_6 = arith.constant 0.000000e+00 : f32
    %54 = vector.broadcast %cst_6 : f32 to vector<32x32xf32>
    %55 = arith.maximumf %53, %54 : vector<32x32xf32>
    %56 = arith.truncf %55 : vector<32x32xf32> to vector<32x32xbf16>
    %c0_7 = arith.constant 0 : index
    %c0_8 = arith.constant 0 : index
    %57 = vector.load %arg3[%c0_7, %c0_8] : memref<32x64xbf16, #tpu.memory_space<vmem>>, vector<32x64xbf16>
    %cst_9 = arith.constant dense<0.000000e+00> : vector<32x64xf32>
    %58 = tpu.matmul %56, %57, %cst_9 {dimension_numbers = #tpu.dot_dimension_numbers<[1], [0], [0], [1], [0, 0, 1, 1], [], []>} : vector<32x32xbf16>, vector<32x64xbf16>, vector<32x64xf32> -> vector<32x64xf32>
    %59 = vector.extract_strided_slice %58 {offsets = [0, 0], sizes = [32, 32], strides = [1, 1]} : vector<32x64xf32> to vector<32x32xf32>
    %60 = vector.extract_strided_slice %49 {offsets = [1, 0], sizes = [1, 32], strides = [1, 1]} : vector<3x32xf32> to vector<1x32xf32>
    %61 = vector.broadcast %60 : vector<1x32xf32> to vector<32x32xf32>
    %62 = arith.addf %59, %61 : vector<32x32xf32>
    %cst_10 = arith.constant 0.000000e+00 : f32
    %63 = vector.broadcast %cst_10 : f32 to vector<32x32xf32>
    %64 = arith.maximumf %62, %63 : vector<32x32xf32>
    %65 = vector.extract_strided_slice %58 {offsets = [0, 32], sizes = [32, 32], strides = [1, 1]} : vector<32x64xf32> to vector<32x32xf32>
    %66 = vector.extract_strided_slice %49 {offsets = [2, 0], sizes = [1, 32], strides = [1, 1]} : vector<3x32xf32> to vector<1x32xf32>
    %67 = vector.broadcast %66 : vector<1x32xf32> to vector<32x32xf32>
    %68 = arith.addf %65, %67 : vector<32x32xf32>
    %69 = arith.negf %68 : vector<32x32xf32>
    %70 = math.exp %69 : vector<32x32xf32>
    %cst_11 = arith.constant 1.000000e+00 : f32
    %71 = vector.broadcast %cst_11 : f32 to vector<32x32xf32>
    %72 = arith.addf %71, %70 : vector<32x32xf32>
    %73 = arith.divf %71, %72 : vector<32x32xf32>
    %74 = arith.mulf %73, %64 : vector<32x32xf32>
    %cst_12 = arith.constant 1.000000e+00 : f32
    %75 = vector.broadcast %cst_12 : f32 to vector<32x32xf32>
    %76 = arith.subf %75, %73 : vector<32x32xf32>
    %77 = arith.mulf %76, %55 : vector<32x32xf32>
    %78 = arith.addf %74, %77 : vector<32x32xf32>
    %c0_13 = arith.constant 0 : index
    %c0_14 = arith.constant 0 : index
    %79 = vector.load %arg5[%c0_13, %c0_14] : memref<32x32xf32, #tpu.memory_space<vmem>>, vector<32x32xf32>
    tpu.vector_store %arg5[%c0_13, %c0_14], %78 {strides = array<i32>} : memref<32x32xf32, #tpu.memory_space<vmem>>, vector<32x32xf32>,
    return
  }
  func.func @transform_0(%arg0: i32) -> (i32, i32) {
    %c0_i32 = arith.constant 0 : i32
    %c0_i32_0 = arith.constant 0 : i32
    return %arg0, %c0_i32 : i32, i32
  }
  func.func @transform_1(%arg0: i32) -> (i32, i32) {
    %c0_i32 = arith.constant 0 : i32
    %c0_i32_0 = arith.constant 0 : i32
    %c0_i32_1 = arith.constant 0 : i32
    return %c0_i32, %c0_i32_0 : i32, i32
  }
  func.func @transform_2(%arg0: i32) -> (i32, i32) {
    %c0_i32 = arith.constant 0 : i32
    %c0_i32_0 = arith.constant 0 : i32
    %c0_i32_1 = arith.constant 0 : i32
    return %c0_i32, %c0_i32_0 : i32, i32
  }
  func.func @transform_3(%arg0: i32) -> (i32, i32) {
    %c0_i32 = arith.constant 0 : i32
    %c0_i32_0 = arith.constant 0 : i32
    %c0_i32_1 = arith.constant 0 : i32
    return %c0_i32, %c0_i32_0 : i32, i32
  }
  func.func @transform_4(%arg0: i32) -> (i32, i32) {
    %c0_i32 = arith.constant 0 : i32
    %c0_i32_0 = arith.constant 0 : i32
    return %arg0, %c0_i32 : i32, i32
  }
}

</mosaic_0001>

<llo_original>
// kernel: model_embeddings_forward.1
$region0: #{model_embeddings_forward.1}
  #allocation0 [shape = 'u32[]', space=smem, size = 0x4, offset = 0x4, fixed_abs, tag = 'smem constant byte address 0x4 - core index']
  #allocation1 [shape = 'u32[144,128]{1,0:T(1,128)}', space=vmem, size = 0x12000, scoped, tag = 'internal scratch']
  %s0 = inlined_call_operand.vmem [shape: s32[64,12], index: 0, kind: input, shape index: {}]
  %s1 = inlined_call_operand.vmem [shape: bf16[150,32], index: 1, kind: input, shape index: {}]
  %s2 = inlined_call_operand.vmem [shape: bf16[32,64], index: 2, kind: input, shape index: {}]
  %s3 = inlined_call_operand.vmem [shape: f32[3,32], index: 3, kind: input, shape index: {}]
  %s4 = inlined_call_operand.hbm [shape: f32[64,32], index: 4, kind: output, shape index: {}]
  %s5 = sld [smem:[#allocation0]]
  $region49: #{model_embeddings_forward.1} parent=0
    _
  %s7 = ssub.s32 1, %s5
  %s8 = scalar_select 0, %s7, %s5
  $region1: #{model_embeddings_forward.1} parent=0
    #allocation2 [shape = 'u8[32768]{0}', space=vmem, size = 0x8000, scoped, tag = 'output window, operand 0']
    #allocation3 [shape = 's32[2]{0}', space=sflag, size = 0x8, scoped, tag = 'scoped memory for model_embeddings_forward.1']
    %9 = vsyncpa [#allocation3], 0
    %s10 = scalar_lea.sflag [#allocation3], 1
    %11 = vsyncpa %s10, 0
    loop: start=0, step=1, limit=4
    $region2: #{model_embeddings_forward.1} parent=1 // loop_pre_header
      _
    $region3: #{model_embeddings_forward.1} parent=1 // loop_header
      %s13 = sphi 0, %s17
      %p14 = scmp.ge.s32.totalorder %s13, 4
      %s23 = sphi 0, %s25
      %s26 = sphi 0, %s23
      %s27 = sphi 0, %s26
      %s43 = sphi 0, %s27
      %s47 = sphi 0, %s47
      %s49 = sphi 0, %s47
      %s50 = sphi 0, %s49
      %s64 = sphi 0, %s50
      %s68 = sphi 0, %s68
      %s70 = sphi 0, %s68
      %s71 = sphi 0, %s70
      %s85 = sphi 0, %s71
      %s89 = sphi 0, %s89
      %s91 = sphi 0, %s89
      %s92 = sphi 0, %s91
      %s106 = sphi 0, %s92
      %s112 = sphi 0, %s114
      %s115 = sphi 0, %s112
      %s116 = sphi 0, %s115
      %s132 = sphi 0, %s116
    $region4: #{model_embeddings_forward.1} parent=1 // loop_header_branch
      %16 = sbr.rel (%p14) target = $region8
    $region5: #{model_embeddings_forward.1} parent=1 // loop_body
      %s18 = ssub.s32 %s13, 1
      %s19 = ssub.s32 %s13, 2
      %s20 = sadd.s32 %s13, 1
      %s21 = ssub.s32 %s13, %s20
      %p22 = scmp.eq.s32.totalorder %s21, 0
      %s24 = sadd.s32 %s23, 1
      %s25 = scalar_select %p22, %s23, %s24
      %p28 = pneg %p22
      %p29 = scmp.eq.s32.totalorder %s13, 1
      %p30 = por %p28, %p29
      %p31 = scmp.ne.s32.totalorder %s23, %s26
      %p32 = scmp.eq.s32.totalorder %s13, 0
      %p33 = por %p31, %p32
      %p34 = scmp.ne.s32.totalorder %s23, %s26
      %p35 = scmp.eq.s32.totalorder %s18, 1
      %p36 = por %p34, %p35
      %p37 = scmp.ne.s32.totalorder %s26, %s27
      %p38 = scmp.eq.s32.totalorder %s18, 0
      %p39 = por %p37, %p38
      %p40 = scmp.ne.s32.totalorder %s26, %s27
      %p41 = scmp.eq.s32.totalorder %s19, 1
      %p42 = por %p40, %p41
      %p44 = scmp.ne.s32.totalorder %s27, %s43
      %p45 = scmp.eq.s32.totalorder %s19, 0
      %p46 = por %p44, %p45
      %s48 = sadd.s32 %s47, 1
      %p51 = scmp.eq.s32.totalorder %s13, 1
      %p52 = scmp.ne.s32.totalorder %s47, %s49
      %p53 = scmp.eq.s32.totalorder %s13, 0
      %p54 = por %p52, %p53
      %p55 = scmp.ne.s32.totalorder %s47, %s49
      %p56 = scmp.eq.s32.totalorder %s18, 1
      %p57 = por %p55, %p56
      %p58 = scmp.ne.s32.totalorder %s49, %s50
      %p59 = scmp.eq.s32.totalorder %s18, 0
      %p60 = por %p58, %p59
      %p61 = scmp.ne.s32.totalorder %s49, %s50
      %p62 = scmp.eq.s32.totalorder %s19, 1
      %p63 = por %p61, %p62
      %p65 = scmp.ne.s32.totalorder %s50, %s64
      %p66 = scmp.eq.s32.totalorder %s19, 0
      %p67 = por %p65, %p66
      %s69 = sadd.s32 %s68, 1
      %p72 = scmp.eq.s32.totalorder %s13, 1
      %p73 = scmp.ne.s32.totalorder %s68, %s70
      %p74 = scmp.eq.s32.totalorder %s13, 0
      %p75 = por %p73, %p74
      %p76 = scmp.ne.s32.totalorder %s68, %s70
      %p77 = scmp.eq.s32.totalorder %s18, 1
      %p78 = por %p76, %p77
      %p79 = scmp.ne.s32.totalorder %s70, %s71
      %p80 = scmp.eq.s32.totalorder %s18, 0
      %p81 = por %p79, %p80
      %p82 = scmp.ne.s32.totalorder %s70, %s71
      %p83 = scmp.eq.s32.totalorder %s19, 1
      %p84 = por %p82, %p83
      %p86 = scmp.ne.s32.totalorder %s71, %s85
      %p87 = scmp.eq.s32.totalorder %s19, 0
      %p88 = por %p86, %p87
      %s90 = sadd.s32 %s89, 1
      %p93 = scmp.eq.s32.totalorder %s13, 1
      %p94 = scmp.ne.s32.totalorder %s89, %s91
      %p95 = scmp.eq.s32.totalorder %s13, 0
      %p96 = por %p94, %p95
      %p97 = scmp.ne.s32.totalorder %s89, %s91
      %p98 = scmp.eq.s32.totalorder %s18, 1
      %p99 = por %p97, %p98
      %p100 = scmp.ne.s32.totalorder %s91, %s92
      %p101 = scmp.eq.s32.totalorder %s18, 0
      %p102 = por %p100, %p101
      %p103 = scmp.ne.s32.totalorder %s91, %s92
      %p104 = scmp.eq.s32.totalorder %s19, 1
      %p105 = por %p103, %p104
      %p107 = scmp.ne.s32.totalorder %s92, %s106
      %p108 = scmp.eq.s32.totalorder %s19, 0
      %p109 = por %p107, %p108
      %s110 = ssub.s32 %s13, %s20
      %p111 = scmp.eq.s32.totalorder %s110, 0
      %s113 = sadd.s32 %s112, 1
      %s114 = scalar_select %p111, %s112, %s113
      %p117 = pneg %p111
      %p118 = scmp.eq.s32.totalorder %s13, 1
      %p119 = por %p117, %p118
      %p120 = scmp.ne.s32.totalorder %s112, %s115
      %p121 = scmp.eq.s32.totalorder %s13, 0
      %p122 = por %p120, %p121
      %p123 = scmp.ne.s32.totalorder %s112, %s115
      %p124 = scmp.eq.s32.totalorder %s18, 1
      %p125 = por %p123, %p124
      %p126 = scmp.ne.s32.totalorder %s115, %s116
      %p127 = scmp.eq.s32.totalorder %s18, 0
      %p128 = por %p126, %p127
      %p129 = scmp.ne.s32.totalorder %s115, %s116
      %p130 = scmp.eq.s32.totalorder %s19, 1
      %p131 = por %p129, %p130
      %p133 = scmp.ne.s32.totalorder %s116, %s132
      %p134 = scmp.eq.s32.totalorder %s19, 0
      %p135 = por %p133, %p134
      %p136 = scmp.le.s32.totalorder 1, %s13
      %p137 = scmp.lt.s32.totalorder %s13, 3
      %p138 = pnand %p136, %p137
      %p139 = pneg %p138
      // Predicated region
      $region9: #{model_embeddings_forward.1} parent=5 // pred_check
        _
      $region10: #{model_embeddings_forward.1} parent=5 // pred_check_branch
        %141 = sbr.rel (%p138) target = $region12
      $region11: #{model_embeddings_forward.1} parent=5 // pred_region
        %s142 = ssub.s32 %s13, 1
        // Predicated region
        $region13: #{model_embeddings_forward.1} parent=11 // pred_check
          %p143 = pneg %p60
        $region14: #{model_embeddings_forward.1} parent=11 // pred_check_branch
          %145 = sbr.rel (%p143) target = $region16
        $region15: #{model_embeddings_forward.1} parent=11 // pred_region
          _
        $region16: #{model_embeddings_forward.1} parent=11 // pred_fallthru
          _
        // Predicated region
        $region17: #{model_embeddings_forward.1} parent=11 // pred_check
          %p146 = pneg %p81
        $region18: #{model_embeddings_forward.1} parent=11 // pred_check_branch
          %148 = sbr.rel (%p146) target = $region20
        $region19: #{model_embeddings_forward.1} parent=11 // pred_region
          _
        $region20: #{model_embeddings_forward.1} parent=11 // pred_fallthru
          _
        // Predicated region
        $region21: #{model_embeddings_forward.1} parent=11 // pred_check
          %p149 = pneg %p102
        $region22: #{model_embeddings_forward.1} parent=11 // pred_check_branch
          %151 = sbr.rel (%p149) target = $region24
        $region23: #{model_embeddings_forward.1} parent=11 // pred_region
          _
        $region24: #{model_embeddings_forward.1} parent=11 // pred_fallthru
          _
      $region12: #{model_embeddings_forward.1} parent=5 // pred_fallthru
        _
      %p152 = scmp.lt.s32.totalorder %s13, 2
      // Predicated region
      $region25: #{model_embeddings_forward.1} parent=5 // pred_check
        %p153 = pneg %p152
      $region26: #{model_embeddings_forward.1} parent=5 // pred_check_branch
        %155 = sbr.rel (%p153) target = $region28
      $region27: #{model_embeddings_forward.1} parent=5 // pred_region
        // Predicated region
        $region29: #{model_embeddings_forward.1} parent=27 // pred_check
          %p156 = pneg %p33
        $region30: #{model_embeddings_forward.1} parent=27 // pred_check_branch
          %158 = sbr.rel (%p156) target = $region32
        $region31: #{model_embeddings_forward.1} parent=27 // pred_region
          %s159 = smul.u32 4, %s13
          %p160 = scmp.lt.s32.totalorder %s159, 7
          %s161 = scalar_select %p160, %s159, 7
          %s162 = smul.addr %s161, 8
          %s163 = scalar_lea.vmem %s0, %s162
          %s164 = smul.u32 4, %s13
        $region32: #{model_embeddings_forward.1} parent=27 // pred_fallthru
          _
      $region28: #{model_embeddings_forward.1} parent=5 // pred_fallthru
        _
      %p165 = scmp.le.s32.totalorder 1, %s13
      %p166 = scmp.lt.s32.totalorder %s13, 3
      %p167 = pnand %p165, %p166
      %p168 = pneg %p167
      // Predicated region
      $region33: #{model_embeddings_forward.1} parent=5 // pred_check
        _
      $region34: #{model_embeddings_forward.1} parent=5 // pred_check_branch
        %170 = sbr.rel (%p167) target = $region36
      $region35: #{model_embeddings_forward.1} parent=5 // pred_region
        %s171 = ssub.s32 %s13, 1
        %s172 = smul.u32 4, %s18
        %p173 = scmp.lt.s32.totalorder %s172, 7
        %s174 = scalar_select %p173, %s172, 7
        %s175 = smul.addr %s174, 8
        %s176 = scalar_lea.vmem %s0, %s175
        %p177 = pneg %p39
        %p178 = pneg %p36
        %p179 = pneg %p60
        %p180 = pneg %p57
        %p181 = pneg %p81
        %p182 = pneg %p78
        %p183 = pneg %p102
        %p184 = pneg %p99
        %p185 = pneg %p128
        %p186 = pneg %p125
        %s187 = sand.u32 %s115, 1
        %s188 = scalar_lea.sflag [#allocation3], %s187
        %s189 = sand.u32 %s115, 1
        %s190 = smul.addr %s189, 32
        %s191 = scalar_lea.vmem [#allocation2], %s190
        %s192 = smul.u32 4, %s18
        %p193 = scmp.lt.s32.totalorder %s192, 7
        %s194 = scalar_select %p193, %s192, 7
        %s195 = smul.addr %s194, 8
        %s196 = scalar_lea.vmem %s0, %s195
        %s197 = smul.u32 4, %s18
        %s198 = smul.u32 4, %s18
        %v200 = vld [vmem:[%s196] sm:$0xff]
        %v201 = vld [vmem:[%s196 + $0x8] sm:$0xff]
        %v202 = vld [vmem:[%s196 + $0x10] sm:$0xff]
        %v203 = vld [vmem:[%s196 + $0x18] sm:$0xff]
        %v204 = vlaneseq
        %v205 = vshrl.u32 %v204, 7
        %v206 = vsub.s32 0, %v205
        %v207 = vrot.slane %v200, %v206
        %209 = vbcast.lane.b32.xlu0 %v207, 256
        %v210 = vpop.permute.xlu0 %209
        %s212 = sor.u32 256, 8
        %213 = vbcast.lane.b32.xlu0 %v207, %s212
        %v214 = vpop.permute.xlu0 %213
        %v215 = vlaneseq
        %v216 = vshrl.u32 %v215, 7
        %v217 = vsub.s32 1, %v216
        %v218 = vrot.slane %v200, %v217
        %220 = vbcast.lane.b32.xlu0 %v218, 256
        %v221 = vpop.permute.xlu0 %220
        %s223 = sor.u32 256, 8
        %224 = vbcast.lane.b32.xlu0 %v218, %s223
        %v225 = vpop.permute.xlu0 %224
        %v226 = vlaneseq
        %v227 = vshrl.u32 %v226, 7
        %v228 = vsub.s32 2, %v227
        %v229 = vrot.slane %v200, %v228
        %231 = vbcast.lane.b32.xlu0 %v229, 256
        %v232 = vpop.permute.xlu0 %231
        %s234 = sor.u32 256, 8
        %235 = vbcast.lane.b32.xlu0 %v229, %s234
        %v236 = vpop.permute.xlu0 %235
        %v237 = vlaneseq
        %v238 = vshrl.u32 %v237, 7
        %v239 = vsub.s32 3, %v238
        %v240 = vrot.slane %v200, %v239
        %242 = vbcast.lane.b32.xlu0 %v240, 256
        %v243 = vpop.permute.xlu0 %242
        %s245 = sor.u32 256, 8
        %246 = vbcast.lane.b32.xlu0 %v240, %s245
        %v247 = vpop.permute.xlu0 %246
        %v248 = vlaneseq
        %v249 = vshrl.u32 %v248, 7
        %v250 = vsub.s32 4, %v249
        %v251 = vrot.slane %v200, %v250
        %253 = vbcast.lane.b32.xlu0 %v251, 256
        %v254 = vpop.permute.xlu0 %253
        %s256 = sor.u32 256, 8
        %257 = vbcast.lane.b32.xlu0 %v251, %s256
        %v258 = vpop.permute.xlu0 %257
        %v259 = vlaneseq
        %v260 = vshrl.u32 %v259, 7
        %v261 = vsub.s32 5, %v260
        %v262 = vrot.slane %v200, %v261
        %264 = vbcast.lane.b32.xlu0 %v262, 256
        %v265 = vpop.permute.xlu0 %264
        %s267 = sor.u32 256, 8
        %268 = vbcast.lane.b32.xlu0 %v262, %s267
        %v269 = vpop.permute.xlu0 %268
        %v270 = vlaneseq
        %v271 = vshrl.u32 %v270, 7
        %v272 = vsub.s32 6, %v271
        %v273 = vrot.slane %v200, %v272
        %275 = vbcast.lane.b32.xlu0 %v273, 256
        %v276 = vpop.permute.xlu0 %275
        %s278 = sor.u32 256, 8
        %279 = vbcast.lane.b32.xlu0 %v273, %s278
        %v280 = vpop.permute.xlu0 %279
        %v281 = vlaneseq
        %v282 = vshrl.u32 %v281, 7
        %v283 = vsub.s32 7, %v282
        %v284 = vrot.slane %v200, %v283
        %286 = vbcast.lane.b32.xlu0 %v284, 256
        %v287 = vpop.permute.xlu0 %286
        %s289 = sor.u32 256, 8
        %290 = vbcast.lane.b32.xlu0 %v284, %s289
        %v291 = vpop.permute.xlu0 %290
        %v292 = vlaneseq
        %v293 = vshrl.u32 %v292, 7
        %v294 = vsub.s32 0, %v293
        %v295 = vrot.slane %v201, %v294
        %297 = vbcast.lane.b32.xlu0 %v295, 256
        %v298 = vpop.permute.xlu0 %297
        %s300 = sor.u32 256, 8
        %301 = vbcast.lane.b32.xlu0 %v295, %s300
        %v302 = vpop.permute.xlu0 %301
        %v303 = vlaneseq
        %v304 = vshrl.u32 %v303, 7
        %v305 = vsub.s32 1, %v304
        %v306 = vrot.slane %v201, %v305
        %308 = vbcast.lane.b32.xlu0 %v306, 256
        %v309 = vpop.permute.xlu0 %308
        %s311 = sor.u32 256, 8
        %312 = vbcast.lane.b32.xlu0 %v306, %s311
        %v313 = vpop.permute.xlu0 %312
        %v314 = vlaneseq
        %v315 = vshrl.u32 %v314, 7
        %v316 = vsub.s32 2, %v315
        %v317 = vrot.slane %v201, %v316
        %319 = vbcast.lane.b32.xlu0 %v317, 256
        %v320 = vpop.permute.xlu0 %319
        %s322 = sor.u32 256, 8
        %323 = vbcast.lane.b32.xlu0 %v317, %s322
        %v324 = vpop.permute.xlu0 %323
        %v325 = vlaneseq
        %v326 = vshrl.u32 %v325, 7
        %v327 = vsub.s32 3, %v326
        %v328 = vrot.slane %v201, %v327
        %330 = vbcast.lane.b32.xlu0 %v328, 256
        %v331 = vpop.permute.xlu0 %330
        %s333 = sor.u32 256, 8
        %334 = vbcast.lane.b32.xlu0 %v328, %s333
        %v335 = vpop.permute.xlu0 %334
        %v336 = vlaneseq
        %v337 = vshrl.u32 %v336, 7
        %v338 = vsub.s32 4, %v337
        %v339 = vrot.slane %v201, %v338
        %341 = vbcast.lane.b32.xlu0 %v339, 256
        %v342 = vpop.permute.xlu0 %341
        %s344 = sor.u32 256, 8
        %345 = vbcast.lane.b32.xlu0 %v339, %s344
        %v346 = vpop.permute.xlu0 %345
        %v347 = vlaneseq
        %v348 = vshrl.u32 %v347, 7
        %v349 = vsub.s32 5, %v348
        %v350 = vrot.slane %v201, %v349
        %352 = vbcast.lane.b32.xlu0 %v350, 256
        %v353 = vpop.permute.xlu0 %352
        %s355 = sor.u32 256, 8
        %356 = vbcast.lane.b32.xlu0 %v350, %s355
        %v357 = vpop.permute.xlu0 %356
        %v358 = vlaneseq
        %v359 = vshrl.u32 %v358, 7
        %v360 = vsub.s32 6, %v359
        %v361 = vrot.slane %v201, %v360
        %363 = vbcast.lane.b32.xlu0 %v361, 256
        %v364 = vpop.permute.xlu0 %363
        %s366 = sor.u32 256, 8
        %367 = vbcast.lane.b32.xlu0 %v361, %s366
        %v368 = vpop.permute.xlu0 %367
        %v369 = vlaneseq
        %v370 = vshrl.u32 %v369, 7
        %v371 = vsub.s32 7, %v370
        %v372 = vrot.slane %v201, %v371
        %374 = vbcast.lane.b32.xlu0 %v372, 256
        %v375 = vpop.permute.xlu0 %374
        %s377 = sor.u32 256, 8
        %378 = vbcast.lane.b32.xlu0 %v372, %s377
        %v379 = vpop.permute.xlu0 %378
        %v380 = vlaneseq
        %v381 = vshrl.u32 %v380, 7
        %v382 = vsub.s32 0, %v381
        %v383 = vrot.slane %v202, %v382
        %385 = vbcast.lane.b32.xlu0 %v383, 256
        %v386 = vpop.permute.xlu0 %385
        %s388 = sor.u32 256, 8
        %389 = vbcast.lane.b32.xlu0 %v383, %s388
        %v390 = vpop.permute.xlu0 %389
        %v391 = vlaneseq
        %v392 = vshrl.u32 %v391, 7
        %v393 = vsub.s32 1, %v392
        %v394 = vrot.slane %v202, %v393
        %396 = vbcast.lane.b32.xlu0 %v394, 256
        %v397 = vpop.permute.xlu0 %396
        %s399 = sor.u32 256, 8
        %400 = vbcast.lane.b32.xlu0 %v394, %s399
        %v401 = vpop.permute.xlu0 %400
        %v402 = vlaneseq
        %v403 = vshrl.u32 %v402, 7
        %v404 = vsub.s32 2, %v403
        %v405 = vrot.slane %v202, %v404
        %407 = vbcast.lane.b32.xlu0 %v405, 256
        %v408 = vpop.permute.xlu0 %407
        %s410 = sor.u32 256, 8
        %411 = vbcast.lane.b32.xlu0 %v405, %s410
        %v412 = vpop.permute.xlu0 %411
        %v413 = vlaneseq
        %v414 = vshrl.u32 %v413, 7
        %v415 = vsub.s32 3, %v414
        %v416 = vrot.slane %v202, %v415
        %418 = vbcast.lane.b32.xlu0 %v416, 256
        %v419 = vpop.permute.xlu0 %418
        %s421 = sor.u32 256, 8
        %422 = vbcast.lane.b32.xlu0 %v416, %s421
        %v423 = vpop.permute.xlu0 %422
        %v424 = vlaneseq
        %v425 = vshrl.u32 %v424, 7
        %v426 = vsub.s32 4, %v425
        %v427 = vrot.slane %v202, %v426
        %429 = vbcast.lane.b32.xlu0 %v427, 256
        %v430 = vpop.permute.xlu0 %429
        %s432 = sor.u32 256, 8
        %433 = vbcast.lane.b32.xlu0 %v427, %s432
        %v434 = vpop.permute.xlu0 %433
        %v435 = vlaneseq
        %v436 = vshrl.u32 %v435, 7
        %v437 = vsub.s32 5, %v436
        %v438 = vrot.slane %v202, %v437
        %440 = vbcast.lane.b32.xlu0 %v438, 256
        %v441 = vpop.permute.xlu0 %440
        %s443 = sor.u32 256, 8
        %444 = vbcast.lane.b32.xlu0 %v438, %s443
        %v445 = vpop.permute.xlu0 %444
        %v446 = vlaneseq
        %v447 = vshrl.u32 %v446, 7
        %v448 = vsub.s32 6, %v447
        %v449 = vrot.slane %v202, %v448
        %451 = vbcast.lane.b32.xlu0 %v449, 256
        %v452 = vpop.permute.xlu0 %451
        %s454 = sor.u32 256, 8
        %455 = vbcast.lane.b32.xlu0 %v449, %s454
        %v456 = vpop.permute.xlu0 %455
        %v457 = vlaneseq
        %v458 = vshrl.u32 %v457, 7
        %v459 = vsub.s32 7, %v458
        %v460 = vrot.slane %v202, %v459
        %462 = vbcast.lane.b32.xlu0 %v460, 256
        %v463 = vpop.permute.xlu0 %462
        %s465 = sor.u32 256, 8
        %466 = vbcast.lane.b32.xlu0 %v460, %s465
        %v467 = vpop.permute.xlu0 %466
        %v468 = vlaneseq
        %v469 = vshrl.u32 %v468, 7
        %v470 = vsub.s32 0, %v469
        %v471 = vrot.slane %v203, %v470
        %473 = vbcast.lane.b32.xlu0 %v471, 256
        %v474 = vpop.permute.xlu0 %473
        %s476 = sor.u32 256, 8
        %477 = vbcast.lane.b32.xlu0 %v471, %s476
        %v478 = vpop.permute.xlu0 %477
        %v479 = vlaneseq
        %v480 = vshrl.u32 %v479, 7
        %v481 = vsub.s32 1, %v480
        %v482 = vrot.slane %v203, %v481
        %484 = vbcast.lane.b32.xlu0 %v482, 256
        %v485 = vpop.permute.xlu0 %484
        %s487 = sor.u32 256, 8
        %488 = vbcast.lane.b32.xlu0 %v482, %s487
        %v489 = vpop.permute.xlu0 %488
        %v490 = vlaneseq
        %v491 = vshrl.u32 %v490, 7
        %v492 = vsub.s32 2, %v491
        %v493 = vrot.slane %v203, %v492
        %495 = vbcast.lane.b32.xlu0 %v493, 256
        %v496 = vpop.permute.xlu0 %495
        %s498 = sor.u32 256, 8
        %499 = vbcast.lane.b32.xlu0 %v493, %s498
        %v500 = vpop.permute.xlu0 %499
        %v501 = vlaneseq
        %v502 = vshrl.u32 %v501, 7
        %v503 = vsub.s32 3, %v502
        %v504 = vrot.slane %v203, %v503
        %506 = vbcast.lane.b32.xlu0 %v504, 256
        %v507 = vpop.permute.xlu0 %506
        %s509 = sor.u32 256, 8
        %510 = vbcast.lane.b32.xlu0 %v504, %s509
        %v511 = vpop.permute.xlu0 %510
        %v512 = vlaneseq
        %v513 = vshrl.u32 %v512, 7
        %v514 = vsub.s32 4, %v513
        %v515 = vrot.slane %v203, %v514
        %517 = vbcast.lane.b32.xlu0 %v515, 256
        %v518 = vpop.permute.xlu0 %517
        %s520 = sor.u32 256, 8
        %521 = vbcast.lane.b32.xlu0 %v515, %s520
        %v522 = vpop.permute.xlu0 %521
        %v523 = vlaneseq
        %v524 = vshrl.u32 %v523, 7
        %v525 = vsub.s32 5, %v524
        %v526 = vrot.slane %v203, %v525
        %528 = vbcast.lane.b32.xlu0 %v526, 256
        %v529 = vpop.permute.xlu0 %528
        %s531 = sor.u32 256, 8
        %532 = vbcast.lane.b32.xlu0 %v526, %s531
        %v533 = vpop.permute.xlu0 %532
        %v534 = vlaneseq
        %v535 = vshrl.u32 %v534, 7
        %v536 = vsub.s32 6, %v535
        %v537 = vrot.slane %v203, %v536
        %539 = vbcast.lane.b32.xlu0 %v537, 256
        %v540 = vpop.permute.xlu0 %539
        %s542 = sor.u32 256, 8
        %543 = vbcast.lane.b32.xlu0 %v537, %s542
        %v544 = vpop.permute.xlu0 %543
        %v545 = vlaneseq
        %v546 = vshrl.u32 %v545, 7
        %v547 = vsub.s32 7, %v546
        %v548 = vrot.slane %v203, %v547
        %550 = vbcast.lane.b32.xlu0 %v548, 256
        %v551 = vpop.permute.xlu0 %550
        %s553 = sor.u32 256, 8
        %554 = vbcast.lane.b32.xlu0 %v548, %s553
        %v555 = vpop.permute.xlu0 %554
        %v556 = vlaneseq
        %v557 = vand.u32 %v556, 127
        %v558 = vadd.s32 %v557, 128
        %vm559 = vcmp.eq.s32.totalorder %v210, %v557
        %vm560 = vcmp.eq.s32.totalorder %v210, %v558
        %vm561 = vcmp.eq.s32.totalorder %v221, %v557
        %vm562 = vcmp.eq.s32.totalorder %v221, %v558
        %vm563 = vcmp.eq.s32.totalorder %v232, %v557
        %vm564 = vcmp.eq.s32.totalorder %v232, %v558
        %vm565 = vcmp.eq.s32.totalorder %v243, %v557
        %vm566 = vcmp.eq.s32.totalorder %v243, %v558
        %vm567 = vcmp.eq.s32.totalorder %v254, %v557
        %vm568 = vcmp.eq.s32.totalorder %v254, %v558
        %vm569 = vcmp.eq.s32.totalorder %v265, %v557
        %vm570 = vcmp.eq.s32.totalorder %v265, %v558
        %vm571 = vcmp.eq.s32.totalorder %v276, %v557
        %vm572 = vcmp.eq.s32.totalorder %v276, %v558
        %vm573 = vcmp.eq.s32.totalorder %v287, %v557
        %vm574 = vcmp.eq.s32.totalorder %v287, %v558
        %vm575 = vcmp.eq.s32.totalorder %v298, %v557
        %vm576 = vcmp.eq.s32.totalorder %v298, %v558
        %vm577 = vcmp.eq.s32.totalorder %v309, %v557
        %vm578 = vcmp.eq.s32.totalorder %v309, %v558
        %vm579 = vcmp.eq.s32.totalorder %v320, %v557
        %vm580 = vcmp.eq.s32.totalorder %v320, %v558
        %vm581 = vcmp.eq.s32.totalorder %v331, %v557
        %vm582 = vcmp.eq.s32.totalorder %v331, %v558
        %vm583 = vcmp.eq.s32.totalorder %v342, %v557
        %vm584 = vcmp.eq.s32.totalorder %v342, %v558
        %vm585 = vcmp.eq.s32.totalorder %v353, %v557
        %vm586 = vcmp.eq.s32.totalorder %v353, %v558
        %vm587 = vcmp.eq.s32.totalorder %v364, %v557
        %vm588 = vcmp.eq.s32.totalorder %v364, %v558
        %vm589 = vcmp.eq.s32.totalorder %v375, %v557
        %vm590 = vcmp.eq.s32.totalorder %v375, %v558
        %vm591 = vcmp.eq.s32.totalorder %v386, %v557
        %vm592 = vcmp.eq.s32.totalorder %v386, %v558
        %vm593 = vcmp.eq.s32.totalorder %v397, %v557
        %vm594 = vcmp.eq.s32.totalorder %v397, %v558
        %vm595 = vcmp.eq.s32.totalorder %v408, %v557
        %vm596 = vcmp.eq.s32.totalorder %v408, %v558
        %vm597 = vcmp.eq.s32.totalorder %v419, %v557
        %vm598 = vcmp.eq.s32.totalorder %v419, %v558
        %vm599 = vcmp.eq.s32.totalorder %v430, %v557
        %vm600 = vcmp.eq.s32.totalorder %v430, %v558
        %vm601 = vcmp.eq.s32.totalorder %v441, %v557
        %vm602 = vcmp.eq.s32.totalorder %v441, %v558
        %vm603 = vcmp.eq.s32.totalorder %v452, %v557
        %vm604 = vcmp.eq.s32.totalorder %v452, %v558
        %vm605 = vcmp.eq.s32.totalorder %v463, %v557
        %vm606 = vcmp.eq.s32.totalorder %v463, %v558
        %vm607 = vcmp.eq.s32.totalorder %v474, %v557
        %vm608 = vcmp.eq.s32.totalorder %v474, %v558
        %vm609 = vcmp.eq.s32.totalorder %v485, %v557
        %vm610 = vcmp.eq.s32.totalorder %v485, %v558
        %vm611 = vcmp.eq.s32.totalorder %v496, %v557
        %vm612 = vcmp.eq.s32.totalorder %v496, %v558
        %vm613 = vcmp.eq.s32.totalorder %v507, %v557
        %vm614 = vcmp.eq.s32.totalorder %v507, %v558
        %vm615 = vcmp.eq.s32.totalorder %v518, %v557
        %vm616 = vcmp.eq.s32.totalorder %v518, %v558
        %vm617 = vcmp.eq.s32.totalorder %v529, %v557
        %vm618 = vcmp.eq.s32.totalorder %v529, %v558
        %vm619 = vcmp.eq.s32.totalorder %v540, %v557
        %vm620 = vcmp.eq.s32.totalorder %v540, %v558
        %vm621 = vcmp.eq.s32.totalorder %v551, %v557
        %vm622 = vcmp.eq.s32.totalorder %v551, %v558
        %v623 = vsel %vm559, 1, 0
        %v624 = vsel %vm560, 1, 0
        %v625 = vsel %vm561, 1, 0
        %v626 = vsel %vm562, 1, 0
        %v627 = vsel %vm563, 1, 0
        %v628 = vsel %vm564, 1, 0
        %v629 = vsel %vm565, 1, 0
        %v630 = vsel %vm566, 1, 0
        %v631 = vsel %vm567, 1, 0
        %v632 = vsel %vm568, 1, 0
        %v633 = vsel %vm569, 1, 0
        %v634 = vsel %vm570, 1, 0
        %v635 = vsel %vm571, 1, 0
        %v636 = vsel %vm572, 1, 0
        %v637 = vsel %vm573, 1, 0
        %v638 = vsel %vm574, 1, 0
        %v639 = vsel %vm575, 1, 0
        %v640 = vsel %vm576, 1, 0
        %v641 = vsel %vm577, 1, 0
        %v642 = vsel %vm578, 1, 0
        %v643 = vsel %vm579, 1, 0
        %v644 = vsel %vm580, 1, 0
        %v645 = vsel %vm581, 1, 0
        %v646 = vsel %vm582, 1, 0
        %v647 = vsel %vm583, 1, 0
        %v648 = vsel %vm584, 1, 0
        %v649 = vsel %vm585, 1, 0
        %v650 = vsel %vm586, 1, 0
        %v651 = vsel %vm587, 1, 0
        %v652 = vsel %vm588, 1, 0
        %v653 = vsel %vm589, 1, 0
        %v654 = vsel %vm590, 1, 0
        %v655 = vsel %vm591, 1, 0
        %v656 = vsel %vm592, 1, 0
        %v657 = vsel %vm593, 1, 0
        %v658 = vsel %vm594, 1, 0
        %v659 = vsel %vm595, 1, 0
        %v660 = vsel %vm596, 1, 0
        %v661 = vsel %vm597, 1, 0
        %v662 = vsel %vm598, 1, 0
        %v663 = vsel %vm599, 1, 0
        %v664 = vsel %vm600, 1, 0
        %v665 = vsel %vm601, 1, 0
        %v666 = vsel %vm602, 1, 0
        %v667 = vsel %vm603, 1, 0
        %v668 = vsel %vm604, 1, 0
        %v669 = vsel %vm605, 1, 0
        %v670 = vsel %vm606, 1, 0
        %v671 = vsel %vm607, 1, 0
        %v672 = vsel %vm608, 1, 0
        %v673 = vsel %vm609, 1, 0
        %v674 = vsel %vm610, 1, 0
        %v675 = vsel %vm611, 1, 0
        %v676 = vsel %vm612, 1, 0
        %v677 = vsel %vm613, 1, 0
        %v678 = vsel %vm614, 1, 0
        %v679 = vsel %vm615, 1, 0
        %v680 = vsel %vm616, 1, 0
        %v681 = vsel %vm617, 1, 0
        %v682 = vsel %vm618, 1, 0
        %v683 = vsel %vm619, 1, 0
        %v684 = vsel %vm620, 1, 0
        %v685 = vsel %vm621, 1, 0
        %v686 = vsel %vm622, 1, 0
        %v687 = vcvt.s32.f32 %v623
        %v688 = vcvt.s32.f32 %v624
        %v689 = vcvt.s32.f32 %v625
        %v690 = vcvt.s32.f32 %v626
        %v691 = vcvt.s32.f32 %v627
        %v692 = vcvt.s32.f32 %v628
        %v693 = vcvt.s32.f32 %v629
        %v694 = vcvt.s32.f32 %v630
        %v695 = vcvt.s32.f32 %v631
        %v696 = vcvt.s32.f32 %v632
        %v697 = vcvt.s32.f32 %v633
        %v698 = vcvt.s32.f32 %v634
        %v699 = vcvt.s32.f32 %v635
        %v700 = vcvt.s32.f32 %v636
        %v701 = vcvt.s32.f32 %v637
        %v702 = vcvt.s32.f32 %v638
        %v703 = vcvt.s32.f32 %v639
        %v704 = vcvt.s32.f32 %v640
        %v705 = vcvt.s32.f32 %v641
        %v706 = vcvt.s32.f32 %v642
        %v707 = vcvt.s32.f32 %v643
        %v708 = vcvt.s32.f32 %v644
        %v709 = vcvt.s32.f32 %v645
        %v710 = vcvt.s32.f32 %v646
        %v711 = vcvt.s32.f32 %v647
        %v712 = vcvt.s32.f32 %v648
        %v713 = vcvt.s32.f32 %v649
        %v714 = vcvt.s32.f32 %v650
        %v715 = vcvt.s32.f32 %v651
        %v716 = vcvt.s32.f32 %v652
        %v717 = vcvt.s32.f32 %v653
        %v718 = vcvt.s32.f32 %v654
        %v719 = vcvt.s32.f32 %v655
        %v720 = vcvt.s32.f32 %v656
        %v721 = vcvt.s32.f32 %v657
        %v722 = vcvt.s32.f32 %v658
        %v723 = vcvt.s32.f32 %v659
        %v724 = vcvt.s32.f32 %v660
        %v725 = vcvt.s32.f32 %v661
        %v726 = vcvt.s32.f32 %v662
        %v727 = vcvt.s32.f32 %v663
        %v728 = vcvt.s32.f32 %v664
        %v729 = vcvt.s32.f32 %v665
        %v730 = vcvt.s32.f32 %v666
        %v731 = vcvt.s32.f32 %v667
        %v732 = vcvt.s32.f32 %v668
        %v733 = vcvt.s32.f32 %v669
        %v734 = vcvt.s32.f32 %v670
        %v735 = vcvt.s32.f32 %v671
        %v736 = vcvt.s32.f32 %v672
        %v737 = vcvt.s32.f32 %v673
        %v738 = vcvt.s32.f32 %v674
        %v739 = vcvt.s32.f32 %v675
        %v740 = vcvt.s32.f32 %v676
        %v741 = vcvt.s32.f32 %v677
        %v742 = vcvt.s32.f32 %v678
        %v743 = vcvt.s32.f32 %v679
        %v744 = vcvt.s32.f32 %v680
        %v745 = vcvt.s32.f32 %v681
        %v746 = vcvt.s32.f32 %v682
        %v747 = vcvt.s32.f32 %v683
        %v748 = vcvt.s32.f32 %v684
        %v749 = vcvt.s32.f32 %v685
        %v750 = vcvt.s32.f32 %v686
        %v751 = vpack.c.bf16 %v687, %v687
        %v752 = vpack.c.bf16 %v688, %v688
        %v753 = vpack.c.bf16 %v689, %v689
        %v754 = vpack.c.bf16 %v690, %v690
        %v755 = vpack.c.bf16 %v691, %v691
        %v756 = vpack.c.bf16 %v692, %v692
        %v757 = vpack.c.bf16 %v693, %v693
        %v758 = vpack.c.bf16 %v694, %v694
        %v759 = vpack.c.bf16 %v695, %v695
        %v760 = vpack.c.bf16 %v696, %v696
        %v761 = vpack.c.bf16 %v697, %v697
        %v762 = vpack.c.bf16 %v698, %v698
        %v763 = vpack.c.bf16 %v699, %v699
        %v764 = vpack.c.bf16 %v700, %v700
        %v765 = vpack.c.bf16 %v701, %v701
        %v766 = vpack.c.bf16 %v702, %v702
        %v767 = vpack.c.bf16 %v703, %v703
        %v768 = vpack.c.bf16 %v704, %v704
        %v769 = vpack.c.bf16 %v705, %v705
        %v770 = vpack.c.bf16 %v706, %v706
        %v771 = vpack.c.bf16 %v707, %v707
        %v772 = vpack.c.bf16 %v708, %v708
        %v773 = vpack.c.bf16 %v709, %v709
        %v774 = vpack.c.bf16 %v710, %v710
        %v775 = vpack.c.bf16 %v711, %v711
        %v776 = vpack.c.bf16 %v712, %v712
        %v777 = vpack.c.bf16 %v713, %v713
        %v778 = vpack.c.bf16 %v714, %v714
        %v779 = vpack.c.bf16 %v715, %v715
        %v780 = vpack.c.bf16 %v716, %v716
        %v781 = vpack.c.bf16 %v717, %v717
        %v782 = vpack.c.bf16 %v718, %v718
        %v783 = vpack.c.bf16 %v719, %v719
        %v784 = vpack.c.bf16 %v720, %v720
        %v785 = vpack.c.bf16 %v721, %v721
        %v786 = vpack.c.bf16 %v722, %v722
        %v787 = vpack.c.bf16 %v723, %v723
        %v788 = vpack.c.bf16 %v724, %v724
        %v789 = vpack.c.bf16 %v725, %v725
        %v790 = vpack.c.bf16 %v726, %v726
        %v791 = vpack.c.bf16 %v727, %v727
        %v792 = vpack.c.bf16 %v728, %v728
        %v793 = vpack.c.bf16 %v729, %v729
        %v794 = vpack.c.bf16 %v730, %v730
        %v795 = vpack.c.bf16 %v731, %v731
        %v796 = vpack.c.bf16 %v732, %v732
        %v797 = vpack.c.bf16 %v733, %v733
        %v798 = vpack.c.bf16 %v734, %v734
        %v799 = vpack.c.bf16 %v735, %v735
        %v800 = vpack.c.bf16 %v736, %v736
        %v801 = vpack.c.bf16 %v737, %v737
        %v802 = vpack.c.bf16 %v738, %v738
        %v803 = vpack.c.bf16 %v739, %v739
        %v804 = vpack.c.bf16 %v740, %v740
        %v805 = vpack.c.bf16 %v741, %v741
        %v806 = vpack.c.bf16 %v742, %v742
        %v807 = vpack.c.bf16 %v743, %v743
        %v808 = vpack.c.bf16 %v744, %v744
        %v809 = vpack.c.bf16 %v745, %v745
        %v810 = vpack.c.bf16 %v746, %v746
        %v811 = vpack.c.bf16 %v747, %v747
        %v812 = vpack.c.bf16 %v748, %v748
        %v813 = vpack.c.bf16 %v749, %v749
        %v814 = vpack.c.bf16 %v750, %v750
        %v815 = vadd.s32 %v210, 30
        %v816 = vadd.s32 %v214, 30
        %v817 = vadd.s32 %v221, 30
        %v818 = vadd.s32 %v225, 30
        %v819 = vadd.s32 %v232, 30
        %v820 = vadd.s32 %v236, 30
        %v821 = vadd.s32 %v243, 30
        %v822 = vadd.s32 %v247, 30
        %v823 = vadd.s32 %v254, 30
        %v824 = vadd.s32 %v258, 30
        %v825 = vadd.s32 %v265, 30
        %v826 = vadd.s32 %v269, 30
        %v827 = vadd.s32 %v276, 30
        %v828 = vadd.s32 %v280, 30
        %v829 = vadd.s32 %v287, 30
        %v830 = vadd.s32 %v291, 30
        %v831 = vadd.s32 %v298, 30
        %v832 = vadd.s32 %v302, 30
        %v833 = vadd.s32 %v309, 30
        %v834 = vadd.s32 %v313, 30
        %v835 = vadd.s32 %v320, 30
        %v836 = vadd.s32 %v324, 30
        %v837 = vadd.s32 %v331, 30
        %v838 = vadd.s32 %v335, 30
        %v839 = vadd.s32 %v342, 30
        %v840 = vadd.s32 %v346, 30
        %v841 = vadd.s32 %v353, 30
        %v842 = vadd.s32 %v357, 30
        %v843 = vadd.s32 %v364, 30
        %v844 = vadd.s32 %v368, 30
        %v845 = vadd.s32 %v375, 30
        %v846 = vadd.s32 %v379, 30
        %v847 = vadd.s32 %v386, 30
        %v848 = vadd.s32 %v390, 30
        %v849 = vadd.s32 %v397, 30
        %v850 = vadd.s32 %v401, 30
        %v851 = vadd.s32 %v408, 30
        %v852 = vadd.s32 %v412, 30
        %v853 = vadd.s32 %v419, 30
        %v854 = vadd.s32 %v423, 30
        %v855 = vadd.s32 %v430, 30
        %v856 = vadd.s32 %v434, 30
        %v857 = vadd.s32 %v441, 30
        %v858 = vadd.s32 %v445, 30
        %v859 = vadd.s32 %v452, 30
        %v860 = vadd.s32 %v456, 30
        %v861 = vadd.s32 %v463, 30
        %v862 = vadd.s32 %v467, 30
        %v863 = vadd.s32 %v474, 30
        %v864 = vadd.s32 %v478, 30
        %v865 = vadd.s32 %v485, 30
        %v866 = vadd.s32 %v489, 30
        %v867 = vadd.s32 %v496, 30
        %v868 = vadd.s32 %v500, 30
        %v869 = vadd.s32 %v507, 30
        %v870 = vadd.s32 %v511, 30
        %v871 = vadd.s32 %v518, 30
        %v872 = vadd.s32 %v522, 30
        %v873 = vadd.s32 %v529, 30
        %v874 = vadd.s32 %v533, 30
        %v875 = vadd.s32 %v540, 30
        %v876 = vadd.s32 %v544, 30
        %v877 = vadd.s32 %v551, 30
        %v878 = vadd.s32 %v555, 30
        %vm879 = vcmp.eq.s32.totalorder %v815, %v557
        %vm880 = vcmp.eq.s32.totalorder %v815, %v558
        %vm881 = vcmp.eq.s32.totalorder %v816, %v557
        %vm882 = vcmp.eq.s32.totalorder %v816, %v558
        %vm883 = vcmp.eq.s32.totalorder %v817, %v557
        %vm884 = vcmp.eq.s32.totalorder %v817, %v558
        %vm885 = vcmp.eq.s32.totalorder %v818, %v557
        %vm886 = vcmp.eq.s32.totalorder %v818, %v558
        %vm887 = vcmp.eq.s32.totalorder %v819, %v557
        %vm888 = vcmp.eq.s32.totalorder %v819, %v558
        %vm889 = vcmp.eq.s32.totalorder %v820, %v557
        %vm890 = vcmp.eq.s32.totalorder %v820, %v558
        %vm891 = vcmp.eq.s32.totalorder %v821, %v557
        %vm892 = vcmp.eq.s32.totalorder %v821, %v558
        %vm893 = vcmp.eq.s32.totalorder %v822, %v557
        %vm894 = vcmp.eq.s32.totalorder %v822, %v558
        %vm895 = vcmp.eq.s32.totalorder %v823, %v557
        %vm896 = vcmp.eq.s32.totalorder %v823, %v558
        %vm897 = vcmp.eq.s32.totalorder %v824, %v557
        %vm898 = vcmp.eq.s32.totalorder %v824, %v558
        %vm899 = vcmp.eq.s32.totalorder %v825, %v557
        %vm900 = vcmp.eq.s32.totalorder %v825, %v558
        %vm901 = vcmp.eq.s32.totalorder %v826, %v557
        %vm902 = vcmp.eq.s32.totalorder %v826, %v558
        %vm903 = vcmp.eq.s32.totalorder %v827, %v557
        %vm904 = vcmp.eq.s32.totalorder %v827, %v558
        %vm905 = vcmp.eq.s32.totalorder %v828, %v557
        %vm906 = vcmp.eq.s32.totalorder %v828, %v558
        %vm907 = vcmp.eq.s32.totalorder %v829, %v557
        %vm908 = vcmp.eq.s32.totalorder %v829, %v558
        %vm909 = vcmp.eq.s32.totalorder %v830, %v557
        %vm910 = vcmp.eq.s32.totalorder %v830, %v558
        %vm911 = vcmp.eq.s32.totalorder %v831, %v557
        %vm912 = vcmp.eq.s32.totalorder %v831, %v558
        %vm913 = vcmp.eq.s32.totalorder %v832, %v557
        %vm914 = vcmp.eq.s32.totalorder %v832, %v558
        %vm915 = vcmp.eq.s32.totalorder %v833, %v557
        %vm916 = vcmp.eq.s32.totalorder %v833, %v558
        %vm917 = vcmp.eq.s32.totalorder %v834, %v557
        %vm918 = vcmp.eq.s32.totalorder %v834, %v558
        %vm919 = vcmp.eq.s32.totalorder %v835, %v557
        %vm920 = vcmp.eq.s32.totalorder %v835, %v558
        %vm921 = vcmp.eq.s32.totalorder %v836, %v557
        %vm922 = vcmp.eq.s32.totalorder %v836, %v558
        %vm923 = vcmp.eq.s32.totalorder %v837, %v557
        %vm924 = vcmp.eq.s32.totalorder %v837, %v558
        %vm925 = vcmp.eq.s32.totalorder %v838, %v557
        %vm926 = vcmp.eq.s32.totalorder %v838, %v558
        %vm927 = vcmp.eq.s32.totalorder %v839, %v557
        %vm928 = vcmp.eq.s32.totalorder %v839, %v558
        %vm929 = vcmp.eq.s32.totalorder %v840, %v557
        %vm930 = vcmp.eq.s32.totalorder %v840, %v558
        %vm931 = vcmp.eq.s32.totalorder %v841, %v557
        %vm932 = vcmp.eq.s32.totalorder %v841, %v558
        %vm933 = vcmp.eq.s32.totalorder %v842, %v557
        %vm934 = vcmp.eq.s32.totalorder %v842, %v558
        %vm935 = vcmp.eq.s32.totalorder %v843, %v557
        %vm936 = vcmp.eq.s32.totalorder %v843, %v558
        %vm937 = vcmp.eq.s32.totalorder %v844, %v557
        %vm938 = vcmp.eq.s32.totalorder %v844, %v558
        %vm939 = vcmp.eq.s32.totalorder %v845, %v557
        %vm940 = vcmp.eq.s32.totalorder %v845, %v558
        %vm941 = vcmp.eq.s32.totalorder %v846, %v557
        %vm942 = vcmp.eq.s32.totalorder %v846, %v558
        %vm943 = vcmp.eq.s32.totalorder %v847, %v557
        %vm944 = vcmp.eq.s32.totalorder %v847, %v558
        %vm945 = vcmp.eq.s32.totalorder %v848, %v557
        %vm946 = vcmp.eq.s32.totalorder %v848, %v558
        %vm947 = vcmp.eq.s32.totalorder %v849, %v557
        %vm948 = vcmp.eq.s32.totalorder %v849, %v558
        %vm949 = vcmp.eq.s32.totalorder %v850, %v557
        %vm950 = vcmp.eq.s32.totalorder %v850, %v558
        %vm951 = vcmp.eq.s32.totalorder %v851, %v557
        %vm952 = vcmp.eq.s32.totalorder %v851, %v558
        %vm953 = vcmp.eq.s32.totalorder %v852, %v557
        %vm954 = vcmp.eq.s32.totalorder %v852, %v558
        %vm955 = vcmp.eq.s32.totalorder %v853, %v557
        %vm956 = vcmp.eq.s32.totalorder %v853, %v558
        %vm957 = vcmp.eq.s32.totalorder %v854, %v557
        %vm958 = vcmp.eq.s32.totalorder %v854, %v558
        %vm959 = vcmp.eq.s32.totalorder %v855, %v557
        %vm960 = vcmp.eq.s32.totalorder %v855, %v558
        %vm961 = vcmp.eq.s32.totalorder %v856, %v557
        %vm962 = vcmp.eq.s32.totalorder %v856, %v558
        %vm963 = vcmp.eq.s32.totalorder %v857, %v557
        %vm964 = vcmp.eq.s32.totalorder %v857, %v558
        %vm965 = vcmp.eq.s32.totalorder %v858, %v557
        %vm966 = vcmp.eq.s32.totalorder %v858, %v558
        %vm967 = vcmp.eq.s32.totalorder %v859, %v557
        %vm968 = vcmp.eq.s32.totalorder %v859, %v558
        %vm969 = vcmp.eq.s32.totalorder %v860, %v557
        %vm970 = vcmp.eq.s32.totalorder %v860, %v558
        %vm971 = vcmp.eq.s32.totalorder %v861, %v557
        %vm972 = vcmp.eq.s32.totalorder %v861, %v558
        %vm973 = vcmp.eq.s32.totalorder %v862, %v557
        %vm974 = vcmp.eq.s32.totalorder %v862, %v558
        %vm975 = vcmp.eq.s32.totalorder %v863, %v557
        %vm976 = vcmp.eq.s32.totalorder %v863, %v558
        %vm977 = vcmp.eq.s32.totalorder %v864, %v557
        %vm978 = vcmp.eq.s32.totalorder %v864, %v558
        %vm979 = vcmp.eq.s32.totalorder %v865, %v557
        %vm980 = vcmp.eq.s32.totalorder %v865, %v558
        %vm981 = vcmp.eq.s32.totalorder %v866, %v557
        %vm982 = vcmp.eq.s32.totalorder %v866, %v558
        %vm983 = vcmp.eq.s32.totalorder %v867, %v557
        %vm984 = vcmp.eq.s32.totalorder %v867, %v558
        %vm985 = vcmp.eq.s32.totalorder %v868, %v557
        %vm986 = vcmp.eq.s32.totalorder %v868, %v558
        %vm987 = vcmp.eq.s32.totalorder %v869, %v557
        %vm988 = vcmp.eq.s32.totalorder %v869, %v558
        %vm989 = vcmp.eq.s32.totalorder %v870, %v557
        %vm990 = vcmp.eq.s32.totalorder %v870, %v558
        %vm991 = vcmp.eq.s32.totalorder %v871, %v557
        %vm992 = vcmp.eq.s32.totalorder %v871, %v558
        %vm993 = vcmp.eq.s32.totalorder %v872, %v557
        %vm994 = vcmp.eq.s32.totalorder %v872, %v558
        %vm995 = vcmp.eq.s32.totalorder %v873, %v557
        %vm996 = vcmp.eq.s32.totalorder %v873, %v558
        %vm997 = vcmp.eq.s32.totalorder %v874, %v557
        %vm998 = vcmp.eq.s32.totalorder %v874, %v558
        %vm999 = vcmp.eq.s32.totalorder %v875, %v557
        %vm1000 = vcmp.eq.s32.totalorder %v875, %v558
        %vm1001 = vcmp.eq.s32.totalorder %v876, %v557
        %vm1002 = vcmp.eq.s32.totalorder %v876, %v558
        %vm1003 = vcmp.eq.s32.totalorder %v877, %v557
        %vm1004 = vcmp.eq.s32.totalorder %v877, %v558
        %vm1005 = vcmp.eq.s32.totalorder %v878, %v557
        %vm1006 = vcmp.eq.s32.totalorder %v878, %v558
        %v1007 = vsel %vm879, 1, 0
        %v1008 = vsel %vm880, 1, 0
        %v1009 = vsel %vm881, 1, 0
        %v1010 = vsel %vm882, 1, 0
        %v1011 = vsel %vm883, 1, 0
        %v1012 = vsel %vm884, 1, 0
        %v1013 = vsel %vm885, 1, 0
        %v1014 = vsel %vm886, 1, 0
        %v1015 = vsel %vm887, 1, 0
        %v1016 = vsel %vm888, 1, 0
        %v1017 = vsel %vm889, 1, 0
        %v1018 = vsel %vm890, 1, 0
        %v1019 = vsel %vm891, 1, 0
        %v1020 = vsel %vm892, 1, 0
        %v1021 = vsel %vm893, 1, 0
        %v1022 = vsel %vm894, 1, 0
        %v1023 = vsel %vm895, 1, 0
        %v1024 = vsel %vm896, 1, 0
        %v1025 = vsel %vm897, 1, 0
        %v1026 = vsel %vm898, 1, 0
        %v1027 = vsel %vm899, 1, 0
        %v1028 = vsel %vm900, 1, 0
        %v1029 = vsel %vm901, 1, 0
        %v1030 = vsel %vm902, 1, 0
        %v1031 = vsel %vm903, 1, 0
        %v1032 = vsel %vm904, 1, 0
        %v1033 = vsel %vm905, 1, 0
        %v1034 = vsel %vm906, 1, 0
        %v1035 = vsel %vm907, 1, 0
        %v1036 = vsel %vm908, 1, 0
        %v1037 = vsel %vm909, 1, 0
        %v1038 = vsel %vm910, 1, 0
        %v1039 = vsel %vm911, 1, 0
        %v1040 = vsel %vm912, 1, 0
        %v1041 = vsel %vm913, 1, 0
        %v1042 = vsel %vm914, 1, 0
        %v1043 = vsel %vm915, 1, 0
        %v1044 = vsel %vm916, 1, 0
        %v1045 = vsel %vm917, 1, 0
        %v1046 = vsel %vm918, 1, 0
        %v1047 = vsel %vm919, 1, 0
        %v1048 = vsel %vm920, 1, 0
        %v1049 = vsel %vm921, 1, 0
        %v1050 = vsel %vm922, 1, 0
        %v1051 = vsel %vm923, 1, 0
        %v1052 = vsel %vm924, 1, 0
        %v1053 = vsel %vm925, 1, 0
        %v1054 = vsel %vm926, 1, 0
        %v1055 = vsel %vm927, 1, 0
        %v1056 = vsel %vm928, 1, 0
        %v1057 = vsel %vm929, 1, 0
        %v1058 = vsel %vm930, 1, 0
        %v1059 = vsel %vm931, 1, 0
        %v1060 = vsel %vm932, 1, 0
        %v1061 = vsel %vm933, 1, 0
        %v1062 = vsel %vm934, 1, 0
        %v1063 = vsel %vm935, 1, 0
        %v1064 = vsel %vm936, 1, 0
        %v1065 = vsel %vm937, 1, 0
        %v1066 = vsel %vm938, 1, 0
        %v1067 = vsel %vm939, 1, 0
        %v1068 = vsel %vm940, 1, 0
        %v1069 = vsel %vm941, 1, 0
        %v1070 = vsel %vm942, 1, 0
        %v1071 = vsel %vm943, 1, 0
        %v1072 = vsel %vm944, 1, 0
        %v1073 = vsel %vm945, 1, 0
        %v1074 = vsel %vm946, 1, 0
        %v1075 = vsel %vm947, 1, 0
        %v1076 = vsel %vm948, 1, 0
        %v1077 = vsel %vm949, 1, 0
        %v1078 = vsel %vm950, 1, 0
        %v1079 = vsel %vm951, 1, 0
        %v1080 = vsel %vm952, 1, 0
        %v1081 = vsel %vm953, 1, 0
        %v1082 = vsel %vm954, 1, 0
        %v1083 = vsel %vm955, 1, 0
        %v1084 = vsel %vm956, 1, 0
        %v1085 = vsel %vm957, 1, 0
        %v1086 = vsel %vm958, 1, 0
        %v1087 = vsel %vm959, 1, 0
        %v1088 = vsel %vm960, 1, 0
        %v1089 = vsel %vm961, 1, 0
        %v1090 = vsel %vm962, 1, 0
        %v1091 = vsel %vm963, 1, 0
        %v1092 = vsel %vm964, 1, 0
        %v1093 = vsel %vm965, 1, 0
        %v1094 = vsel %vm966, 1, 0
        %v1095 = vsel %vm967, 1, 0
        %v1096 = vsel %vm968, 1, 0
        %v1097 = vsel %vm969, 1, 0
        %v1098 = vsel %vm970, 1, 0
        %v1099 = vsel %vm971, 1, 0
        %v1100 = vsel %vm972, 1, 0
        %v1101 = vsel %vm973, 1, 0
        %v1102 = vsel %vm974, 1, 0
        %v1103 = vsel %vm975, 1, 0
        %v1104 = vsel %vm976, 1, 0
        %v1105 = vsel %vm977, 1, 0
        %v1106 = vsel %vm978, 1, 0
        %v1107 = vsel %vm979, 1, 0
        %v1108 = vsel %vm980, 1, 0
        %v1109 = vsel %vm981, 1, 0
        %v1110 = vsel %vm982, 1, 0
        %v1111 = vsel %vm983, 1, 0
        %v1112 = vsel %vm984, 1, 0
        %v1113 = vsel %vm985, 1, 0
        %v1114 = vsel %vm986, 1, 0
        %v1115 = vsel %vm987, 1, 0
        %v1116 = vsel %vm988, 1, 0
        %v1117 = vsel %vm989, 1, 0
        %v1118 = vsel %vm990, 1, 0
        %v1119 = vsel %vm991, 1, 0
        %v1120 = vsel %vm992, 1, 0
        %v1121 = vsel %vm993, 1, 0
        %v1122 = vsel %vm994, 1, 0
        %v1123 = vsel %vm995, 1, 0
        %v1124 = vsel %vm996, 1, 0
        %v1125 = vsel %vm997, 1, 0
        %v1126 = vsel %vm998, 1, 0
        %v1127 = vsel %vm999, 1, 0
        %v1128 = vsel %vm1000, 1, 0
        %v1129 = vsel %vm1001, 1, 0
        %v1130 = vsel %vm1002, 1, 0
        %v1131 = vsel %vm1003, 1, 0
        %v1132 = vsel %vm1004, 1, 0
        %v1133 = vsel %vm1005, 1, 0
        %v1134 = vsel %vm1006, 1, 0
        %v1135 = vcvt.s32.f32 %v1007
        %v1136 = vcvt.s32.f32 %v1008
        %v1137 = vcvt.s32.f32 %v1009
        %v1138 = vcvt.s32.f32 %v1010
        %v1139 = vcvt.s32.f32 %v1011
        %v1140 = vcvt.s32.f32 %v1012
        %v1141 = vcvt.s32.f32 %v1013
        %v1142 = vcvt.s32.f32 %v1014
        %v1143 = vcvt.s32.f32 %v1015
        %v1144 = vcvt.s32.f32 %v1016
        %v1145 = vcvt.s32.f32 %v1017
        %v1146 = vcvt.s32.f32 %v1018
        %v1147 = vcvt.s32.f32 %v1019
        %v1148 = vcvt.s32.f32 %v1020
        %v1149 = vcvt.s32.f32 %v1021
        %v1150 = vcvt.s32.f32 %v1022
        %v1151 = vcvt.s32.f32 %v1023
        %v1152 = vcvt.s32.f32 %v1024
        %v1153 = vcvt.s32.f32 %v1025
        %v1154 = vcvt.s32.f32 %v1026
        %v1155 = vcvt.s32.f32 %v1027
        %v1156 = vcvt.s32.f32 %v1028
        %v1157 = vcvt.s32.f32 %v1029
        %v1158 = vcvt.s32.f32 %v1030
        %v1159 = vcvt.s32.f32 %v1031
        %v1160 = vcvt.s32.f32 %v1032
        %v1161 = vcvt.s32.f32 %v1033
        %v1162 = vcvt.s32.f32 %v1034
        %v1163 = vcvt.s32.f32 %v1035
        %v1164 = vcvt.s32.f32 %v1036
        %v1165 = vcvt.s32.f32 %v1037
        %v1166 = vcvt.s32.f32 %v1038
        %v1167 = vcvt.s32.f32 %v1039
        %v1168 = vcvt.s32.f32 %v1040
        %v1169 = vcvt.s32.f32 %v1041
        %v1170 = vcvt.s32.f32 %v1042
        %v1171 = vcvt.s32.f32 %v1043
        %v1172 = vcvt.s32.f32 %v1044
        %v1173 = vcvt.s32.f32 %v1045
        %v1174 = vcvt.s32.f32 %v1046
        %v1175 = vcvt.s32.f32 %v1047
        %v1176 = vcvt.s32.f32 %v1048
        %v1177 = vcvt.s32.f32 %v1049
        %v1178 = vcvt.s32.f32 %v1050
        %v1179 = vcvt.s32.f32 %v1051
        %v1180 = vcvt.s32.f32 %v1052
        %v1181 = vcvt.s32.f32 %v1053
        %v1182 = vcvt.s32.f32 %v1054
        %v1183 = vcvt.s32.f32 %v1055
        %v1184 = vcvt.s32.f32 %v1056
        %v1185 = vcvt.s32.f32 %v1057
        %v1186 = vcvt.s32.f32 %v1058
        %v1187 = vcvt.s32.f32 %v1059
        %v1188 = vcvt.s32.f32 %v1060
        %v1189 = vcvt.s32.f32 %v1061
        %v1190 = vcvt.s32.f32 %v1062
        %v1191 = vcvt.s32.f32 %v1063
        %v1192 = vcvt.s32.f32 %v1064
        %v1193 = vcvt.s32.f32 %v1065
        %v1194 = vcvt.s32.f32 %v1066
        %v1195 = vcvt.s32.f32 %v1067
        %v1196 = vcvt.s32.f32 %v1068
        %v1197 = vcvt.s32.f32 %v1069
        %v1198 = vcvt.s32.f32 %v1070
        %v1199 = vcvt.s32.f32 %v1071
        %v1200 = vcvt.s32.f32 %v1072
        %v1201 = vcvt.s32.f32 %v1073
        %v1202 = vcvt.s32.f32 %v1074
        %v1203 = vcvt.s32.f32 %v1075
        %v1204 = vcvt.s32.f32 %v1076
        %v1205 = vcvt.s32.f32 %v1077
        %v1206 = vcvt.s32.f32 %v1078
        %v1207 = vcvt.s32.f32 %v1079
        %v1208 = vcvt.s32.f32 %v1080
        %v1209 = vcvt.s32.f32 %v1081
        %v1210 = vcvt.s32.f32 %v1082
        %v1211 = vcvt.s32.f32 %v1083
        %v1212 = vcvt.s32.f32 %v1084
        %v1213 = vcvt.s32.f32 %v1085
        %v1214 = vcvt.s32.f32 %v1086
        %v1215 = vcvt.s32.f32 %v1087
        %v1216 = vcvt.s32.f32 %v1088
        %v1217 = vcvt.s32.f32 %v1089
        %v1218 = vcvt.s32.f32 %v1090
        %v1219 = vcvt.s32.f32 %v1091
        %v1220 = vcvt.s32.f32 %v1092
        %v1221 = vcvt.s32.f32 %v1093
        %v1222 = vcvt.s32.f32 %v1094
        %v1223 = vcvt.s32.f32 %v1095
        %v1224 = vcvt.s32.f32 %v1096
        %v1225 = vcvt.s32.f32 %v1097
        %v1226 = vcvt.s32.f32 %v1098
        %v1227 = vcvt.s32.f32 %v1099
        %v1228 = vcvt.s32.f32 %v1100
        %v1229 = vcvt.s32.f32 %v1101
        %v1230 = vcvt.s32.f32 %v1102
        %v1231 = vcvt.s32.f32 %v1103
        %v1232 = vcvt.s32.f32 %v1104
        %v1233 = vcvt.s32.f32 %v1105
        %v1234 = vcvt.s32.f32 %v1106
        %v1235 = vcvt.s32.f32 %v1107
        %v1236 = vcvt.s32.f32 %v1108
        %v1237 = vcvt.s32.f32 %v1109
        %v1238 = vcvt.s32.f32 %v1110
        %v1239 = vcvt.s32.f32 %v1111
        %v1240 = vcvt.s32.f32 %v1112
        %v1241 = vcvt.s32.f32 %v1113
        %v1242 = vcvt.s32.f32 %v1114
        %v1243 = vcvt.s32.f32 %v1115
        %v1244 = vcvt.s32.f32 %v1116
        %v1245 = vcvt.s32.f32 %v1117
        %v1246 = vcvt.s32.f32 %v1118
        %v1247 = vcvt.s32.f32 %v1119
        %v1248 = vcvt.s32.f32 %v1120
        %v1249 = vcvt.s32.f32 %v1121
        %v1250 = vcvt.s32.f32 %v1122
        %v1251 = vcvt.s32.f32 %v1123
        %v1252 = vcvt.s32.f32 %v1124
        %v1253 = vcvt.s32.f32 %v1125
        %v1254 = vcvt.s32.f32 %v1126
        %v1255 = vcvt.s32.f32 %v1127
        %v1256 = vcvt.s32.f32 %v1128
        %v1257 = vcvt.s32.f32 %v1129
        %v1258 = vcvt.s32.f32 %v1130
        %v1259 = vcvt.s32.f32 %v1131
        %v1260 = vcvt.s32.f32 %v1132
        %v1261 = vcvt.s32.f32 %v1133
        %v1262 = vcvt.s32.f32 %v1134
        %v1263 = vpack.c.bf16 %v1137, %v1135
        %v1264 = vpack.c.bf16 %v1138, %v1136
        %v1265 = vpack.c.bf16 %v1141, %v1139
        %v1266 = vpack.c.bf16 %v1142, %v1140
        %v1267 = vpack.c.bf16 %v1145, %v1143
        %v1268 = vpack.c.bf16 %v1146, %v1144
        %v1269 = vpack.c.bf16 %v1149, %v1147
        %v1270 = vpack.c.bf16 %v1150, %v1148
        %v1271 = vpack.c.bf16 %v1153, %v1151
        %v1272 = vpack.c.bf16 %v1154, %v1152
        %v1273 = vpack.c.bf16 %v1157, %v1155
        %v1274 = vpack.c.bf16 %v1158, %v1156
        %v1275 = vpack.c.bf16 %v1161, %v1159
        %v1276 = vpack.c.bf16 %v1162, %v1160
        %v1277 = vpack.c.bf16 %v1165, %v1163
        %v1278 = vpack.c.bf16 %v1166, %v1164
        %v1279 = vpack.c.bf16 %v1169, %v1167
        %v1280 = vpack.c.bf16 %v1170, %v1168
        %v1281 = vpack.c.bf16 %v1173, %v1171
        %v1282 = vpack.c.bf16 %v1174, %v1172
        %v1283 = vpack.c.bf16 %v1177, %v1175
        %v1284 = vpack.c.bf16 %v1178, %v1176
        %v1285 = vpack.c.bf16 %v1181, %v1179
        %v1286 = vpack.c.bf16 %v1182, %v1180
        %v1287 = vpack.c.bf16 %v1185, %v1183
        %v1288 = vpack.c.bf16 %v1186, %v1184
        %v1289 = vpack.c.bf16 %v1189, %v1187
        %v1290 = vpack.c.bf16 %v1190, %v1188
        %v1291 = vpack.c.bf16 %v1193, %v1191
        %v1292 = vpack.c.bf16 %v1194, %v1192
        %v1293 = vpack.c.bf16 %v1197, %v1195
        %v1294 = vpack.c.bf16 %v1198, %v1196
        %v1295 = vpack.c.bf16 %v1201, %v1199
        %v1296 = vpack.c.bf16 %v1202, %v1200
        %v1297 = vpack.c.bf16 %v1205, %v1203
        %v1298 = vpack.c.bf16 %v1206, %v1204
        %v1299 = vpack.c.bf16 %v1209, %v1207
        %v1300 = vpack.c.bf16 %v1210, %v1208
        %v1301 = vpack.c.bf16 %v1213, %v1211
        %v1302 = vpack.c.bf16 %v1214, %v1212
        %v1303 = vpack.c.bf16 %v1217, %v1215
        %v1304 = vpack.c.bf16 %v1218, %v1216
        %v1305 = vpack.c.bf16 %v1221, %v1219
        %v1306 = vpack.c.bf16 %v1222, %v1220
        %v1307 = vpack.c.bf16 %v1225, %v1223
        %v1308 = vpack.c.bf16 %v1226, %v1224
        %v1309 = vpack.c.bf16 %v1229, %v1227
        %v1310 = vpack.c.bf16 %v1230, %v1228
        %v1311 = vpack.c.bf16 %v1233, %v1231
        %v1312 = vpack.c.bf16 %v1234, %v1232
        %v1313 = vpack.c.bf16 %v1237, %v1235
        %v1314 = vpack.c.bf16 %v1238, %v1236
        %v1315 = vpack.c.bf16 %v1241, %v1239
        %v1316 = vpack.c.bf16 %v1242, %v1240
        %v1317 = vpack.c.bf16 %v1245, %v1243
        %v1318 = vpack.c.bf16 %v1246, %v1244
        %v1319 = vpack.c.bf16 %v1249, %v1247
        %v1320 = vpack.c.bf16 %v1250, %v1248
        %v1321 = vpack.c.bf16 %v1253, %v1251
        %v1322 = vpack.c.bf16 %v1254, %v1252
        %v1323 = vpack.c.bf16 %v1257, %v1255
        %v1324 = vpack.c.bf16 %v1258, %v1256
        %v1325 = vpack.c.bf16 %v1261, %v1259
        %v1326 = vpack.c.bf16 %v1262, %v1260
        %v1328 = vshrl.u32 %v1263, 16
        %v1330 = vshll.u32 %v1263, 16
        %v1332 = vrot.slane %v1330, 1
        %v1333 = vor.u32 %v1328, %v1332
        %v1335 = vshrl.u32 %v1264, 16
        %v1337 = vshll.u32 %v1264, 16
        %v1339 = vrot.slane %v1337, 1
        %v1340 = vor.u32 %v1335, %v1339
        %v1342 = vshrl.u32 %v1265, 16
        %v1344 = vshll.u32 %v1265, 16
        %v1346 = vrot.slane %v1344, 1
        %v1347 = vor.u32 %v1342, %v1346
        %v1349 = vshrl.u32 %v1266, 16
        %v1351 = vshll.u32 %v1266, 16
        %v1353 = vrot.slane %v1351, 1
        %v1354 = vor.u32 %v1349, %v1353
        %v1356 = vshrl.u32 %v1267, 16
        %v1358 = vshll.u32 %v1267, 16
        %v1360 = vrot.slane %v1358, 1
        %v1361 = vor.u32 %v1356, %v1360
        %v1363 = vshrl.u32 %v1268, 16
        %v1365 = vshll.u32 %v1268, 16
        %v1367 = vrot.slane %v1365, 1
        %v1368 = vor.u32 %v1363, %v1367
        %v1370 = vshrl.u32 %v1269, 16
        %v1372 = vshll.u32 %v1269, 16
        %v1374 = vrot.slane %v1372, 1
        %v1375 = vor.u32 %v1370, %v1374
        %v1377 = vshrl.u32 %v1270, 16
        %v1379 = vshll.u32 %v1270, 16
        %v1381 = vrot.slane %v1379, 1
        %v1382 = vor.u32 %v1377, %v1381
        %v1384 = vshrl.u32 %v1271, 16
        %v1386 = vshll.u32 %v1271, 16
        %v1388 = vrot.slane %v1386, 1
        %v1389 = vor.u32 %v1384, %v1388
        %v1391 = vshrl.u32 %v1272, 16
        %v1393 = vshll.u32 %v1272, 16
        %v1395 = vrot.slane %v1393, 1
        %v1396 = vor.u32 %v1391, %v1395
        %v1398 = vshrl.u32 %v1273, 16
        %v1400 = vshll.u32 %v1273, 16
        %v1402 = vrot.slane %v1400, 1
        %v1403 = vor.u32 %v1398, %v1402
        %v1405 = vshrl.u32 %v1274, 16
        %v1407 = vshll.u32 %v1274, 16
        %v1409 = vrot.slane %v1407, 1
        %v1410 = vor.u32 %v1405, %v1409
        %v1412 = vshrl.u32 %v1275, 16
        %v1414 = vshll.u32 %v1275, 16
        %v1416 = vrot.slane %v1414, 1
        %v1417 = vor.u32 %v1412, %v1416
        %v1419 = vshrl.u32 %v1276, 16
        %v1421 = vshll.u32 %v1276, 16
        %v1423 = vrot.slane %v1421, 1
        %v1424 = vor.u32 %v1419, %v1423
        %v1426 = vshrl.u32 %v1277, 16
        %v1428 = vshll.u32 %v1277, 16
        %v1430 = vrot.slane %v1428, 1
        %v1431 = vor.u32 %v1426, %v1430
        %v1433 = vshrl.u32 %v1278, 16
        %v1435 = vshll.u32 %v1278, 16
        %v1437 = vrot.slane %v1435, 1
        %v1438 = vor.u32 %v1433, %v1437
        %v1440 = vshrl.u32 %v1279, 16
        %v1442 = vshll.u32 %v1279, 16
        %v1444 = vrot.slane %v1442, 1
        %v1445 = vor.u32 %v1440, %v1444
        %v1447 = vshrl.u32 %v1280, 16
        %v1449 = vshll.u32 %v1280, 16
        %v1451 = vrot.slane %v1449, 1
        %v1452 = vor.u32 %v1447, %v1451
        %v1454 = vshrl.u32 %v1281, 16
        %v1456 = vshll.u32 %v1281, 16
        %v1458 = vrot.slane %v1456, 1
        %v1459 = vor.u32 %v1454, %v1458
        %v1461 = vshrl.u32 %v1282, 16
        %v1463 = vshll.u32 %v1282, 16
        %v1465 = vrot.slane %v1463, 1
        %v1466 = vor.u32 %v1461, %v1465
        %v1468 = vshrl.u32 %v1283, 16
        %v1470 = vshll.u32 %v1283, 16
        %v1472 = vrot.slane %v1470, 1
        %v1473 = vor.u32 %v1468, %v1472
        %v1475 = vshrl.u32 %v1284, 16
        %v1477 = vshll.u32 %v1284, 16
        %v1479 = vrot.slane %v1477, 1
        %v1480 = vor.u32 %v1475, %v1479
        %v1482 = vshrl.u32 %v1285, 16
        %v1484 = vshll.u32 %v1285, 16
        %v1486 = vrot.slane %v1484, 1
        %v1487 = vor.u32 %v1482, %v1486
        %v1489 = vshrl.u32 %v1286, 16
        %v1491 = vshll.u32 %v1286, 16
        %v1493 = vrot.slane %v1491, 1
        %v1494 = vor.u32 %v1489, %v1493
        %v1496 = vshrl.u32 %v1287, 16
        %v1498 = vshll.u32 %v1287, 16
        %v1500 = vrot.slane %v1498, 1
        %v1501 = vor.u32 %v1496, %v1500
        %v1503 = vshrl.u32 %v1288, 16
        %v1505 = vshll.u32 %v1288, 16
        %v1507 = vrot.slane %v1505, 1
        %v1508 = vor.u32 %v1503, %v1507
        %v1510 = vshrl.u32 %v1289, 16
        %v1512 = vshll.u32 %v1289, 16
        %v1514 = vrot.slane %v1512, 1
        %v1515 = vor.u32 %v1510, %v1514
        %v1517 = vshrl.u32 %v1290, 16
        %v1519 = vshll.u32 %v1290, 16
        %v1521 = vrot.slane %v1519, 1
        %v1522 = vor.u32 %v1517, %v1521
        %v1524 = vshrl.u32 %v1291, 16
        %v1526 = vshll.u32 %v1291, 16
        %v1528 = vrot.slane %v1526, 1
        %v1529 = vor.u32 %v1524, %v1528
        %v1531 = vshrl.u32 %v1292, 16
        %v1533 = vshll.u32 %v1292, 16
        %v1535 = vrot.slane %v1533, 1
        %v1536 = vor.u32 %v1531, %v1535
        %v1538 = vshrl.u32 %v1293, 16
        %v1540 = vshll.u32 %v1293, 16
        %v1542 = vrot.slane %v1540, 1
        %v1543 = vor.u32 %v1538, %v1542
        %v1545 = vshrl.u32 %v1294, 16
        %v1547 = vshll.u32 %v1294, 16
        %v1549 = vrot.slane %v1547, 1
        %v1550 = vor.u32 %v1545, %v1549
        %v1552 = vshrl.u32 %v1295, 16
        %v1554 = vshll.u32 %v1295, 16
        %v1556 = vrot.slane %v1554, 1
        %v1557 = vor.u32 %v1552, %v1556
        %v1559 = vshrl.u32 %v1296, 16
        %v1561 = vshll.u32 %v1296, 16
        %v1563 = vrot.slane %v1561, 1
        %v1564 = vor.u32 %v1559, %v1563
        %v1566 = vshrl.u32 %v1297, 16
        %v1568 = vshll.u32 %v1297, 16
        %v1570 = vrot.slane %v1568, 1
        %v1571 = vor.u32 %v1566, %v1570
        %v1573 = vshrl.u32 %v1298, 16
        %v1575 = vshll.u32 %v1298, 16
        %v1577 = vrot.slane %v1575, 1
        %v1578 = vor.u32 %v1573, %v1577
        %v1580 = vshrl.u32 %v1299, 16
        %v1582 = vshll.u32 %v1299, 16
        %v1584 = vrot.slane %v1582, 1
        %v1585 = vor.u32 %v1580, %v1584
        %v1587 = vshrl.u32 %v1300, 16
        %v1589 = vshll.u32 %v1300, 16
        %v1591 = vrot.slane %v1589, 1
        %v1592 = vor.u32 %v1587, %v1591
        %v1594 = vshrl.u32 %v1301, 16
        %v1596 = vshll.u32 %v1301, 16
        %v1598 = vrot.slane %v1596, 1
        %v1599 = vor.u32 %v1594, %v1598
        %v1601 = vshrl.u32 %v1302, 16
        %v1603 = vshll.u32 %v1302, 16
        %v1605 = vrot.slane %v1603, 1
        %v1606 = vor.u32 %v1601, %v1605
        %v1608 = vshrl.u32 %v1303, 16
        %v1610 = vshll.u32 %v1303, 16
        %v1612 = vrot.slane %v1610, 1
        %v1613 = vor.u32 %v1608, %v1612
        %v1615 = vshrl.u32 %v1304, 16
        %v1617 = vshll.u32 %v1304, 16
        %v1619 = vrot.slane %v1617, 1
        %v1620 = vor.u32 %v1615, %v1619
        %v1622 = vshrl.u32 %v1305, 16
        %v1624 = vshll.u32 %v1305, 16
        %v1626 = vrot.slane %v1624, 1
        %v1627 = vor.u32 %v1622, %v1626
        %v1629 = vshrl.u32 %v1306, 16
        %v1631 = vshll.u32 %v1306, 16
        %v1633 = vrot.slane %v1631, 1
        %v1634 = vor.u32 %v1629, %v1633
        %v1636 = vshrl.u32 %v1307, 16
        %v1638 = vshll.u32 %v1307, 16
        %v1640 = vrot.slane %v1638, 1
        %v1641 = vor.u32 %v1636, %v1640
        %v1643 = vshrl.u32 %v1308, 16
        %v1645 = vshll.u32 %v1308, 16
        %v1647 = vrot.slane %v1645, 1
        %v1648 = vor.u32 %v1643, %v1647
        %v1650 = vshrl.u32 %v1309, 16
        %v1652 = vshll.u32 %v1309, 16
        %v1654 = vrot.slane %v1652, 1
        %v1655 = vor.u32 %v1650, %v1654
        %v1657 = vshrl.u32 %v1310, 16
        %v1659 = vshll.u32 %v1310, 16
        %v1661 = vrot.slane %v1659, 1
        %v1662 = vor.u32 %v1657, %v1661
        %v1664 = vshrl.u32 %v1311, 16
        %v1666 = vshll.u32 %v1311, 16
        %v1668 = vrot.slane %v1666, 1
        %v1669 = vor.u32 %v1664, %v1668
        %v1671 = vshrl.u32 %v1312, 16
        %v1673 = vshll.u32 %v1312, 16
        %v1675 = vrot.slane %v1673, 1
        %v1676 = vor.u32 %v1671, %v1675
        %v1678 = vshrl.u32 %v1313, 16
        %v1680 = vshll.u32 %v1313, 16
        %v1682 = vrot.slane %v1680, 1
        %v1683 = vor.u32 %v1678, %v1682
        %v1685 = vshrl.u32 %v1314, 16
        %v1687 = vshll.u32 %v1314, 16
        %v1689 = vrot.slane %v1687, 1
        %v1690 = vor.u32 %v1685, %v1689
        %v1692 = vshrl.u32 %v1315, 16
        %v1694 = vshll.u32 %v1315, 16
        %v1696 = vrot.slane %v1694, 1
        %v1697 = vor.u32 %v1692, %v1696
        %v1699 = vshrl.u32 %v1316, 16
        %v1701 = vshll.u32 %v1316, 16
        %v1703 = vrot.slane %v1701, 1
        %v1704 = vor.u32 %v1699, %v1703
        %v1706 = vshrl.u32 %v1317, 16
        %v1708 = vshll.u32 %v1317, 16
        %v1710 = vrot.slane %v1708, 1
        %v1711 = vor.u32 %v1706, %v1710
        %v1713 = vshrl.u32 %v1318, 16
        %v1715 = vshll.u32 %v1318, 16
        %v1717 = vrot.slane %v1715, 1
        %v1718 = vor.u32 %v1713, %v1717
        %v1720 = vshrl.u32 %v1319, 16
        %v1722 = vshll.u32 %v1319, 16
        %v1724 = vrot.slane %v1722, 1
        %v1725 = vor.u32 %v1720, %v1724
        %v1727 = vshrl.u32 %v1320, 16
        %v1729 = vshll.u32 %v1320, 16
        %v1731 = vrot.slane %v1729, 1
        %v1732 = vor.u32 %v1727, %v1731
        %v1734 = vshrl.u32 %v1321, 16
        %v1736 = vshll.u32 %v1321, 16
        %v1738 = vrot.slane %v1736, 1
        %v1739 = vor.u32 %v1734, %v1738
        %v1741 = vshrl.u32 %v1322, 16
        %v1743 = vshll.u32 %v1322, 16
        %v1745 = vrot.slane %v1743, 1
        %v1746 = vor.u32 %v1741, %v1745
        %v1748 = vshrl.u32 %v1323, 16
        %v1750 = vshll.u32 %v1323, 16
        %v1752 = vrot.slane %v1750, 1
        %v1753 = vor.u32 %v1748, %v1752
        %v1755 = vshrl.u32 %v1324, 16
        %v1757 = vshll.u32 %v1324, 16
        %v1759 = vrot.slane %v1757, 1
        %v1760 = vor.u32 %v1755, %v1759
        %v1762 = vshrl.u32 %v1325, 16
        %v1764 = vshll.u32 %v1325, 16
        %v1766 = vrot.slane %v1764, 1
        %v1767 = vor.u32 %v1762, %v1766
        %v1769 = vshrl.u32 %v1326, 16
        %v1771 = vshll.u32 %v1326, 16
        %v1773 = vrot.slane %v1771, 1
        %v1774 = vor.u32 %v1769, %v1773
        %v1839 = vadd.bf16 %v751, %v1333
        %v1840 = vadd.bf16 %v752, %v1340
        %v1841 = vadd.bf16 %v753, %v1347
        %v1842 = vadd.bf16 %v754, %v1354
        %v1843 = vadd.bf16 %v755, %v1361
        %v1844 = vadd.bf16 %v756, %v1368
        %v1845 = vadd.bf16 %v757, %v1375
        %v1846 = vadd.bf16 %v758, %v1382
        %v1847 = vadd.bf16 %v759, %v1389
        %v1848 = vadd.bf16 %v760, %v1396
        %v1849 = vadd.bf16 %v761, %v1403
        %v1850 = vadd.bf16 %v762, %v1410
        %v1851 = vadd.bf16 %v763, %v1417
        %v1852 = vadd.bf16 %v764, %v1424
        %v1853 = vadd.bf16 %v765, %v1431
        %v1854 = vadd.bf16 %v766, %v1438
        %v1855 = vadd.bf16 %v767, %v1445
        %v1856 = vadd.bf16 %v768, %v1452
        %v1857 = vadd.bf16 %v769, %v1459
        %v1858 = vadd.bf16 %v770, %v1466
        %v1859 = vadd.bf16 %v771, %v1473
        %v1860 = vadd.bf16 %v772, %v1480
        %v1861 = vadd.bf16 %v773, %v1487
        %v1862 = vadd.bf16 %v774, %v1494
        %v1863 = vadd.bf16 %v775, %v1501
        %v1864 = vadd.bf16 %v776, %v1508
        %v1865 = vadd.bf16 %v777, %v1515
        %v1866 = vadd.bf16 %v778, %v1522
        %v1867 = vadd.bf16 %v779, %v1529
        %v1868 = vadd.bf16 %v780, %v1536
        %v1869 = vadd.bf16 %v781, %v1543
        %v1870 = vadd.bf16 %v782, %v1550
        %v1871 = vadd.bf16 %v783, %v1557
        %v1872 = vadd.bf16 %v784, %v1564
        %v1873 = vadd.bf16 %v785, %v1571
        %v1874 = vadd.bf16 %v786, %v1578
        %v1875 = vadd.bf16 %v787, %v1585
        %v1876 = vadd.bf16 %v788, %v1592
        %v1877 = vadd.bf16 %v789, %v1599
        %v1878 = vadd.bf16 %v790, %v1606
        %v1879 = vadd.bf16 %v791, %v1613
        %v1880 = vadd.bf16 %v792, %v1620
        %v1881 = vadd.bf16 %v793, %v1627
        %v1882 = vadd.bf16 %v794, %v1634
        %v1883 = vadd.bf16 %v795, %v1641
        %v1884 = vadd.bf16 %v796, %v1648
        %v1885 = vadd.bf16 %v797, %v1655
        %v1886 = vadd.bf16 %v798, %v1662
        %v1887 = vadd.bf16 %v799, %v1669
        %v1888 = vadd.bf16 %v800, %v1676
        %v1889 = vadd.bf16 %v801, %v1683
        %v1890 = vadd.bf16 %v802, %v1690
        %v1891 = vadd.bf16 %v803, %v1697
        %v1892 = vadd.bf16 %v804, %v1704
        %v1893 = vadd.bf16 %v805, %v1711
        %v1894 = vadd.bf16 %v806, %v1718
        %v1895 = vadd.bf16 %v807, %v1725
        %v1896 = vadd.bf16 %v808, %v1732
        %v1897 = vadd.bf16 %v809, %v1739
        %v1898 = vadd.bf16 %v810, %v1746
        %v1899 = vadd.bf16 %v811, %v1753
        %v1900 = vadd.bf16 %v812, %v1760
        %v1901 = vadd.bf16 %v813, %v1767
        %v1902 = vadd.bf16 %v814, %v1774
        %v1903 = vadd.s32 %v210, 60
        %v1904 = vadd.s32 %v214, 60
        %v1905 = vadd.s32 %v221, 60
        %v1906 = vadd.s32 %v225, 60
        %v1907 = vadd.s32 %v232, 60
        %v1908 = vadd.s32 %v236, 60
        %v1909 = vadd.s32 %v243, 60
        %v1910 = vadd.s32 %v247, 60
        %v1911 = vadd.s32 %v254, 60
        %v1912 = vadd.s32 %v258, 60
        %v1913 = vadd.s32 %v265, 60
        %v1914 = vadd.s32 %v269, 60
        %v1915 = vadd.s32 %v276, 60
        %v1916 = vadd.s32 %v280, 60
        %v1917 = vadd.s32 %v287, 60
        %v1918 = vadd.s32 %v291, 60
        %v1919 = vadd.s32 %v298, 60
        %v1920 = vadd.s32 %v302, 60
        %v1921 = vadd.s32 %v309, 60
        %v1922 = vadd.s32 %v313, 60
        %v1923 = vadd.s32 %v320, 60
        %v1924 = vadd.s32 %v324, 60
        %v1925 = vadd.s32 %v331, 60
        %v1926 = vadd.s32 %v335, 60
        %v1927 = vadd.s32 %v342, 60
        %v1928 = vadd.s32 %v346, 60
        %v1929 = vadd.s32 %v353, 60
        %v1930 = vadd.s32 %v357, 60
        %v1931 = vadd.s32 %v364, 60
        %v1932 = vadd.s32 %v368, 60
        %v1933 = vadd.s32 %v375, 60
        %v1934 = vadd.s32 %v379, 60
        %v1935 = vadd.s32 %v386, 60
        %v1936 = vadd.s32 %v390, 60
        %v1937 = vadd.s32 %v397, 60
        %v1938 = vadd.s32 %v401, 60
        %v1939 = vadd.s32 %v408, 60
        %v1940 = vadd.s32 %v412, 60
        %v1941 = vadd.s32 %v419, 60
        %v1942 = vadd.s32 %v423, 60
        %v1943 = vadd.s32 %v430, 60
        %v1944 = vadd.s32 %v434, 60
        %v1945 = vadd.s32 %v441, 60
        %v1946 = vadd.s32 %v445, 60
        %v1947 = vadd.s32 %v452, 60
        %v1948 = vadd.s32 %v456, 60
        %v1949 = vadd.s32 %v463, 60
        %v1950 = vadd.s32 %v467, 60
        %v1951 = vadd.s32 %v474, 60
        %v1952 = vadd.s32 %v478, 60
        %v1953 = vadd.s32 %v485, 60
        %v1954 = vadd.s32 %v489, 60
        %v1955 = vadd.s32 %v496, 60
        %v1956 = vadd.s32 %v500, 60
        %v1957 = vadd.s32 %v507, 60
        %v1958 = vadd.s32 %v511, 60
        %v1959 = vadd.s32 %v518, 60
        %v1960 = vadd.s32 %v522, 60
        %v1961 = vadd.s32 %v529, 60
        %v1962 = vadd.s32 %v533, 60
        %v1963 = vadd.s32 %v540, 60
        %v1964 = vadd.s32 %v544, 60
        %v1965 = vadd.s32 %v551, 60
        %v1966 = vadd.s32 %v555, 60
        %vm1967 = vcmp.eq.s32.totalorder %v1903, %v557
        %vm1968 = vcmp.eq.s32.totalorder %v1903, %v558
        %vm1969 = vcmp.eq.s32.totalorder %v1904, %v557
        %vm1970 = vcmp.eq.s32.totalorder %v1904, %v558
        %vm1971 = vcmp.eq.s32.totalorder %v1905, %v557
        %vm1972 = vcmp.eq.s32.totalorder %v1905, %v558
        %vm1973 = vcmp.eq.s32.totalorder %v1906, %v557
        %vm1974 = vcmp.eq.s32.totalorder %v1906, %v558
        %vm1975 = vcmp.eq.s32.totalorder %v1907, %v557
        %vm1976 = vcmp.eq.s32.totalorder %v1907, %v558
        %vm1977 = vcmp.eq.s32.totalorder %v1908, %v557
        %vm1978 = vcmp.eq.s32.totalorder %v1908, %v558
        %vm1979 = vcmp.eq.s32.totalorder %v1909, %v557
        %vm1980 = vcmp.eq.s32.totalorder %v1909, %v558
        %vm1981 = vcmp.eq.s32.totalorder %v1910, %v557
        %vm1982 = vcmp.eq.s32.totalorder %v1910, %v558
        %vm1983 = vcmp.eq.s32.totalorder %v1911, %v557
        %vm1984 = vcmp.eq.s32.totalorder %v1911, %v558
        %vm1985 = vcmp.eq.s32.totalorder %v1912, %v557
        %vm1986 = vcmp.eq.s32.totalorder %v1912, %v558
        %vm1987 = vcmp.eq.s32.totalorder %v1913, %v557
        %vm1988 = vcmp.eq.s32.totalorder %v1913, %v558
        %vm1989 = vcmp.eq.s32.totalorder %v1914, %v557
        %vm1990 = vcmp.eq.s32.totalorder %v1914, %v558
        %vm1991 = vcmp.eq.s32.totalorder %v1915, %v557
        %vm1992 = vcmp.eq.s32.totalorder %v1915, %v558
        %vm1993 = vcmp.eq.s32.totalorder %v1916, %v557
        %vm1994 = vcmp.eq.s32.totalorder %v1916, %v558
        %vm1995 = vcmp.eq.s32.totalorder %v1917, %v557
        %vm1996 = vcmp.eq.s32.totalorder %v1917, %v558
        %vm1997 = vcmp.eq.s32.totalorder %v1918, %v557
        %vm1998 = vcmp.eq.s32.totalorder %v1918, %v558
        %vm1999 = vcmp.eq.s32.totalorder %v1919, %v557
        %vm2000 = vcmp.eq.s32.totalorder %v1919, %v558
        %vm2001 = vcmp.eq.s32.totalorder %v1920, %v557
        %vm2002 = vcmp.eq.s32.totalorder %v1920, %v558
        %vm2003 = vcmp.eq.s32.totalorder %v1921, %v557
        %vm2004 = vcmp.eq.s32.totalorder %v1921, %v558
        %vm2005 = vcmp.eq.s32.totalorder %v1922, %v557
        %vm2006 = vcmp.eq.s32.totalorder %v1922, %v558
        %vm2007 = vcmp.eq.s32.totalorder %v1923, %v557
        %vm2008 = vcmp.eq.s32.totalorder %v1923, %v558
        %vm2009 = vcmp.eq.s32.totalorder %v1924, %v557
        %vm2010 = vcmp.eq.s32.totalorder %v1924, %v558
        %vm2011 = vcmp.eq.s32.totalorder %v1925, %v557
        %vm2012 = vcmp.eq.s32.totalorder %v1925, %v558
        %vm2013 = vcmp.eq.s32.totalorder %v1926, %v557
        %vm2014 = vcmp.eq.s32.totalorder %v1926, %v558
        %vm2015 = vcmp.eq.s32.totalorder %v1927, %v557
        %vm2016 = vcmp.eq.s32.totalorder %v1927, %v558
        %vm2017 = vcmp.eq.s32.totalorder %v1928, %v557
        %vm2018 = vcmp.eq.s32.totalorder %v1928, %v558
        %vm2019 = vcmp.eq.s32.totalorder %v1929, %v557
        %vm2020 = vcmp.eq.s32.totalorder %v1929, %v558
        %vm2021 = vcmp.eq.s32.totalorder %v1930, %v557
        %vm2022 = vcmp.eq.s32.totalorder %v1930, %v558
        %vm2023 = vcmp.eq.s32.totalorder %v1931, %v557
        %vm2024 = vcmp.eq.s32.totalorder %v1931, %v558
        %vm2025 = vcmp.eq.s32.totalorder %v1932, %v557
        %vm2026 = vcmp.eq.s32.totalorder %v1932, %v558
        %vm2027 = vcmp.eq.s32.totalorder %v1933, %v557
        %vm2028 = vcmp.eq.s32.totalorder %v1933, %v558
        %vm2029 = vcmp.eq.s32.totalorder %v1934, %v557
        %vm2030 = vcmp.eq.s32.totalorder %v1934, %v558
        %vm2031 = vcmp.eq.s32.totalorder %v1935, %v557
        %vm2032 = vcmp.eq.s32.totalorder %v1935, %v558
        %vm2033 = vcmp.eq.s32.totalorder %v1936, %v557
        %vm2034 = vcmp.eq.s32.totalorder %v1936, %v558
        %vm2035 = vcmp.eq.s32.totalorder %v1937, %v557
        %vm2036 = vcmp.eq.s32.totalorder %v1937, %v558
        %vm2037 = vcmp.eq.s32.totalorder %v1938, %v557
        %vm2038 = vcmp.eq.s32.totalorder %v1938, %v558
        %vm2039 = vcmp.eq.s32.totalorder %v1939, %v557
        %vm2040 = vcmp.eq.s32.totalorder %v1939, %v558
        %vm2041 = vcmp.eq.s32.totalorder %v1940, %v557
        %vm2042 = vcmp.eq.s32.totalorder %v1940, %v558
        %vm2043 = vcmp.eq.s32.totalorder %v1941, %v557
        %vm2044 = vcmp.eq.s32.totalorder %v1941, %v558
        %vm2045 = vcmp.eq.s32.totalorder %v1942, %v557
        %vm2046 = vcmp.eq.s32.totalorder %v1942, %v558
        %vm2047 = vcmp.eq.s32.totalorder %v1943, %v557
        %vm2048 = vcmp.eq.s32.totalorder %v1943, %v558
        %vm2049 = vcmp.eq.s32.totalorder %v1944, %v557
        %vm2050 = vcmp.eq.s32.totalorder %v1944, %v558
        %vm2051 = vcmp.eq.s32.totalorder %v1945, %v557
        %vm2052 = vcmp.eq.s32.totalorder %v1945, %v558
        %vm2053 = vcmp.eq.s32.totalorder %v1946, %v557
        %vm2054 = vcmp.eq.s32.totalorder %v1946, %v558
        %vm2055 = vcmp.eq.s32.totalorder %v1947, %v557
        %vm2056 = vcmp.eq.s32.totalorder %v1947, %v558
        %vm2057 = vcmp.eq.s32.totalorder %v1948, %v557
        %vm2058 = vcmp.eq.s32.totalorder %v1948, %v558
        %vm2059 = vcmp.eq.s32.totalorder %v1949, %v557
        %vm2060 = vcmp.eq.s32.totalorder %v1949, %v558
        %vm2061 = vcmp.eq.s32.totalorder %v1950, %v557
        %vm2062 = vcmp.eq.s32.totalorder %v1950, %v558
        %vm2063 = vcmp.eq.s32.totalorder %v1951, %v557
        %vm2064 = vcmp.eq.s32.totalorder %v1951, %v558
        %vm2065 = vcmp.eq.s32.totalorder %v1952, %v557
        %vm2066 = vcmp.eq.s32.totalorder %v1952, %v558
        %vm2067 = vcmp.eq.s32.totalorder %v1953, %v557
        %vm2068 = vcmp.eq.s32.totalorder %v1953, %v558
        %vm2069 = vcmp.eq.s32.totalorder %v1954, %v557
        %vm2070 = vcmp.eq.s32.totalorder %v1954, %v558
        %vm2071 = vcmp.eq.s32.totalorder %v1955, %v557
        %vm2072 = vcmp.eq.s32.totalorder %v1955, %v558
        %vm2073 = vcmp.eq.s32.totalorder %v1956, %v557
        %vm2074 = vcmp.eq.s32.totalorder %v1956, %v558
        %vm2075 = vcmp.eq.s32.totalorder %v1957, %v557
        %vm2076 = vcmp.eq.s32.totalorder %v1957, %v558
        %vm2077 = vcmp.eq.s32.totalorder %v1958, %v557
        %vm2078 = vcmp.eq.s32.totalorder %v1958, %v558
        %vm2079 = vcmp.eq.s32.totalorder %v1959, %v557
        %vm2080 = vcmp.eq.s32.totalorder %v1959, %v558
        %vm2081 = vcmp.eq.s32.totalorder %v1960, %v557
        %vm2082 = vcmp.eq.s32.totalorder %v1960, %v558
        %vm2083 = vcmp.eq.s32.totalorder %v1961, %v557
        %vm2084 = vcmp.eq.s32.totalorder %v1961, %v558
        %vm2085 = vcmp.eq.s32.totalorder %v1962, %v557
        %vm2086 = vcmp.eq.s32.totalorder %v1962, %v558
        %vm2087 = vcmp.eq.s32.totalorder %v1963, %v557
        %vm2088 = vcmp.eq.s32.totalorder %v1963, %v558
        %vm2089 = vcmp.eq.s32.totalorder %v1964, %v557
        %vm2090 = vcmp.eq.s32.totalorder %v1964, %v558
        %vm2091 = vcmp.eq.s32.totalorder %v1965, %v557
        %vm2092 = vcmp.eq.s32.totalorder %v1965, %v558
        %vm2093 = vcmp.eq.s32.totalorder %v1966, %v557
        %vm2094 = vcmp.eq.s32.totalorder %v1966, %v558
        %v2095 = vsel %vm1967, 1, 0
        %v2096 = vsel %vm1968, 1, 0
        %v2097 = vsel %vm1969, 1, 0
        %v2098 = vsel %vm1970, 1, 0
        %v2099 = vsel %vm1971, 1, 0
        %v2100 = vsel %vm1972, 1, 0
        %v2101 = vsel %vm1973, 1, 0
        %v2102 = vsel %vm1974, 1, 0
        %v2103 = vsel %vm1975, 1, 0
        %v2104 = vsel %vm1976, 1, 0
        %v2105 = vsel %vm1977, 1, 0
        %v2106 = vsel %vm1978, 1, 0
        %v2107 = vsel %vm1979, 1, 0
        %v2108 = vsel %vm1980, 1, 0
        %v2109 = vsel %vm1981, 1, 0
        %v2110 = vsel %vm1982, 1, 0
        %v2111 = vsel %vm1983, 1, 0
        %v2112 = vsel %vm1984, 1, 0
        %v2113 = vsel %vm1985, 1, 0
        %v2114 = vsel %vm1986, 1, 0
        %v2115 = vsel %vm1987, 1, 0
        %v2116 = vsel %vm1988, 1, 0
        %v2117 = vsel %vm1989, 1, 0
        %v2118 = vsel %vm1990, 1, 0
        %v2119 = vsel %vm1991, 1, 0
        %v2120 = vsel %vm1992, 1, 0
        %v2121 = vsel %vm1993, 1, 0
        %v2122 = vsel %vm1994, 1, 0
        %v2123 = vsel %vm1995, 1, 0
        %v2124 = vsel %vm1996, 1, 0
        %v2125 = vsel %vm1997, 1, 0
        %v2126 = vsel %vm1998, 1, 0
        %v2127 = vsel %vm1999, 1, 0
        %v2128 = vsel %vm2000, 1, 0
        %v2129 = vsel %vm2001, 1, 0
        %v2130 = vsel %vm2002, 1, 0
        %v2131 = vsel %vm2003, 1, 0
        %v2132 = vsel %vm2004, 1, 0
        %v2133 = vsel %vm2005, 1, 0
        %v2134 = vsel %vm2006, 1, 0
        %v2135 = vsel %vm2007, 1, 0
        %v2136 = vsel %vm2008, 1, 0
        %v2137 = vsel %vm2009, 1, 0
        %v2138 = vsel %vm2010, 1, 0
        %v2139 = vsel %vm2011, 1, 0
        %v2140 = vsel %vm2012, 1, 0
        %v2141 = vsel %vm2013, 1, 0
        %v2142 = vsel %vm2014, 1, 0
        %v2143 = vsel %vm2015, 1, 0
        %v2144 = vsel %vm2016, 1, 0
        %v2145 = vsel %vm2017, 1, 0
        %v2146 = vsel %vm2018, 1, 0
        %v2147 = vsel %vm2019, 1, 0
        %v2148 = vsel %vm2020, 1, 0
        %v2149 = vsel %vm2021, 1, 0
        %v2150 = vsel %vm2022, 1, 0
        %v2151 = vsel %vm2023, 1, 0
        %v2152 = vsel %vm2024, 1, 0
        %v2153 = vsel %vm2025, 1, 0
        %v2154 = vsel %vm2026, 1, 0
        %v2155 = vsel %vm2027, 1, 0
        %v2156 = vsel %vm2028, 1, 0
        %v2157 = vsel %vm2029, 1, 0
        %v2158 = vsel %vm2030, 1, 0
        %v2159 = vsel %vm2031, 1, 0
        %v2160 = vsel %vm2032, 1, 0
        %v2161 = vsel %vm2033, 1, 0
        %v2162 = vsel %vm2034, 1, 0
        %v2163 = vsel %vm2035, 1, 0
        %v2164 = vsel %vm2036, 1, 0
        %v2165 = vsel %vm2037, 1, 0
        %v2166 = vsel %vm2038, 1, 0
        %v2167 = vsel %vm2039, 1, 0
        %v2168 = vsel %vm2040, 1, 0
        %v2169 = vsel %vm2041, 1, 0
        %v2170 = vsel %vm2042, 1, 0
        %v2171 = vsel %vm2043, 1, 0
        %v2172 = vsel %vm2044, 1, 0
        %v2173 = vsel %vm2045, 1, 0
        %v2174 = vsel %vm2046, 1, 0
        %v2175 = vsel %vm2047, 1, 0
        %v2176 = vsel %vm2048, 1, 0
        %v2177 = vsel %vm2049, 1, 0
        %v2178 = vsel %vm2050, 1, 0
        %v2179 = vsel %vm2051, 1, 0
        %v2180 = vsel %vm2052, 1, 0
        %v2181 = vsel %vm2053, 1, 0
        %v2182 = vsel %vm2054, 1, 0
        %v2183 = vsel %vm2055, 1, 0
        %v2184 = vsel %vm2056, 1, 0
        %v2185 = vsel %vm2057, 1, 0
        %v2186 = vsel %vm2058, 1, 0
        %v2187 = vsel %vm2059, 1, 0
        %v2188 = vsel %vm2060, 1, 0
        %v2189 = vsel %vm2061, 1, 0
        %v2190 = vsel %vm2062, 1, 0
        %v2191 = vsel %vm2063, 1, 0
        %v2192 = vsel %vm2064, 1, 0
        %v2193 = vsel %vm2065, 1, 0
        %v2194 = vsel %vm2066, 1, 0
        %v2195 = vsel %vm2067, 1, 0
        %v2196 = vsel %vm2068, 1, 0
        %v2197 = vsel %vm2069, 1, 0
        %v2198 = vsel %vm2070, 1, 0
        %v2199 = vsel %vm2071, 1, 0
        %v2200 = vsel %vm2072, 1, 0
        %v2201 = vsel %vm2073, 1, 0
        %v2202 = vsel %vm2074, 1, 0
        %v2203 = vsel %vm2075, 1, 0
        %v2204 = vsel %vm2076, 1, 0
        %v2205 = vsel %vm2077, 1, 0
        %v2206 = vsel %vm2078, 1, 0
        %v2207 = vsel %vm2079, 1, 0
        %v2208 = vsel %vm2080, 1, 0
        %v2209 = vsel %vm2081, 1, 0
        %v2210 = vsel %vm2082, 1, 0
        %v2211 = vsel %vm2083, 1, 0
        %v2212 = vsel %vm2084, 1, 0
        %v2213 = vsel %vm2085, 1, 0
        %v2214 = vsel %vm2086, 1, 0
        %v2215 = vsel %vm2087, 1, 0
        %v2216 = vsel %vm2088, 1, 0
        %v2217 = vsel %vm2089, 1, 0
        %v2218 = vsel %vm2090, 1, 0
        %v2219 = vsel %vm2091, 1, 0
        %v2220 = vsel %vm2092, 1, 0
        %v2221 = vsel %vm2093, 1, 0
        %v2222 = vsel %vm2094, 1, 0
        %v2223 = vcvt.s32.f32 %v2095
        %v2224 = vcvt.s32.f32 %v2096
        %v2225 = vcvt.s32.f32 %v2097
        %v2226 = vcvt.s32.f32 %v2098
        %v2227 = vcvt.s32.f32 %v2099
        %v2228 = vcvt.s32.f32 %v2100
        %v2229 = vcvt.s32.f32 %v2101
        %v2230 = vcvt.s32.f32 %v2102
        %v2231 = vcvt.s32.f32 %v2103
        %v2232 = vcvt.s32.f32 %v2104
        %v2233 = vcvt.s32.f32 %v2105
        %v2234 = vcvt.s32.f32 %v2106
        %v2235 = vcvt.s32.f32 %v2107
        %v2236 = vcvt.s32.f32 %v2108
        %v2237 = vcvt.s32.f32 %v2109
        %v2238 = vcvt.s32.f32 %v2110
        %v2239 = vcvt.s32.f32 %v2111
        %v2240 = vcvt.s32.f32 %v2112
        %v2241 = vcvt.s32.f32 %v2113
        %v2242 = vcvt.s32.f32 %v2114
        %v2243 = vcvt.s32.f32 %v2115
        %v2244 = vcvt.s32.f32 %v2116
        %v2245 = vcvt.s32.f32 %v2117
        %v2246 = vcvt.s32.f32 %v2118
        %v2247 = vcvt.s32.f32 %v2119
        %v2248 = vcvt.s32.f32 %v2120
        %v2249 = vcvt.s32.f32 %v2121
        %v2250 = vcvt.s32.f32 %v2122
        %v2251 = vcvt.s32.f32 %v2123
        %v2252 = vcvt.s32.f32 %v2124
        %v2253 = vcvt.s32.f32 %v2125
        %v2254 = vcvt.s32.f32 %v2126
        %v2255 = vcvt.s32.f32 %v2127
        %v2256 = vcvt.s32.f32 %v2128
        %v2257 = vcvt.s32.f32 %v2129
        %v2258 = vcvt.s32.f32 %v2130
        %v2259 = vcvt.s32.f32 %v2131
        %v2260 = vcvt.s32.f32 %v2132
        %v2261 = vcvt.s32.f32 %v2133
        %v2262 = vcvt.s32.f32 %v2134
        %v2263 = vcvt.s32.f32 %v2135
        %v2264 = vcvt.s32.f32 %v2136
        %v2265 = vcvt.s32.f32 %v2137
        %v2266 = vcvt.s32.f32 %v2138
        %v2267 = vcvt.s32.f32 %v2139
        %v2268 = vcvt.s32.f32 %v2140
        %v2269 = vcvt.s32.f32 %v2141
        %v2270 = vcvt.s32.f32 %v2142
        %v2271 = vcvt.s32.f32 %v2143
        %v2272 = vcvt.s32.f32 %v2144
        %v2273 = vcvt.s32.f32 %v2145
        %v2274 = vcvt.s32.f32 %v2146
        %v2275 = vcvt.s32.f32 %v2147
        %v2276 = vcvt.s32.f32 %v2148
        %v2277 = vcvt.s32.f32 %v2149
        %v2278 = vcvt.s32.f32 %v2150
        %v2279 = vcvt.s32.f32 %v2151
        %v2280 = vcvt.s32.f32 %v2152
        %v2281 = vcvt.s32.f32 %v2153
        %v2282 = vcvt.s32.f32 %v2154
        %v2283 = vcvt.s32.f32 %v2155
        %v2284 = vcvt.s32.f32 %v2156
        %v2285 = vcvt.s32.f32 %v2157
        %v2286 = vcvt.s32.f32 %v2158
        %v2287 = vcvt.s32.f32 %v2159
        %v2288 = vcvt.s32.f32 %v2160
        %v2289 = vcvt.s32.f32 %v2161
        %v2290 = vcvt.s32.f32 %v2162
        %v2291 = vcvt.s32.f32 %v2163
        %v2292 = vcvt.s32.f32 %v2164
        %v2293 = vcvt.s32.f32 %v2165
        %v2294 = vcvt.s32.f32 %v2166
        %v2295 = vcvt.s32.f32 %v2167
        %v2296 = vcvt.s32.f32 %v2168
        %v2297 = vcvt.s32.f32 %v2169
        %v2298 = vcvt.s32.f32 %v2170
        %v2299 = vcvt.s32.f32 %v2171
        %v2300 = vcvt.s32.f32 %v2172
        %v2301 = vcvt.s32.f32 %v2173
        %v2302 = vcvt.s32.f32 %v2174
        %v2303 = vcvt.s32.f32 %v2175
        %v2304 = vcvt.s32.f32 %v2176
        %v2305 = vcvt.s32.f32 %v2177
        %v2306 = vcvt.s32.f32 %v2178
        %v2307 = vcvt.s32.f32 %v2179
        %v2308 = vcvt.s32.f32 %v2180
        %v2309 = vcvt.s32.f32 %v2181
        %v2310 = vcvt.s32.f32 %v2182
        %v2311 = vcvt.s32.f32 %v2183
        %v2312 = vcvt.s32.f32 %v2184
        %v2313 = vcvt.s32.f32 %v2185
        %v2314 = vcvt.s32.f32 %v2186
        %v2315 = vcvt.s32.f32 %v2187
        %v2316 = vcvt.s32.f32 %v2188
        %v2317 = vcvt.s32.f32 %v2189
        %v2318 = vcvt.s32.f32 %v2190
        %v2319 = vcvt.s32.f32 %v2191
        %v2320 = vcvt.s32.f32 %v2192
        %v2321 = vcvt.s32.f32 %v2193
        %v2322 = vcvt.s32.f32 %v2194
        %v2323 = vcvt.s32.f32 %v2195
        %v2324 = vcvt.s32.f32 %v2196
        %v2325 = vcvt.s32.f32 %v2197
        %v2326 = vcvt.s32.f32 %v2198
        %v2327 = vcvt.s32.f32 %v2199
        %v2328 = vcvt.s32.f32 %v2200
        %v2329 = vcvt.s32.f32 %v2201
        %v2330 = vcvt.s32.f32 %v2202
        %v2331 = vcvt.s32.f32 %v2203
        %v2332 = vcvt.s32.f32 %v2204
        %v2333 = vcvt.s32.f32 %v2205
        %v2334 = vcvt.s32.f32 %v2206
        %v2335 = vcvt.s32.f32 %v2207
        %v2336 = vcvt.s32.f32 %v2208
        %v2337 = vcvt.s32.f32 %v2209
        %v2338 = vcvt.s32.f32 %v2210
        %v2339 = vcvt.s32.f32 %v2211
        %v2340 = vcvt.s32.f32 %v2212
        %v2341 = vcvt.s32.f32 %v2213
        %v2342 = vcvt.s32.f32 %v2214
        %v2343 = vcvt.s32.f32 %v2215
        %v2344 = vcvt.s32.f32 %v2216
        %v2345 = vcvt.s32.f32 %v2217
        %v2346 = vcvt.s32.f32 %v2218
        %v2347 = vcvt.s32.f32 %v2219
        %v2348 = vcvt.s32.f32 %v2220
        %v2349 = vcvt.s32.f32 %v2221
        %v2350 = vcvt.s32.f32 %v2222
        %v2351 = vpack.c.bf16 %v2225, %v2223
        %v2352 = vpack.c.bf16 %v2226, %v2224
        %v2353 = vpack.c.bf16 %v2229, %v2227
        %v2354 = vpack.c.bf16 %v2230, %v2228
        %v2355 = vpack.c.bf16 %v2233, %v2231
        %v2356 = vpack.c.bf16 %v2234, %v2232
        %v2357 = vpack.c.bf16 %v2237, %v2235
        %v2358 = vpack.c.bf16 %v2238, %v2236
        %v2359 = vpack.c.bf16 %v2241, %v2239
        %v2360 = vpack.c.bf16 %v2242, %v2240
        %v2361 = vpack.c.bf16 %v2245, %v2243
        %v2362 = vpack.c.bf16 %v2246, %v2244
        %v2363 = vpack.c.bf16 %v2249, %v2247
        %v2364 = vpack.c.bf16 %v2250, %v2248
        %v2365 = vpack.c.bf16 %v2253, %v2251
        %v2366 = vpack.c.bf16 %v2254, %v2252
        %v2367 = vpack.c.bf16 %v2257, %v2255
        %v2368 = vpack.c.bf16 %v2258, %v2256
        %v2369 = vpack.c.bf16 %v2261, %v2259
        %v2370 = vpack.c.bf16 %v2262, %v2260
        %v2371 = vpack.c.bf16 %v2265, %v2263
        %v2372 = vpack.c.bf16 %v2266, %v2264
        %v2373 = vpack.c.bf16 %v2269, %v2267
        %v2374 = vpack.c.bf16 %v2270, %v2268
        %v2375 = vpack.c.bf16 %v2273, %v2271
        %v2376 = vpack.c.bf16 %v2274, %v2272
        %v2377 = vpack.c.bf16 %v2277, %v2275
        %v2378 = vpack.c.bf16 %v2278, %v2276
        %v2379 = vpack.c.bf16 %v2281, %v2279
        %v2380 = vpack.c.bf16 %v2282, %v2280
        %v2381 = vpack.c.bf16 %v2285, %v2283
        %v2382 = vpack.c.bf16 %v2286, %v2284
        %v2383 = vpack.c.bf16 %v2289, %v2287
        %v2384 = vpack.c.bf16 %v2290, %v2288
        %v2385 = vpack.c.bf16 %v2293, %v2291
        %v2386 = vpack.c.bf16 %v2294, %v2292
        %v2387 = vpack.c.bf16 %v2297, %v2295
        %v2388 = vpack.c.bf16 %v2298, %v2296
        %v2389 = vpack.c.bf16 %v2301, %v2299
        %v2390 = vpack.c.bf16 %v2302, %v2300
        %v2391 = vpack.c.bf16 %v2305, %v2303
        %v2392 = vpack.c.bf16 %v2306, %v2304
        %v2393 = vpack.c.bf16 %v2309, %v2307
        %v2394 = vpack.c.bf16 %v2310, %v2308
        %v2395 = vpack.c.bf16 %v2313, %v2311
        %v2396 = vpack.c.bf16 %v2314, %v2312
        %v2397 = vpack.c.bf16 %v2317, %v2315
        %v2398 = vpack.c.bf16 %v2318, %v2316
        %v2399 = vpack.c.bf16 %v2321, %v2319
        %v2400 = vpack.c.bf16 %v2322, %v2320
        %v2401 = vpack.c.bf16 %v2325, %v2323
        %v2402 = vpack.c.bf16 %v2326, %v2324
        %v2403 = vpack.c.bf16 %v2329, %v2327
        %v2404 = vpack.c.bf16 %v2330, %v2328
        %v2405 = vpack.c.bf16 %v2333, %v2331
        %v2406 = vpack.c.bf16 %v2334, %v2332
        %v2407 = vpack.c.bf16 %v2337, %v2335
        %v2408 = vpack.c.bf16 %v2338, %v2336
        %v2409 = vpack.c.bf16 %v2341, %v2339
        %v2410 = vpack.c.bf16 %v2342, %v2340
        %v2411 = vpack.c.bf16 %v2345, %v2343
        %v2412 = vpack.c.bf16 %v2346, %v2344
        %v2413 = vpack.c.bf16 %v2349, %v2347
        %v2414 = vpack.c.bf16 %v2350, %v2348
        %v2479 = vrot.slane %v2351, 1
        %v2480 = vrot.slane %v2352, 1
        %v2481 = vrot.slane %v2353, 1
        %v2482 = vrot.slane %v2354, 1
        %v2483 = vrot.slane %v2355, 1
        %v2484 = vrot.slane %v2356, 1
        %v2485 = vrot.slane %v2357, 1
        %v2486 = vrot.slane %v2358, 1
        %v2487 = vrot.slane %v2359, 1
        %v2488 = vrot.slane %v2360, 1
        %v2489 = vrot.slane %v2361, 1
        %v2490 = vrot.slane %v2362, 1
        %v2491 = vrot.slane %v2363, 1
        %v2492 = vrot.slane %v2364, 1
        %v2493 = vrot.slane %v2365, 1
        %v2494 = vrot.slane %v2366, 1
        %v2495 = vrot.slane %v2367, 1
        %v2496 = vrot.slane %v2368, 1
        %v2497 = vrot.slane %v2369, 1
        %v2498 = vrot.slane %v2370, 1
        %v2499 = vrot.slane %v2371, 1
        %v2500 = vrot.slane %v2372, 1
        %v2501 = vrot.slane %v2373, 1
        %v2502 = vrot.slane %v2374, 1
        %v2503 = vrot.slane %v2375, 1
        %v2504 = vrot.slane %v2376, 1
        %v2505 = vrot.slane %v2377, 1
        %v2506 = vrot.slane %v2378, 1
        %v2507 = vrot.slane %v2379, 1
        %v2508 = vrot.slane %v2380, 1
        %v2509 = vrot.slane %v2381, 1
        %v2510 = vrot.slane %v2382, 1
        %v2511 = vrot.slane %v2383, 1
        %v2512 = vrot.slane %v2384, 1
        %v2513 = vrot.slane %v2385, 1
        %v2514 = vrot.slane %v2386, 1
        %v2515 = vrot.slane %v2387, 1
        %v2516 = vrot.slane %v2388, 1
        %v2517 = vrot.slane %v2389, 1
        %v2518 = vrot.slane %v2390, 1
        %v2519 = vrot.slane %v2391, 1
        %v2520 = vrot.slane %v2392, 1
        %v2521 = vrot.slane %v2393, 1
        %v2522 = vrot.slane %v2394, 1
        %v2523 = vrot.slane %v2395, 1
        %v2524 = vrot.slane %v2396, 1
        %v2525 = vrot.slane %v2397, 1
        %v2526 = vrot.slane %v2398, 1
        %v2527 = vrot.slane %v2399, 1
        %v2528 = vrot.slane %v2400, 1
        %v2529 = vrot.slane %v2401, 1
        %v2530 = vrot.slane %v2402, 1
        %v2531 = vrot.slane %v2403, 1
        %v2532 = vrot.slane %v2404, 1
        %v2533 = vrot.slane %v2405, 1
        %v2534 = vrot.slane %v2406, 1
        %v2535 = vrot.slane %v2407, 1
        %v2536 = vrot.slane %v2408, 1
        %v2537 = vrot.slane %v2409, 1
        %v2538 = vrot.slane %v2410, 1
        %v2539 = vrot.slane %v2411, 1
        %v2540 = vrot.slane %v2412, 1
        %v2541 = vrot.slane %v2413, 1
        %v2542 = vrot.slane %v2414, 1
        %v2607 = vadd.bf16 %v1839, %v2479
        %v2608 = vadd.bf16 %v1840, %v2480
        %v2609 = vadd.bf16 %v1841, %v2481
        %v2610 = vadd.bf16 %v1842, %v2482
        %v2611 = vadd.bf16 %v1843, %v2483
        %v2612 = vadd.bf16 %v1844, %v2484
        %v2613 = vadd.bf16 %v1845, %v2485
        %v2614 = vadd.bf16 %v1846, %v2486
        %v2615 = vadd.bf16 %v1847, %v2487
        %v2616 = vadd.bf16 %v1848, %v2488
        %v2617 = vadd.bf16 %v1849, %v2489
        %v2618 = vadd.bf16 %v1850, %v2490
        %v2619 = vadd.bf16 %v1851, %v2491
        %v2620 = vadd.bf16 %v1852, %v2492
        %v2621 = vadd.bf16 %v1853, %v2493
        %v2622 = vadd.bf16 %v1854, %v2494
        %v2623 = vadd.bf16 %v1855, %v2495
        %v2624 = vadd.bf16 %v1856, %v2496
        %v2625 = vadd.bf16 %v1857, %v2497
        %v2626 = vadd.bf16 %v1858, %v2498
        %v2627 = vadd.bf16 %v1859, %v2499
        %v2628 = vadd.bf16 %v1860, %v2500
        %v2629 = vadd.bf16 %v1861, %v2501
        %v2630 = vadd.bf16 %v1862, %v2502
        %v2631 = vadd.bf16 %v1863, %v2503
        %v2632 = vadd.bf16 %v1864, %v2504
        %v2633 = vadd.bf16 %v1865, %v2505
        %v2634 = vadd.bf16 %v1866, %v2506
        %v2635 = vadd.bf16 %v1867, %v2507
        %v2636 = vadd.bf16 %v1868, %v2508
        %v2637 = vadd.bf16 %v1869, %v2509
        %v2638 = vadd.bf16 %v1870, %v2510
        %v2639 = vadd.bf16 %v1871, %v2511
        %v2640 = vadd.bf16 %v1872, %v2512
        %v2641 = vadd.bf16 %v1873, %v2513
        %v2642 = vadd.bf16 %v1874, %v2514
        %v2643 = vadd.bf16 %v1875, %v2515
        %v2644 = vadd.bf16 %v1876, %v2516
        %v2645 = vadd.bf16 %v1877, %v2517
        %v2646 = vadd.bf16 %v1878, %v2518
        %v2647 = vadd.bf16 %v1879, %v2519
        %v2648 = vadd.bf16 %v1880, %v2520
        %v2649 = vadd.bf16 %v1881, %v2521
        %v2650 = vadd.bf16 %v1882, %v2522
        %v2651 = vadd.bf16 %v1883, %v2523
        %v2652 = vadd.bf16 %v1884, %v2524
        %v2653 = vadd.bf16 %v1885, %v2525
        %v2654 = vadd.bf16 %v1886, %v2526
        %v2655 = vadd.bf16 %v1887, %v2527
        %v2656 = vadd.bf16 %v1888, %v2528
        %v2657 = vadd.bf16 %v1889, %v2529
        %v2658 = vadd.bf16 %v1890, %v2530
        %v2659 = vadd.bf16 %v1891, %v2531
        %v2660 = vadd.bf16 %v1892, %v2532
        %v2661 = vadd.bf16 %v1893, %v2533
        %v2662 = vadd.bf16 %v1894, %v2534
        %v2663 = vadd.bf16 %v1895, %v2535
        %v2664 = vadd.bf16 %v1896, %v2536
        %v2665 = vadd.bf16 %v1897, %v2537
        %v2666 = vadd.bf16 %v1898, %v2538
        %v2667 = vadd.bf16 %v1899, %v2539
        %v2668 = vadd.bf16 %v1900, %v2540
        %v2669 = vadd.bf16 %v1901, %v2541
        %v2670 = vadd.bf16 %v1902, %v2542
        %v2671 = vadd.s32 %v210, 90
        %v2672 = vadd.s32 %v214, 90
        %v2673 = vadd.s32 %v221, 90
        %v2674 = vadd.s32 %v225, 90
        %v2675 = vadd.s32 %v232, 90
        %v2676 = vadd.s32 %v236, 90
        %v2677 = vadd.s32 %v243, 90
        %v2678 = vadd.s32 %v247, 90
        %v2679 = vadd.s32 %v254, 90
        %v2680 = vadd.s32 %v258, 90
        %v2681 = vadd.s32 %v265, 90
        %v2682 = vadd.s32 %v269, 90
        %v2683 = vadd.s32 %v276, 90
        %v2684 = vadd.s32 %v280, 90
        %v2685 = vadd.s32 %v287, 90
        %v2686 = vadd.s32 %v291, 90
        %v2687 = vadd.s32 %v298, 90
        %v2688 = vadd.s32 %v302, 90
        %v2689 = vadd.s32 %v309, 90
        %v2690 = vadd.s32 %v313, 90
        %v2691 = vadd.s32 %v320, 90
        %v2692 = vadd.s32 %v324, 90
        %v2693 = vadd.s32 %v331, 90
        %v2694 = vadd.s32 %v335, 90
        %v2695 = vadd.s32 %v342, 90
        %v2696 = vadd.s32 %v346, 90
        %v2697 = vadd.s32 %v353, 90
        %v2698 = vadd.s32 %v357, 90
        %v2699 = vadd.s32 %v364, 90
        %v2700 = vadd.s32 %v368, 90
        %v2701 = vadd.s32 %v375, 90
        %v2702 = vadd.s32 %v379, 90
        %v2703 = vadd.s32 %v386, 90
        %v2704 = vadd.s32 %v390, 90
        %v2705 = vadd.s32 %v397, 90
        %v2706 = vadd.s32 %v401, 90
        %v2707 = vadd.s32 %v408, 90
        %v2708 = vadd.s32 %v412, 90
        %v2709 = vadd.s32 %v419, 90
        %v2710 = vadd.s32 %v423, 90
        %v2711 = vadd.s32 %v430, 90
        %v2712 = vadd.s32 %v434, 90
        %v2713 = vadd.s32 %v441, 90
        %v2714 = vadd.s32 %v445, 90
        %v2715 = vadd.s32 %v452, 90
        %v2716 = vadd.s32 %v456, 90
        %v2717 = vadd.s32 %v463, 90
        %v2718 = vadd.s32 %v467, 90
        %v2719 = vadd.s32 %v474, 90
        %v2720 = vadd.s32 %v478, 90
        %v2721 = vadd.s32 %v485, 90
        %v2722 = vadd.s32 %v489, 90
        %v2723 = vadd.s32 %v496, 90
        %v2724 = vadd.s32 %v500, 90
        %v2725 = vadd.s32 %v507, 90
        %v2726 = vadd.s32 %v511, 90
        %v2727 = vadd.s32 %v518, 90
        %v2728 = vadd.s32 %v522, 90
        %v2729 = vadd.s32 %v529, 90
        %v2730 = vadd.s32 %v533, 90
        %v2731 = vadd.s32 %v540, 90
        %v2732 = vadd.s32 %v544, 90
        %v2733 = vadd.s32 %v551, 90
        %v2734 = vadd.s32 %v555, 90
        %vm2735 = vcmp.eq.s32.totalorder %v2671, %v557
        %vm2736 = vcmp.eq.s32.totalorder %v2671, %v558
        %vm2737 = vcmp.eq.s32.totalorder %v2672, %v557
        %vm2738 = vcmp.eq.s32.totalorder %v2672, %v558
        %vm2739 = vcmp.eq.s32.totalorder %v2673, %v557
        %vm2740 = vcmp.eq.s32.totalorder %v2673, %v558
        %vm2741 = vcmp.eq.s32.totalorder %v2674, %v557
        %vm2742 = vcmp.eq.s32.totalorder %v2674, %v558
        %vm2743 = vcmp.eq.s32.totalorder %v2675, %v557
        %vm2744 = vcmp.eq.s32.totalorder %v2675, %v558
        %vm2745 = vcmp.eq.s32.totalorder %v2676, %v557
        %vm2746 = vcmp.eq.s32.totalorder %v2676, %v558
        %vm2747 = vcmp.eq.s32.totalorder %v2677, %v557
        %vm2748 = vcmp.eq.s32.totalorder %v2677, %v558
        %vm2749 = vcmp.eq.s32.totalorder %v2678, %v557
        %vm2750 = vcmp.eq.s32.totalorder %v2678, %v558
        %vm2751 = vcmp.eq.s32.totalorder %v2679, %v557
        %vm2752 = vcmp.eq.s32.totalorder %v2679, %v558
        %vm2753 = vcmp.eq.s32.totalorder %v2680, %v557
        %vm2754 = vcmp.eq.s32.totalorder %v2680, %v558
        %vm2755 = vcmp.eq.s32.totalorder %v2681, %v557
        %vm2756 = vcmp.eq.s32.totalorder %v2681, %v558
        %vm2757 = vcmp.eq.s32.totalorder %v2682, %v557
        %vm2758 = vcmp.eq.s32.totalorder %v2682, %v558
        %vm2759 = vcmp.eq.s32.totalorder %v2683, %v557
        %vm2760 = vcmp.eq.s32.totalorder %v2683, %v558
        %vm2761 = vcmp.eq.s32.totalorder %v2684, %v557
        %vm2762 = vcmp.eq.s32.totalorder %v2684, %v558
        %vm2763 = vcmp.eq.s32.totalorder %v2685, %v557
        %vm2764 = vcmp.eq.s32.totalorder %v2685, %v558
        %vm2765 = vcmp.eq.s32.totalorder %v2686, %v557
        %vm2766 = vcmp.eq.s32.totalorder %v2686, %v558
        %vm2767 = vcmp.eq.s32.totalorder %v2687, %v557
        %vm2768 = vcmp.eq.s32.totalorder %v2687, %v558
        %vm2769 = vcmp.eq.s32.totalorder %v2688, %v557
        %vm2770 = vcmp.eq.s32.totalorder %v2688, %v558
        %vm2771 = vcmp.eq.s32.totalorder %v2689, %v557
        %vm2772 = vcmp.eq.s32.totalorder %v2689, %v558
        %vm2773 = vcmp.eq.s32.totalorder %v2690, %v557
        %vm2774 = vcmp.eq.s32.totalorder %v2690, %v558
        %vm2775 = vcmp.eq.s32.totalorder %v2691, %v557
        %vm2776 = vcmp.eq.s32.totalorder %v2691, %v558
        %vm2777 = vcmp.eq.s32.totalorder %v2692, %v557
        %vm2778 = vcmp.eq.s32.totalorder %v2692, %v558
        %vm2779 = vcmp.eq.s32.totalorder %v2693, %v557
        %vm2780 = vcmp.eq.s32.totalorder %v2693, %v558
        %vm2781 = vcmp.eq.s32.totalorder %v2694, %v557
        %vm2782 = vcmp.eq.s32.totalorder %v2694, %v558
        %vm2783 = vcmp.eq.s32.totalorder %v2695, %v557
        %vm2784 = vcmp.eq.s32.totalorder %v2695, %v558
        %vm2785 = vcmp.eq.s32.totalorder %v2696, %v557
        %vm2786 = vcmp.eq.s32.totalorder %v2696, %v558
        %vm2787 = vcmp.eq.s32.totalorder %v2697, %v557
        %vm2788 = vcmp.eq.s32.totalorder %v2697, %v558
        %vm2789 = vcmp.eq.s32.totalorder %v2698, %v557
        %vm2790 = vcmp.eq.s32.totalorder %v2698, %v558
        %vm2791 = vcmp.eq.s32.totalorder %v2699, %v557
        %vm2792 = vcmp.eq.s32.totalorder %v2699, %v558
        %vm2793 = vcmp.eq.s32.totalorder %v2700, %v557
        %vm2794 = vcmp.eq.s32.totalorder %v2700, %v558
        %vm2795 = vcmp.eq.s32.totalorder %v2701, %v557
        %vm2796 = vcmp.eq.s32.totalorder %v2701, %v558
        %vm2797 = vcmp.eq.s32.totalorder %v2702, %v557
        %vm2798 = vcmp.eq.s32.totalorder %v2702, %v558
        %vm2799 = vcmp.eq.s32.totalorder %v2703, %v557
        %vm2800 = vcmp.eq.s32.totalorder %v2703, %v558
        %vm2801 = vcmp.eq.s32.totalorder %v2704, %v557
        %vm2802 = vcmp.eq.s32.totalorder %v2704, %v558
        %vm2803 = vcmp.eq.s32.totalorder %v2705, %v557
        %vm2804 = vcmp.eq.s32.totalorder %v2705, %v558
        %vm2805 = vcmp.eq.s32.totalorder %v2706, %v557
        %vm2806 = vcmp.eq.s32.totalorder %v2706, %v558
        %vm2807 = vcmp.eq.s32.totalorder %v2707, %v557
        %vm2808 = vcmp.eq.s32.totalorder %v2707, %v558
        %vm2809 = vcmp.eq.s32.totalorder %v2708, %v557
        %vm2810 = vcmp.eq.s32.totalorder %v2708, %v558
        %vm2811 = vcmp.eq.s32.totalorder %v2709, %v557
        %vm2812 = vcmp.eq.s32.totalorder %v2709, %v558
        %vm2813 = vcmp.eq.s32.totalorder %v2710, %v557
        %vm2814 = vcmp.eq.s32.totalorder %v2710, %v558
        %vm2815 = vcmp.eq.s32.totalorder %v2711, %v557
        %vm2816 = vcmp.eq.s32.totalorder %v2711, %v558
        %vm2817 = vcmp.eq.s32.totalorder %v2712, %v557
        %vm2818 = vcmp.eq.s32.totalorder %v2712, %v558
        %vm2819 = vcmp.eq.s32.totalorder %v2713, %v557
        %vm2820 = vcmp.eq.s32.totalorder %v2713, %v558
        %vm2821 = vcmp.eq.s32.totalorder %v2714, %v557
        %vm2822 = vcmp.eq.s32.totalorder %v2714, %v558
        %vm2823 = vcmp.eq.s32.totalorder %v2715, %v557
        %vm2824 = vcmp.eq.s32.totalorder %v2715, %v558
        %vm2825 = vcmp.eq.s32.totalorder %v2716, %v557
        %vm2826 = vcmp.eq.s32.totalorder %v2716, %v558
        %vm2827 = vcmp.eq.s32.totalorder %v2717, %v557
        %vm2828 = vcmp.eq.s32.totalorder %v2717, %v558
        %vm2829 = vcmp.eq.s32.totalorder %v2718, %v557
        %vm2830 = vcmp.eq.s32.totalorder %v2718, %v558
        %vm2831 = vcmp.eq.s32.totalorder %v2719, %v557
        %vm2832 = vcmp.eq.s32.totalorder %v2719, %v558
        %vm2833 = vcmp.eq.s32.totalorder %v2720, %v557
        %vm2834 = vcmp.eq.s32.totalorder %v2720, %v558
        %vm2835 = vcmp.eq.s32.totalorder %v2721, %v557
        %vm2836 = vcmp.eq.s32.totalorder %v2721, %v558
        %vm2837 = vcmp.eq.s32.totalorder %v2722, %v557
        %vm2838 = vcmp.eq.s32.totalorder %v2722, %v558
        %vm2839 = vcmp.eq.s32.totalorder %v2723, %v557
        %vm2840 = vcmp.eq.s32.totalorder %v2723, %v558
        %vm2841 = vcmp.eq.s32.totalorder %v2724, %v557
        %vm2842 = vcmp.eq.s32.totalorder %v2724, %v558
        %vm2843 = vcmp.eq.s32.totalorder %v2725, %v557
        %vm2844 = vcmp.eq.s32.totalorder %v2725, %v558
        %vm2845 = vcmp.eq.s32.totalorder %v2726, %v557
        %vm2846 = vcmp.eq.s32.totalorder %v2726, %v558
        %vm2847 = vcmp.eq.s32.totalorder %v2727, %v557
        %vm2848 = vcmp.eq.s32.totalorder %v2727, %v558
        %vm2849 = vcmp.eq.s32.totalorder %v2728, %v557
        %vm2850 = vcmp.eq.s32.totalorder %v2728, %v558
        %vm2851 = vcmp.eq.s32.totalorder %v2729, %v557
        %vm2852 = vcmp.eq.s32.totalorder %v2729, %v558
        %vm2853 = vcmp.eq.s32.totalorder %v2730, %v557
        %vm2854 = vcmp.eq.s32.totalorder %v2730, %v558
        %vm2855 = vcmp.eq.s32.totalorder %v2731, %v557
        %vm2856 = vcmp.eq.s32.totalorder %v2731, %v558
        %vm2857 = vcmp.eq.s32.totalorder %v2732, %v557
        %vm2858 = vcmp.eq.s32.totalorder %v2732, %v558
        %vm2859 = vcmp.eq.s32.totalorder %v2733, %v557
        %vm2860 = vcmp.eq.s32.totalorder %v2733, %v558
        %vm2861 = vcmp.eq.s32.totalorder %v2734, %v557
        %vm2862 = vcmp.eq.s32.totalorder %v2734, %v558
        %v2863 = vsel %vm2735, 1, 0
        %v2864 = vsel %vm2736, 1, 0
        %v2865 = vsel %vm2737, 1, 0
        %v2866 = vsel %vm2738, 1, 0
        %v2867 = vsel %vm2739, 1, 0
        %v2868 = vsel %vm2740, 1, 0
        %v2869 = vsel %vm2741, 1, 0
        %v2870 = vsel %vm2742, 1, 0
        %v2871 = vsel %vm2743, 1, 0
        %v2872 = vsel %vm2744, 1, 0
        %v2873 = vsel %vm2745, 1, 0
        %v2874 = vsel %vm2746, 1, 0
        %v2875 = vsel %vm2747, 1, 0
        %v2876 = vsel %vm2748, 1, 0
        %v2877 = vsel %vm2749, 1, 0
        %v2878 = vsel %vm2750, 1, 0
        %v2879 = vsel %vm2751, 1, 0
        %v2880 = vsel %vm2752, 1, 0
        %v2881 = vsel %vm2753, 1, 0
        %v2882 = vsel %vm2754, 1, 0
        %v2883 = vsel %vm2755, 1, 0
        %v2884 = vsel %vm2756, 1, 0
        %v2885 = vsel %vm2757, 1, 0
        %v2886 = vsel %vm2758, 1, 0
        %v2887 = vsel %vm2759, 1, 0
        %v2888 = vsel %vm2760, 1, 0
        %v2889 = vsel %vm2761, 1, 0
        %v2890 = vsel %vm2762, 1, 0
        %v2891 = vsel %vm2763, 1, 0
        %v2892 = vsel %vm2764, 1, 0
        %v2893 = vsel %vm2765, 1, 0
        %v2894 = vsel %vm2766, 1, 0
        %v2895 = vsel %vm2767, 1, 0
        %v2896 = vsel %vm2768, 1, 0
        %v2897 = vsel %vm2769, 1, 0
        %v2898 = vsel %vm2770, 1, 0
        %v2899 = vsel %vm2771, 1, 0
        %v2900 = vsel %vm2772, 1, 0
        %v2901 = vsel %vm2773, 1, 0
        %v2902 = vsel %vm2774, 1, 0
        %v2903 = vsel %vm2775, 1, 0
        %v2904 = vsel %vm2776, 1, 0
        %v2905 = vsel %vm2777, 1, 0
        %v2906 = vsel %vm2778, 1, 0
        %v2907 = vsel %vm2779, 1, 0
        %v2908 = vsel %vm2780, 1, 0
        %v2909 = vsel %vm2781, 1, 0
        %v2910 = vsel %vm2782, 1, 0
        %v2911 = vsel %vm2783, 1, 0
        %v2912 = vsel %vm2784, 1, 0
        %v2913 = vsel %vm2785, 1, 0
        %v2914 = vsel %vm2786, 1, 0
        %v2915 = vsel %vm2787, 1, 0
        %v2916 = vsel %vm2788, 1, 0
        %v2917 = vsel %vm2789, 1, 0
        %v2918 = vsel %vm2790, 1, 0
        %v2919 = vsel %vm2791, 1, 0
        %v2920 = vsel %vm2792, 1, 0
        %v2921 = vsel %vm2793, 1, 0
        %v2922 = vsel %vm2794, 1, 0
        %v2923 = vsel %vm2795, 1, 0
        %v2924 = vsel %vm2796, 1, 0
        %v2925 = vsel %vm2797, 1, 0
        %v2926 = vsel %vm2798, 1, 0
        %v2927 = vsel %vm2799, 1, 0
        %v2928 = vsel %vm2800, 1, 0
        %v2929 = vsel %vm2801, 1, 0
        %v2930 = vsel %vm2802, 1, 0
        %v2931 = vsel %vm2803, 1, 0
        %v2932 = vsel %vm2804, 1, 0
        %v2933 = vsel %vm2805, 1, 0
        %v2934 = vsel %vm2806, 1, 0
        %v2935 = vsel %vm2807, 1, 0
        %v2936 = vsel %vm2808, 1, 0
        %v2937 = vsel %vm2809, 1, 0
        %v2938 = vsel %vm2810, 1, 0
        %v2939 = vsel %vm2811, 1, 0
        %v2940 = vsel %vm2812, 1, 0
        %v2941 = vsel %vm2813, 1, 0
        %v2942 = vsel %vm2814, 1, 0
        %v2943 = vsel %vm2815, 1, 0
        %v2944 = vsel %vm2816, 1, 0
        %v2945 = vsel %vm2817, 1, 0
        %v2946 = vsel %vm2818, 1, 0
        %v2947 = vsel %vm2819, 1, 0
        %v2948 = vsel %vm2820, 1, 0
        %v2949 = vsel %vm2821, 1, 0
        %v2950 = vsel %vm2822, 1, 0
        %v2951 = vsel %vm2823, 1, 0
        %v2952 = vsel %vm2824, 1, 0
        %v2953 = vsel %vm2825, 1, 0
        %v2954 = vsel %vm2826, 1, 0
        %v2955 = vsel %vm2827, 1, 0
        %v2956 = vsel %vm2828, 1, 0
        %v2957 = vsel %vm2829, 1, 0
        %v2958 = vsel %vm2830, 1, 0
        %v2959 = vsel %vm2831, 1, 0
        %v2960 = vsel %vm2832, 1, 0
        %v2961 = vsel %vm2833, 1, 0
        %v2962 = vsel %vm2834, 1, 0
        %v2963 = vsel %vm2835, 1, 0
        %v2964 = vsel %vm2836, 1, 0
        %v2965 = vsel %vm2837, 1, 0
        %v2966 = vsel %vm2838, 1, 0
        %v2967 = vsel %vm2839, 1, 0
        %v2968 = vsel %vm2840, 1, 0
        %v2969 = vsel %vm2841, 1, 0
        %v2970 = vsel %vm2842, 1, 0
        %v2971 = vsel %vm2843, 1, 0
        %v2972 = vsel %vm2844, 1, 0
        %v2973 = vsel %vm2845, 1, 0
        %v2974 = vsel %vm2846, 1, 0
        %v2975 = vsel %vm2847, 1, 0
        %v2976 = vsel %vm2848, 1, 0
        %v2977 = vsel %vm2849, 1, 0
        %v2978 = vsel %vm2850, 1, 0
        %v2979 = vsel %vm2851, 1, 0
        %v2980 = vsel %vm2852, 1, 0
        %v2981 = vsel %vm2853, 1, 0
        %v2982 = vsel %vm2854, 1, 0
        %v2983 = vsel %vm2855, 1, 0
        %v2984 = vsel %vm2856, 1, 0
        %v2985 = vsel %vm2857, 1, 0
        %v2986 = vsel %vm2858, 1, 0
        %v2987 = vsel %vm2859, 1, 0
        %v2988 = vsel %vm2860, 1, 0
        %v2989 = vsel %vm2861, 1, 0
        %v2990 = vsel %vm2862, 1, 0
        %v2991 = vcvt.s32.f32 %v2863
        %v2992 = vcvt.s32.f32 %v2864
        %v2993 = vcvt.s32.f32 %v2865
        %v2994 = vcvt.s32.f32 %v2866
        %v2995 = vcvt.s32.f32 %v2867
        %v2996 = vcvt.s32.f32 %v2868
        %v2997 = vcvt.s32.f32 %v2869
        %v2998 = vcvt.s32.f32 %v2870
        %v2999 = vcvt.s32.f32 %v2871
        %v3000 = vcvt.s32.f32 %v2872
        %v3001 = vcvt.s32.f32 %v2873
        %v3002 = vcvt.s32.f32 %v2874
        %v3003 = vcvt.s32.f32 %v2875
        %v3004 = vcvt.s32.f32 %v2876
        %v3005 = vcvt.s32.f32 %v2877
        %v3006 = vcvt.s32.f32 %v2878
        %v3007 = vcvt.s32.f32 %v2879
        %v3008 = vcvt.s32.f32 %v2880
        %v3009 = vcvt.s32.f32 %v2881
        %v3010 = vcvt.s32.f32 %v2882
        %v3011 = vcvt.s32.f32 %v2883
        %v3012 = vcvt.s32.f32 %v2884
        %v3013 = vcvt.s32.f32 %v2885
        %v3014 = vcvt.s32.f32 %v2886
        %v3015 = vcvt.s32.f32 %v2887
        %v3016 = vcvt.s32.f32 %v2888
        %v3017 = vcvt.s32.f32 %v2889
        %v3018 = vcvt.s32.f32 %v2890
        %v3019 = vcvt.s32.f32 %v2891
        %v3020 = vcvt.s32.f32 %v2892
        %v3021 = vcvt.s32.f32 %v2893
        %v3022 = vcvt.s32.f32 %v2894
        %v3023 = vcvt.s32.f32 %v2895
        %v3024 = vcvt.s32.f32 %v2896
        %v3025 = vcvt.s32.f32 %v2897
        %v3026 = vcvt.s32.f32 %v2898
        %v3027 = vcvt.s32.f32 %v2899
        %v3028 = vcvt.s32.f32 %v2900
        %v3029 = vcvt.s32.f32 %v2901
        %v3030 = vcvt.s32.f32 %v2902
        %v3031 = vcvt.s32.f32 %v2903
        %v3032 = vcvt.s32.f32 %v2904
        %v3033 = vcvt.s32.f32 %v2905
        %v3034 = vcvt.s32.f32 %v2906
        %v3035 = vcvt.s32.f32 %v2907
        %v3036 = vcvt.s32.f32 %v2908
        %v3037 = vcvt.s32.f32 %v2909
        %v3038 = vcvt.s32.f32 %v2910
        %v3039 = vcvt.s32.f32 %v2911
        %v3040 = vcvt.s32.f32 %v2912
        %v3041 = vcvt.s32.f32 %v2913
        %v3042 = vcvt.s32.f32 %v2914
        %v3043 = vcvt.s32.f32 %v2915
        %v3044 = vcvt.s32.f32 %v2916
        %v3045 = vcvt.s32.f32 %v2917
        %v3046 = vcvt.s32.f32 %v2918
        %v3047 = vcvt.s32.f32 %v2919
        %v3048 = vcvt.s32.f32 %v2920
        %v3049 = vcvt.s32.f32 %v2921
        %v3050 = vcvt.s32.f32 %v2922
        %v3051 = vcvt.s32.f32 %v2923
        %v3052 = vcvt.s32.f32 %v2924
        %v3053 = vcvt.s32.f32 %v2925
        %v3054 = vcvt.s32.f32 %v2926
        %v3055 = vcvt.s32.f32 %v2927
        %v3056 = vcvt.s32.f32 %v2928
        %v3057 = vcvt.s32.f32 %v2929
        %v3058 = vcvt.s32.f32 %v2930
        %v3059 = vcvt.s32.f32 %v2931
        %v3060 = vcvt.s32.f32 %v2932
        %v3061 = vcvt.s32.f32 %v2933
        %v3062 = vcvt.s32.f32 %v2934
        %v3063 = vcvt.s32.f32 %v2935
        %v3064 = vcvt.s32.f32 %v2936
        %v3065 = vcvt.s32.f32 %v2937
        %v3066 = vcvt.s32.f32 %v2938
        %v3067 = vcvt.s32.f32 %v2939
        %v3068 = vcvt.s32.f32 %v2940
        %v3069 = vcvt.s32.f32 %v2941
        %v3070 = vcvt.s32.f32 %v2942
        %v3071 = vcvt.s32.f32 %v2943
        %v3072 = vcvt.s32.f32 %v2944
        %v3073 = vcvt.s32.f32 %v2945
        %v3074 = vcvt.s32.f32 %v2946
        %v3075 = vcvt.s32.f32 %v2947
        %v3076 = vcvt.s32.f32 %v2948
        %v3077 = vcvt.s32.f32 %v2949
        %v3078 = vcvt.s32.f32 %v2950
        %v3079 = vcvt.s32.f32 %v2951
        %v3080 = vcvt.s32.f32 %v2952
        %v3081 = vcvt.s32.f32 %v2953
        %v3082 = vcvt.s32.f32 %v2954
        %v3083 = vcvt.s32.f32 %v2955
        %v3084 = vcvt.s32.f32 %v2956
        %v3085 = vcvt.s32.f32 %v2957
        %v3086 = vcvt.s32.f32 %v2958
        %v3087 = vcvt.s32.f32 %v2959
        %v3088 = vcvt.s32.f32 %v2960
        %v3089 = vcvt.s32.f32 %v2961
        %v3090 = vcvt.s32.f32 %v2962
        %v3091 = vcvt.s32.f32 %v2963
        %v3092 = vcvt.s32.f32 %v2964
        %v3093 = vcvt.s32.f32 %v2965
        %v3094 = vcvt.s32.f32 %v2966
        %v3095 = vcvt.s32.f32 %v2967
        %v3096 = vcvt.s32.f32 %v2968
        %v3097 = vcvt.s32.f32 %v2969
        %v3098 = vcvt.s32.f32 %v2970
        %v3099 = vcvt.s32.f32 %v2971
        %v3100 = vcvt.s32.f32 %v2972
        %v3101 = vcvt.s32.f32 %v2973
        %v3102 = vcvt.s32.f32 %v2974
        %v3103 = vcvt.s32.f32 %v2975
        %v3104 = vcvt.s32.f32 %v2976
        %v3105 = vcvt.s32.f32 %v2977
        %v3106 = vcvt.s32.f32 %v2978
        %v3107 = vcvt.s32.f32 %v2979
        %v3108 = vcvt.s32.f32 %v2980
        %v3109 = vcvt.s32.f32 %v2981
        %v3110 = vcvt.s32.f32 %v2982
        %v3111 = vcvt.s32.f32 %v2983
        %v3112 = vcvt.s32.f32 %v2984
        %v3113 = vcvt.s32.f32 %v2985
        %v3114 = vcvt.s32.f32 %v2986
        %v3115 = vcvt.s32.f32 %v2987
        %v3116 = vcvt.s32.f32 %v2988
        %v3117 = vcvt.s32.f32 %v2989
        %v3118 = vcvt.s32.f32 %v2990
        %v3119 = vpack.c.bf16 %v2993, %v2991
        %v3120 = vpack.c.bf16 %v2994, %v2992
        %v3121 = vpack.c.bf16 %v2997, %v2995
        %v3122 = vpack.c.bf16 %v2998, %v2996
        %v3123 = vpack.c.bf16 %v3001, %v2999
        %v3124 = vpack.c.bf16 %v3002, %v3000
        %v3125 = vpack.c.bf16 %v3005, %v3003
        %v3126 = vpack.c.bf16 %v3006, %v3004
        %v3127 = vpack.c.bf16 %v3009, %v3007
        %v3128 = vpack.c.bf16 %v3010, %v3008
        %v3129 = vpack.c.bf16 %v3013, %v3011
        %v3130 = vpack.c.bf16 %v3014, %v3012
        %v3131 = vpack.c.bf16 %v3017, %v3015
        %v3132 = vpack.c.bf16 %v3018, %v3016
        %v3133 = vpack.c.bf16 %v3021, %v3019
        %v3134 = vpack.c.bf16 %v3022, %v3020
        %v3135 = vpack.c.bf16 %v3025, %v3023
        %v3136 = vpack.c.bf16 %v3026, %v3024
        %v3137 = vpack.c.bf16 %v3029, %v3027
        %v3138 = vpack.c.bf16 %v3030, %v3028
        %v3139 = vpack.c.bf16 %v3033, %v3031
        %v3140 = vpack.c.bf16 %v3034, %v3032
        %v3141 = vpack.c.bf16 %v3037, %v3035
        %v3142 = vpack.c.bf16 %v3038, %v3036
        %v3143 = vpack.c.bf16 %v3041, %v3039
        %v3144 = vpack.c.bf16 %v3042, %v3040
        %v3145 = vpack.c.bf16 %v3045, %v3043
        %v3146 = vpack.c.bf16 %v3046, %v3044
        %v3147 = vpack.c.bf16 %v3049, %v3047
        %v3148 = vpack.c.bf16 %v3050, %v3048
        %v3149 = vpack.c.bf16 %v3053, %v3051
        %v3150 = vpack.c.bf16 %v3054, %v3052
        %v3151 = vpack.c.bf16 %v3057, %v3055
        %v3152 = vpack.c.bf16 %v3058, %v3056
        %v3153 = vpack.c.bf16 %v3061, %v3059
        %v3154 = vpack.c.bf16 %v3062, %v3060
        %v3155 = vpack.c.bf16 %v3065, %v3063
        %v3156 = vpack.c.bf16 %v3066, %v3064
        %v3157 = vpack.c.bf16 %v3069, %v3067
        %v3158 = vpack.c.bf16 %v3070, %v3068
        %v3159 = vpack.c.bf16 %v3073, %v3071
        %v3160 = vpack.c.bf16 %v3074, %v3072
        %v3161 = vpack.c.bf16 %v3077, %v3075
        %v3162 = vpack.c.bf16 %v3078, %v3076
        %v3163 = vpack.c.bf16 %v3081, %v3079
        %v3164 = vpack.c.bf16 %v3082, %v3080
        %v3165 = vpack.c.bf16 %v3085, %v3083
        %v3166 = vpack.c.bf16 %v3086, %v3084
        %v3167 = vpack.c.bf16 %v3089, %v3087
        %v3168 = vpack.c.bf16 %v3090, %v3088
        %v3169 = vpack.c.bf16 %v3093, %v3091
        %v3170 = vpack.c.bf16 %v3094, %v3092
        %v3171 = vpack.c.bf16 %v3097, %v3095
        %v3172 = vpack.c.bf16 %v3098, %v3096
        %v3173 = vpack.c.bf16 %v3101, %v3099
        %v3174 = vpack.c.bf16 %v3102, %v3100
        %v3175 = vpack.c.bf16 %v3105, %v3103
        %v3176 = vpack.c.bf16 %v3106, %v3104
        %v3177 = vpack.c.bf16 %v3109, %v3107
        %v3178 = vpack.c.bf16 %v3110, %v3108
        %v3179 = vpack.c.bf16 %v3113, %v3111
        %v3180 = vpack.c.bf16 %v3114, %v3112
        %v3181 = vpack.c.bf16 %v3117, %v3115
        %v3182 = vpack.c.bf16 %v3118, %v3116
        %v3184 = vshrl.u32 %v3119, 16
        %v3186 = vrot.slane %v3184, 1
        %v3187 = vshll.u32 %v3119, 16
        %v3189 = vrot.slane %v3187, 2
        %v3190 = vor.u32 %v3186, %v3189
        %v3192 = vshrl.u32 %v3120, 16
        %v3194 = vrot.slane %v3192, 1
        %v3195 = vshll.u32 %v3120, 16
        %v3197 = vrot.slane %v3195, 2
        %v3198 = vor.u32 %v3194, %v3197
        %v3200 = vshrl.u32 %v3121, 16
        %v3202 = vrot.slane %v3200, 1
        %v3203 = vshll.u32 %v3121, 16
        %v3205 = vrot.slane %v3203, 2
        %v3206 = vor.u32 %v3202, %v3205
        %v3208 = vshrl.u32 %v3122, 16
        %v3210 = vrot.slane %v3208, 1
        %v3211 = vshll.u32 %v3122, 16
        %v3213 = vrot.slane %v3211, 2
        %v3214 = vor.u32 %v3210, %v3213
        %v3216 = vshrl.u32 %v3123, 16
        %v3218 = vrot.slane %v3216, 1
        %v3219 = vshll.u32 %v3123, 16
        %v3221 = vrot.slane %v3219, 2
        %v3222 = vor.u32 %v3218, %v3221
        %v3224 = vshrl.u32 %v3124, 16
        %v3226 = vrot.slane %v3224, 1
        %v3227 = vshll.u32 %v3124, 16
        %v3229 = vrot.slane %v3227, 2
        %v3230 = vor.u32 %v3226, %v3229
        %v3232 = vshrl.u32 %v3125, 16
        %v3234 = vrot.slane %v3232, 1
        %v3235 = vshll.u32 %v3125, 16
        %v3237 = vrot.slane %v3235, 2
        %v3238 = vor.u32 %v3234, %v3237
        %v3240 = vshrl.u32 %v3126, 16
        %v3242 = vrot.slane %v3240, 1
        %v3243 = vshll.u32 %v3126, 16
        %v3245 = vrot.slane %v3243, 2
        %v3246 = vor.u32 %v3242, %v3245
        %v3248 = vshrl.u32 %v3127, 16
        %v3250 = vrot.slane %v3248, 1
        %v3251 = vshll.u32 %v3127, 16
        %v3253 = vrot.slane %v3251, 2
        %v3254 = vor.u32 %v3250, %v3253
        %v3256 = vshrl.u32 %v3128, 16
        %v3258 = vrot.slane %v3256, 1
        %v3259 = vshll.u32 %v3128, 16
        %v3261 = vrot.slane %v3259, 2
        %v3262 = vor.u32 %v3258, %v3261
        %v3264 = vshrl.u32 %v3129, 16
        %v3266 = vrot.slane %v3264, 1
        %v3267 = vshll.u32 %v3129, 16
        %v3269 = vrot.slane %v3267, 2
        %v3270 = vor.u32 %v3266, %v3269
        %v3272 = vshrl.u32 %v3130, 16
        %v3274 = vrot.slane %v3272, 1
        %v3275 = vshll.u32 %v3130, 16
        %v3277 = vrot.slane %v3275, 2
        %v3278 = vor.u32 %v3274, %v3277
        %v3280 = vshrl.u32 %v3131, 16
        %v3282 = vrot.slane %v3280, 1
        %v3283 = vshll.u32 %v3131, 16
        %v3285 = vrot.slane %v3283, 2
        %v3286 = vor.u32 %v3282, %v3285
        %v3288 = vshrl.u32 %v3132, 16
        %v3290 = vrot.slane %v3288, 1
        %v3291 = vshll.u32 %v3132, 16
        %v3293 = vrot.slane %v3291, 2
        %v3294 = vor.u32 %v3290, %v3293
        %v3296 = vshrl.u32 %v3133, 16
        %v3298 = vrot.slane %v3296, 1
        %v3299 = vshll.u32 %v3133, 16
        %v3301 = vrot.slane %v3299, 2
        %v3302 = vor.u32 %v3298, %v3301
        %v3304 = vshrl.u32 %v3134, 16
        %v3306 = vrot.slane %v3304, 1
        %v3307 = vshll.u32 %v3134, 16
        %v3309 = vrot.slane %v3307, 2
        %v3310 = vor.u32 %v3306, %v3309
        %v3312 = vshrl.u32 %v3135, 16
        %v3314 = vrot.slane %v3312, 1
        %v3315 = vshll.u32 %v3135, 16
        %v3317 = vrot.slane %v3315, 2
        %v3318 = vor.u32 %v3314, %v3317
        %v3320 = vshrl.u32 %v3136, 16
        %v3322 = vrot.slane %v3320, 1
        %v3323 = vshll.u32 %v3136, 16
        %v3325 = vrot.slane %v3323, 2
        %v3326 = vor.u32 %v3322, %v3325
        %v3328 = vshrl.u32 %v3137, 16
        %v3330 = vrot.slane %v3328, 1
        %v3331 = vshll.u32 %v3137, 16
        %v3333 = vrot.slane %v3331, 2
        %v3334 = vor.u32 %v3330, %v3333
        %v3336 = vshrl.u32 %v3138, 16
        %v3338 = vrot.slane %v3336, 1
        %v3339 = vshll.u32 %v3138, 16
        %v3341 = vrot.slane %v3339, 2
        %v3342 = vor.u32 %v3338, %v3341
        %v3344 = vshrl.u32 %v3139, 16
        %v3346 = vrot.slane %v3344, 1
        %v3347 = vshll.u32 %v3139, 16
        %v3349 = vrot.slane %v3347, 2
        %v3350 = vor.u32 %v3346, %v3349
        %v3352 = vshrl.u32 %v3140, 16
        %v3354 = vrot.slane %v3352, 1
        %v3355 = vshll.u32 %v3140, 16
        %v3357 = vrot.slane %v3355, 2
        %v3358 = vor.u32 %v3354, %v3357
        %v3360 = vshrl.u32 %v3141, 16
        %v3362 = vrot.slane %v3360, 1
        %v3363 = vshll.u32 %v3141, 16
        %v3365 = vrot.slane %v3363, 2
        %v3366 = vor.u32 %v3362, %v3365
        %v3368 = vshrl.u32 %v3142, 16
        %v3370 = vrot.slane %v3368, 1
        %v3371 = vshll.u32 %v3142, 16
        %v3373 = vrot.slane %v3371, 2
        %v3374 = vor.u32 %v3370, %v3373
        %v3376 = vshrl.u32 %v3143, 16
        %v3378 = vrot.slane %v3376, 1
        %v3379 = vshll.u32 %v3143, 16
        %v3381 = vrot.slane %v3379, 2
        %v3382 = vor.u32 %v3378, %v3381
        %v3384 = vshrl.u32 %v3144, 16
        %v3386 = vrot.slane %v3384, 1
        %v3387 = vshll.u32 %v3144, 16
        %v3389 = vrot.slane %v3387, 2
        %v3390 = vor.u32 %v3386, %v3389
        %v3392 = vshrl.u32 %v3145, 16
        %v3394 = vrot.slane %v3392, 1
        %v3395 = vshll.u32 %v3145, 16
        %v3397 = vrot.slane %v3395, 2
        %v3398 = vor.u32 %v3394, %v3397
        %v3400 = vshrl.u32 %v3146, 16
        %v3402 = vrot.slane %v3400, 1
        %v3403 = vshll.u32 %v3146, 16
        %v3405 = vrot.slane %v3403, 2
        %v3406 = vor.u32 %v3402, %v3405
        %v3408 = vshrl.u32 %v3147, 16
        %v3410 = vrot.slane %v3408, 1
        %v3411 = vshll.u32 %v3147, 16
        %v3413 = vrot.slane %v3411, 2
        %v3414 = vor.u32 %v3410, %v3413
        %v3416 = vshrl.u32 %v3148, 16
        %v3418 = vrot.slane %v3416, 1
        %v3419 = vshll.u32 %v3148, 16
        %v3421 = vrot.slane %v3419, 2
        %v3422 = vor.u32 %v3418, %v3421
        %v3424 = vshrl.u32 %v3149, 16
        %v3426 = vrot.slane %v3424, 1
        %v3427 = vshll.u32 %v3149, 16
        %v3429 = vrot.slane %v3427, 2
        %v3430 = vor.u32 %v3426, %v3429
        %v3432 = vshrl.u32 %v3150, 16
        %v3434 = vrot.slane %v3432, 1
        %v3435 = vshll.u32 %v3150, 16
        %v3437 = vrot.slane %v3435, 2
        %v3438 = vor.u32 %v3434, %v3437
        %v3440 = vshrl.u32 %v3151, 16
        %v3442 = vrot.slane %v3440, 1
        %v3443 = vshll.u32 %v3151, 16
        %v3445 = vrot.slane %v3443, 2
        %v3446 = vor.u32 %v3442, %v3445
        %v3448 = vshrl.u32 %v3152, 16
        %v3450 = vrot.slane %v3448, 1
        %v3451 = vshll.u32 %v3152, 16
        %v3453 = vrot.slane %v3451, 2
        %v3454 = vor.u32 %v3450, %v3453
        %v3456 = vshrl.u32 %v3153, 16
        %v3458 = vrot.slane %v3456, 1
        %v3459 = vshll.u32 %v3153, 16
        %v3461 = vrot.slane %v3459, 2
        %v3462 = vor.u32 %v3458, %v3461
        %v3464 = vshrl.u32 %v3154, 16
        %v3466 = vrot.slane %v3464, 1
        %v3467 = vshll.u32 %v3154, 16
        %v3469 = vrot.slane %v3467, 2
        %v3470 = vor.u32 %v3466, %v3469
        %v3472 = vshrl.u32 %v3155, 16
        %v3474 = vrot.slane %v3472, 1
        %v3475 = vshll.u32 %v3155, 16
        %v3477 = vrot.slane %v3475, 2
        %v3478 = vor.u32 %v3474, %v3477
        %v3480 = vshrl.u32 %v3156, 16
        %v3482 = vrot.slane %v3480, 1
        %v3483 = vshll.u32 %v3156, 16
        %v3485 = vrot.slane %v3483, 2
        %v3486 = vor.u32 %v3482, %v3485
        %v3488 = vshrl.u32 %v3157, 16
        %v3490 = vrot.slane %v3488, 1
        %v3491 = vshll.u32 %v3157, 16
        %v3493 = vrot.slane %v3491, 2
        %v3494 = vor.u32 %v3490, %v3493
        %v3496 = vshrl.u32 %v3158, 16
        %v3498 = vrot.slane %v3496, 1
        %v3499 = vshll.u32 %v3158, 16
        %v3501 = vrot.slane %v3499, 2
        %v3502 = vor.u32 %v3498, %v3501
        %v3504 = vshrl.u32 %v3159, 16
        %v3506 = vrot.slane %v3504, 1
        %v3507 = vshll.u32 %v3159, 16
        %v3509 = vrot.slane %v3507, 2
        %v3510 = vor.u32 %v3506, %v3509
        %v3512 = vshrl.u32 %v3160, 16
        %v3514 = vrot.slane %v3512, 1
        %v3515 = vshll.u32 %v3160, 16
        %v3517 = vrot.slane %v3515, 2
        %v3518 = vor.u32 %v3514, %v3517
        %v3520 = vshrl.u32 %v3161, 16
        %v3522 = vrot.slane %v3520, 1
        %v3523 = vshll.u32 %v3161, 16
        %v3525 = vrot.slane %v3523, 2
        %v3526 = vor.u32 %v3522, %v3525
        %v3528 = vshrl.u32 %v3162, 16
        %v3530 = vrot.slane %v3528, 1
        %v3531 = vshll.u32 %v3162, 16
        %v3533 = vrot.slane %v3531, 2
        %v3534 = vor.u32 %v3530, %v3533
        %v3536 = vshrl.u32 %v3163, 16
        %v3538 = vrot.slane %v3536, 1
        %v3539 = vshll.u32 %v3163, 16
        %v3541 = vrot.slane %v3539, 2
        %v3542 = vor.u32 %v3538, %v3541
        %v3544 = vshrl.u32 %v3164, 16
        %v3546 = vrot.slane %v3544, 1
        %v3547 = vshll.u32 %v3164, 16
        %v3549 = vrot.slane %v3547, 2
        %v3550 = vor.u32 %v3546, %v3549
        %v3552 = vshrl.u32 %v3165, 16
        %v3554 = vrot.slane %v3552, 1
        %v3555 = vshll.u32 %v3165, 16
        %v3557 = vrot.slane %v3555, 2
        %v3558 = vor.u32 %v3554, %v3557
        %v3560 = vshrl.u32 %v3166, 16
        %v3562 = vrot.slane %v3560, 1
        %v3563 = vshll.u32 %v3166, 16
        %v3565 = vrot.slane %v3563, 2
        %v3566 = vor.u32 %v3562, %v3565
        %v3568 = vshrl.u32 %v3167, 16
        %v3570 = vrot.slane %v3568, 1
        %v3571 = vshll.u32 %v3167, 16
        %v3573 = vrot.slane %v3571, 2
        %v3574 = vor.u32 %v3570, %v3573
        %v3576 = vshrl.u32 %v3168, 16
        %v3578 = vrot.slane %v3576, 1
        %v3579 = vshll.u32 %v3168, 16
        %v3581 = vrot.slane %v3579, 2
        %v3582 = vor.u32 %v3578, %v3581
        %v3584 = vshrl.u32 %v3169, 16
        %v3586 = vrot.slane %v3584, 1
        %v3587 = vshll.u32 %v3169, 16
        %v3589 = vrot.slane %v3587, 2
        %v3590 = vor.u32 %v3586, %v3589
        %v3592 = vshrl.u32 %v3170, 16
        %v3594 = vrot.slane %v3592, 1
        %v3595 = vshll.u32 %v3170, 16
        %v3597 = vrot.slane %v3595, 2
        %v3598 = vor.u32 %v3594, %v3597
        %v3600 = vshrl.u32 %v3171, 16
        %v3602 = vrot.slane %v3600, 1
        %v3603 = vshll.u32 %v3171, 16
        %v3605 = vrot.slane %v3603, 2
        %v3606 = vor.u32 %v3602, %v3605
        %v3608 = vshrl.u32 %v3172, 16
        %v3610 = vrot.slane %v3608, 1
        %v3611 = vshll.u32 %v3172, 16
        %v3613 = vrot.slane %v3611, 2
        %v3614 = vor.u32 %v3610, %v3613
        %v3616 = vshrl.u32 %v3173, 16
        %v3618 = vrot.slane %v3616, 1
        %v3619 = vshll.u32 %v3173, 16
        %v3621 = vrot.slane %v3619, 2
        %v3622 = vor.u32 %v3618, %v3621
        %v3624 = vshrl.u32 %v3174, 16
        %v3626 = vrot.slane %v3624, 1
        %v3627 = vshll.u32 %v3174, 16
        %v3629 = vrot.slane %v3627, 2
        %v3630 = vor.u32 %v3626, %v3629
        %v3632 = vshrl.u32 %v3175, 16
        %v3634 = vrot.slane %v3632, 1
        %v3635 = vshll.u32 %v3175, 16
        %v3637 = vrot.slane %v3635, 2
        %v3638 = vor.u32 %v3634, %v3637
        %v3640 = vshrl.u32 %v3176, 16
        %v3642 = vrot.slane %v3640, 1
        %v3643 = vshll.u32 %v3176, 16
        %v3645 = vrot.slane %v3643, 2
        %v3646 = vor.u32 %v3642, %v3645
        %v3648 = vshrl.u32 %v3177, 16
        %v3650 = vrot.slane %v3648, 1
        %v3651 = vshll.u32 %v3177, 16
        %v3653 = vrot.slane %v3651, 2
        %v3654 = vor.u32 %v3650, %v3653
        %v3656 = vshrl.u32 %v3178, 16
        %v3658 = vrot.slane %v3656, 1
        %v3659 = vshll.u32 %v3178, 16
        %v3661 = vrot.slane %v3659, 2
        %v3662 = vor.u32 %v3658, %v3661
        %v3664 = vshrl.u32 %v3179, 16
        %v3666 = vrot.slane %v3664, 1
        %v3667 = vshll.u32 %v3179, 16
        %v3669 = vrot.slane %v3667, 2
        %v3670 = vor.u32 %v3666, %v3669
        %v3672 = vshrl.u32 %v3180, 16
        %v3674 = vrot.slane %v3672, 1
        %v3675 = vshll.u32 %v3180, 16
        %v3677 = vrot.slane %v3675, 2
        %v3678 = vor.u32 %v3674, %v3677
        %v3680 = vshrl.u32 %v3181, 16
        %v3682 = vrot.slane %v3680, 1
        %v3683 = vshll.u32 %v3181, 16
        %v3685 = vrot.slane %v3683, 2
        %v3686 = vor.u32 %v3682, %v3685
        %v3688 = vshrl.u32 %v3182, 16
        %v3690 = vrot.slane %v3688, 1
        %v3691 = vshll.u32 %v3182, 16
        %v3693 = vrot.slane %v3691, 2
        %v3694 = vor.u32 %v3690, %v3693
        %v3759 = vadd.bf16 %v2607, %v3190
        %v3760 = vadd.bf16 %v2608, %v3198
        %v3761 = vadd.bf16 %v2609, %v3206
        %v3762 = vadd.bf16 %v2610, %v3214
        %v3763 = vadd.bf16 %v2611, %v3222
        %v3764 = vadd.bf16 %v2612, %v3230
        %v3765 = vadd.bf16 %v2613, %v3238
        %v3766 = vadd.bf16 %v2614, %v3246
        %v3767 = vadd.bf16 %v2615, %v3254
        %v3768 = vadd.bf16 %v2616, %v3262
        %v3769 = vadd.bf16 %v2617, %v3270
        %v3770 = vadd.bf16 %v2618, %v3278
        %v3771 = vadd.bf16 %v2619, %v3286
        %v3772 = vadd.bf16 %v2620, %v3294
        %v3773 = vadd.bf16 %v2621, %v3302
        %v3774 = vadd.bf16 %v2622, %v3310
        %v3775 = vadd.bf16 %v2623, %v3318
        %v3776 = vadd.bf16 %v2624, %v3326
        %v3777 = vadd.bf16 %v2625, %v3334
        %v3778 = vadd.bf16 %v2626, %v3342
        %v3779 = vadd.bf16 %v2627, %v3350
        %v3780 = vadd.bf16 %v2628, %v3358
        %v3781 = vadd.bf16 %v2629, %v3366
        %v3782 = vadd.bf16 %v2630, %v3374
        %v3783 = vadd.bf16 %v2631, %v3382
        %v3784 = vadd.bf16 %v2632, %v3390
        %v3785 = vadd.bf16 %v2633, %v3398
        %v3786 = vadd.bf16 %v2634, %v3406
        %v3787 = vadd.bf16 %v2635, %v3414
        %v3788 = vadd.bf16 %v2636, %v3422
        %v3789 = vadd.bf16 %v2637, %v3430
        %v3790 = vadd.bf16 %v2638, %v3438
        %v3791 = vadd.bf16 %v2639, %v3446
        %v3792 = vadd.bf16 %v2640, %v3454
        %v3793 = vadd.bf16 %v2641, %v3462
        %v3794 = vadd.bf16 %v2642, %v3470
        %v3795 = vadd.bf16 %v2643, %v3478
        %v3796 = vadd.bf16 %v2644, %v3486
        %v3797 = vadd.bf16 %v2645, %v3494
        %v3798 = vadd.bf16 %v2646, %v3502
        %v3799 = vadd.bf16 %v2647, %v3510
        %v3800 = vadd.bf16 %v2648, %v3518
        %v3801 = vadd.bf16 %v2649, %v3526
        %v3802 = vadd.bf16 %v2650, %v3534
        %v3803 = vadd.bf16 %v2651, %v3542
        %v3804 = vadd.bf16 %v2652, %v3550
        %v3805 = vadd.bf16 %v2653, %v3558
        %v3806 = vadd.bf16 %v2654, %v3566
        %v3807 = vadd.bf16 %v2655, %v3574
        %v3808 = vadd.bf16 %v2656, %v3582
        %v3809 = vadd.bf16 %v2657, %v3590
        %v3810 = vadd.bf16 %v2658, %v3598
        %v3811 = vadd.bf16 %v2659, %v3606
        %v3812 = vadd.bf16 %v2660, %v3614
        %v3813 = vadd.bf16 %v2661, %v3622
        %v3814 = vadd.bf16 %v2662, %v3630
        %v3815 = vadd.bf16 %v2663, %v3638
        %v3816 = vadd.bf16 %v2664, %v3646
        %v3817 = vadd.bf16 %v2665, %v3654
        %v3818 = vadd.bf16 %v2666, %v3662
        %v3819 = vadd.bf16 %v2667, %v3670
        %v3820 = vadd.bf16 %v2668, %v3678
        %v3821 = vadd.bf16 %v2669, %v3686
        %v3822 = vadd.bf16 %v2670, %v3694
        %v3823 = vadd.s32 %v210, 120
        %v3824 = vadd.s32 %v214, 120
        %v3825 = vadd.s32 %v221, 120
        %v3826 = vadd.s32 %v225, 120
        %v3827 = vadd.s32 %v232, 120
        %v3828 = vadd.s32 %v236, 120
        %v3829 = vadd.s32 %v243, 120
        %v3830 = vadd.s32 %v247, 120
        %v3831 = vadd.s32 %v254, 120
        %v3832 = vadd.s32 %v258, 120
        %v3833 = vadd.s32 %v265, 120
        %v3834 = vadd.s32 %v269, 120
        %v3835 = vadd.s32 %v276, 120
        %v3836 = vadd.s32 %v280, 120
        %v3837 = vadd.s32 %v287, 120
        %v3838 = vadd.s32 %v291, 120
        %v3839 = vadd.s32 %v298, 120
        %v3840 = vadd.s32 %v302, 120
        %v3841 = vadd.s32 %v309, 120
        %v3842 = vadd.s32 %v313, 120
        %v3843 = vadd.s32 %v320, 120
        %v3844 = vadd.s32 %v324, 120
        %v3845 = vadd.s32 %v331, 120
        %v3846 = vadd.s32 %v335, 120
        %v3847 = vadd.s32 %v342, 120
        %v3848 = vadd.s32 %v346, 120
        %v3849 = vadd.s32 %v353, 120
        %v3850 = vadd.s32 %v357, 120
        %v3851 = vadd.s32 %v364, 120
        %v3852 = vadd.s32 %v368, 120
        %v3853 = vadd.s32 %v375, 120
        %v3854 = vadd.s32 %v379, 120
        %v3855 = vadd.s32 %v386, 120
        %v3856 = vadd.s32 %v390, 120
        %v3857 = vadd.s32 %v397, 120
        %v3858 = vadd.s32 %v401, 120
        %v3859 = vadd.s32 %v408, 120
        %v3860 = vadd.s32 %v412, 120
        %v3861 = vadd.s32 %v419, 120
        %v3862 = vadd.s32 %v423, 120
        %v3863 = vadd.s32 %v430, 120
        %v3864 = vadd.s32 %v434, 120
        %v3865 = vadd.s32 %v441, 120
        %v3866 = vadd.s32 %v445, 120
        %v3867 = vadd.s32 %v452, 120
        %v3868 = vadd.s32 %v456, 120
        %v3869 = vadd.s32 %v463, 120
        %v3870 = vadd.s32 %v467, 120
        %v3871 = vadd.s32 %v474, 120
        %v3872 = vadd.s32 %v478, 120
        %v3873 = vadd.s32 %v485, 120
        %v3874 = vadd.s32 %v489, 120
        %v3875 = vadd.s32 %v496, 120
        %v3876 = vadd.s32 %v500, 120
        %v3877 = vadd.s32 %v507, 120
        %v3878 = vadd.s32 %v511, 120
        %v3879 = vadd.s32 %v518, 120
        %v3880 = vadd.s32 %v522, 120
        %v3881 = vadd.s32 %v529, 120
        %v3882 = vadd.s32 %v533, 120
        %v3883 = vadd.s32 %v540, 120
        %v3884 = vadd.s32 %v544, 120
        %v3885 = vadd.s32 %v551, 120
        %v3886 = vadd.s32 %v555, 120
        %vm3887 = vcmp.eq.s32.totalorder %v3823, %v557
        %vm3888 = vcmp.eq.s32.totalorder %v3823, %v558
        %vm3889 = vcmp.eq.s32.totalorder %v3824, %v557
        %vm3890 = vcmp.eq.s32.totalorder %v3824, %v558
        %vm3891 = vcmp.eq.s32.totalorder %v3825, %v557
        %vm3892 = vcmp.eq.s32.totalorder %v3825, %v558
        %vm3893 = vcmp.eq.s32.totalorder %v3826, %v557
        %vm3894 = vcmp.eq.s32.totalorder %v3826, %v558
        %vm3895 = vcmp.eq.s32.totalorder %v3827, %v557
        %vm3896 = vcmp.eq.s32.totalorder %v3827, %v558
        %vm3897 = vcmp.eq.s32.totalorder %v3828, %v557
        %vm3898 = vcmp.eq.s32.totalorder %v3828, %v558
        %vm3899 = vcmp.eq.s32.totalorder %v3829, %v557
        %vm3900 = vcmp.eq.s32.totalorder %v3829, %v558
        %vm3901 = vcmp.eq.s32.totalorder %v3830, %v557
        %vm3902 = vcmp.eq.s32.totalorder %v3830, %v558
        %vm3903 = vcmp.eq.s32.totalorder %v3831, %v557
        %vm3904 = vcmp.eq.s32.totalorder %v3831, %v558
        %vm3905 = vcmp.eq.s32.totalorder %v3832, %v557
        %vm3906 = vcmp.eq.s32.totalorder %v3832, %v558
        %vm3907 = vcmp.eq.s32.totalorder %v3833, %v557
        %vm3908 = vcmp.eq.s32.totalorder %v3833, %v558
        %vm3909 = vcmp.eq.s32.totalorder %v3834, %v557
        %vm3910 = vcmp.eq.s32.totalorder %v3834, %v558
        %vm3911 = vcmp.eq.s32.totalorder %v3835, %v557
        %vm3912 = vcmp.eq.s32.totalorder %v3835, %v558
        %vm3913 = vcmp.eq.s32.totalorder %v3836, %v557
        %vm3914 = vcmp.eq.s32.totalorder %v3836, %v558
        %vm3915 = vcmp.eq.s32.totalorder %v3837, %v557
        %vm3916 = vcmp.eq.s32.totalorder %v3837, %v558
        %vm3917 = vcmp.eq.s32.totalorder %v3838, %v557
        %vm3918 = vcmp.eq.s32.totalorder %v3838, %v558
        %vm3919 = vcmp.eq.s32.totalorder %v3839, %v557
        %vm3920 = vcmp.eq.s32.totalorder %v3839, %v558
        %vm3921 = vcmp.eq.s32.totalorder %v3840, %v557
        %vm3922 = vcmp.eq.s32.totalorder %v3840, %v558
        %vm3923 = vcmp.eq.s32.totalorder %v3841, %v557
        %vm3924 = vcmp.eq.s32.totalorder %v3841, %v558
        %vm3925 = vcmp.eq.s32.totalorder %v3842, %v557
        %vm3926 = vcmp.eq.s32.totalorder %v3842, %v558
        %vm3927 = vcmp.eq.s32.totalorder %v3843, %v557
        %vm3928 = vcmp.eq.s32.totalorder %v3843, %v558
        %vm3929 = vcmp.eq.s32.totalorder %v3844, %v557
        %vm3930 = vcmp.eq.s32.totalorder %v3844, %v558
        %vm3931 = vcmp.eq.s32.totalorder %v3845, %v557
        %vm3932 = vcmp.eq.s32.totalorder %v3845, %v558
        %vm3933 = vcmp.eq.s32.totalorder %v3846, %v557
        %vm3934 = vcmp.eq.s32.totalorder %v3846, %v558
        %vm3935 = vcmp.eq.s32.totalorder %v3847, %v557
        %vm3936 = vcmp.eq.s32.totalorder %v3847, %v558
        %vm3937 = vcmp.eq.s32.totalorder %v3848, %v557
        %vm3938 = vcmp.eq.s32.totalorder %v3848, %v558
        %vm3939 = vcmp.eq.s32.totalorder %v3849, %v557
        %vm3940 = vcmp.eq.s32.totalorder %v3849, %v558
        %vm3941 = vcmp.eq.s32.totalorder %v3850, %v557
        %vm3942 = vcmp.eq.s32.totalorder %v3850, %v558
        %vm3943 = vcmp.eq.s32.totalorder %v3851, %v557
        %vm3944 = vcmp.eq.s32.totalorder %v3851, %v558
        %vm3945 = vcmp.eq.s32.totalorder %v3852, %v557
        %vm3946 = vcmp.eq.s32.totalorder %v3852, %v558
        %vm3947 = vcmp.eq.s32.totalorder %v3853, %v557
        %vm3948 = vcmp.eq.s32.totalorder %v3853, %v558
        %vm3949 = vcmp.eq.s32.totalorder %v3854, %v557
        %vm3950 = vcmp.eq.s32.totalorder %v3854, %v558
        %vm3951 = vcmp.eq.s32.totalorder %v3855, %v557
        %vm3952 = vcmp.eq.s32.totalorder %v3855, %v558
        %vm3953 = vcmp.eq.s32.totalorder %v3856, %v557
        %vm3954 = vcmp.eq.s32.totalorder %v3856, %v558
        %vm3955 = vcmp.eq.s32.totalorder %v3857, %v557
        %vm3956 = vcmp.eq.s32.totalorder %v3857, %v558
        %vm3957 = vcmp.eq.s32.totalorder %v3858, %v557
        %vm3958 = vcmp.eq.s32.totalorder %v3858, %v558
        %vm3959 = vcmp.eq.s32.totalorder %v3859, %v557
        %vm3960 = vcmp.eq.s32.totalorder %v3859, %v558
        %vm3961 = vcmp.eq.s32.totalorder %v3860, %v557
        %vm3962 = vcmp.eq.s32.totalorder %v3860, %v558
        %vm3963 = vcmp.eq.s32.totalorder %v3861, %v557
        %vm3964 = vcmp.eq.s32.totalorder %v3861, %v558
        %vm3965 = vcmp.eq.s32.totalorder %v3862, %v557
        %vm3966 = vcmp.eq.s32.totalorder %v3862, %v558
        %vm3967 = vcmp.eq.s32.totalorder %v3863, %v557
        %vm3968 = vcmp.eq.s32.totalorder %v3863, %v558
        %vm3969 = vcmp.eq.s32.totalorder %v3864, %v557
        %vm3970 = vcmp.eq.s32.totalorder %v3864, %v558
        %vm3971 = vcmp.eq.s32.totalorder %v3865, %v557
        %vm3972 = vcmp.eq.s32.totalorder %v3865, %v558
        %vm3973 = vcmp.eq.s32.totalorder %v3866, %v557
        %vm3974 = vcmp.eq.s32.totalorder %v3866, %v558
        %vm3975 = vcmp.eq.s32.totalorder %v3867, %v557
        %vm3976 = vcmp.eq.s32.totalorder %v3867, %v558
        %vm3977 = vcmp.eq.s32.totalorder %v3868, %v557
        %vm3978 = vcmp.eq.s32.totalorder %v3868, %v558
        %vm3979 = vcmp.eq.s32.totalorder %v3869, %v557
        %vm3980 = vcmp.eq.s32.totalorder %v3869, %v558
        %vm3981 = vcmp.eq.s32.totalorder %v3870, %v557
        %vm3982 = vcmp.eq.s32.totalorder %v3870, %v558
        %vm3983 = vcmp.eq.s32.totalorder %v3871, %v557
        %vm3984 = vcmp.eq.s32.totalorder %v3871, %v558
        %vm3985 = vcmp.eq.s32.totalorder %v3872, %v557
        %vm3986 = vcmp.eq.s32.totalorder %v3872, %v558
        %vm3987 = vcmp.eq.s32.totalorder %v3873, %v557
        %vm3988 = vcmp.eq.s32.totalorder %v3873, %v558
        %vm3989 = vcmp.eq.s32.totalorder %v3874, %v557
        %vm3990 = vcmp.eq.s32.totalorder %v3874, %v558
        %vm3991 = vcmp.eq.s32.totalorder %v3875, %v557
        %vm3992 = vcmp.eq.s32.totalorder %v3875, %v558
        %vm3993 = vcmp.eq.s32.totalorder %v3876, %v557
        %vm3994 = vcmp.eq.s32.totalorder %v3876, %v558
        %vm3995 = vcmp.eq.s32.totalorder %v3877, %v557
        %vm3996 = vcmp.eq.s32.totalorder %v3877, %v558
        %vm3997 = vcmp.eq.s32.totalorder %v3878, %v557
        %vm3998 = vcmp.eq.s32.totalorder %v3878, %v558
        %vm3999 = vcmp.eq.s32.totalorder %v3879, %v557
        %vm4000 = vcmp.eq.s32.totalorder %v3879, %v558
        %vm4001 = vcmp.eq.s32.totalorder %v3880, %v557
        %vm4002 = vcmp.eq.s32.totalorder %v3880, %v558
        %vm4003 = vcmp.eq.s32.totalorder %v3881, %v557
        %vm4004 = vcmp.eq.s32.totalorder %v3881, %v558
        %vm4005 = vcmp.eq.s32.totalorder %v3882, %v557
        %vm4006 = vcmp.eq.s32.totalorder %v3882, %v558
        %vm4007 = vcmp.eq.s32.totalorder %v3883, %v557
        %vm4008 = vcmp.eq.s32.totalorder %v3883, %v558
        %vm4009 = vcmp.eq.s32.totalorder %v3884, %v557
        %vm4010 = vcmp.eq.s32.totalorder %v3884, %v558
        %vm4011 = vcmp.eq.s32.totalorder %v3885, %v557
        %vm4012 = vcmp.eq.s32.totalorder %v3885, %v558
        %vm4013 = vcmp.eq.s32.totalorder %v3886, %v557
        %vm4014 = vcmp.eq.s32.totalorder %v3886, %v558
        %v4015 = vsel %vm3887, 1, 0
        %v4016 = vsel %vm3888, 1, 0
        %v4017 = vsel %vm3889, 1, 0
        %v4018 = vsel %vm3890, 1, 0
        %v4019 = vsel %vm3891, 1, 0
        %v4020 = vsel %vm3892, 1, 0
        %v4021 = vsel %vm3893, 1, 0
        %v4022 = vsel %vm3894, 1, 0
        %v4023 = vsel %vm3895, 1, 0
        %v4024 = vsel %vm3896, 1, 0
        %v4025 = vsel %vm3897, 1, 0
        %v4026 = vsel %vm3898, 1, 0
        %v4027 = vsel %vm3899, 1, 0
        %v4028 = vsel %vm3900, 1, 0
        %v4029 = vsel %vm3901, 1, 0
        %v4030 = vsel %vm3902, 1, 0
        %v4031 = vsel %vm3903, 1, 0
        %v4032 = vsel %vm3904, 1, 0
        %v4033 = vsel %vm3905, 1, 0
        %v4034 = vsel %vm3906, 1, 0
        %v4035 = vsel %vm3907, 1, 0
        %v4036 = vsel %vm3908, 1, 0
        %v4037 = vsel %vm3909, 1, 0
        %v4038 = vsel %vm3910, 1, 0
        %v4039 = vsel %vm3911, 1, 0
        %v4040 = vsel %vm3912, 1, 0
        %v4041 = vsel %vm3913, 1, 0
        %v4042 = vsel %vm3914, 1, 0
        %v4043 = vsel %vm3915, 1, 0
        %v4044 = vsel %vm3916, 1, 0
        %v4045 = vsel %vm3917, 1, 0
        %v4046 = vsel %vm3918, 1, 0
        %v4047 = vsel %vm3919, 1, 0
        %v4048 = vsel %vm3920, 1, 0
        %v4049 = vsel %vm3921, 1, 0
        %v4050 = vsel %vm3922, 1, 0
        %v4051 = vsel %vm3923, 1, 0
        %v4052 = vsel %vm3924, 1, 0
        %v4053 = vsel %vm3925, 1, 0
        %v4054 = vsel %vm3926, 1, 0
        %v4055 = vsel %vm3927, 1, 0
        %v4056 = vsel %vm3928, 1, 0
        %v4057 = vsel %vm3929, 1, 0
        %v4058 = vsel %vm3930, 1, 0
        %v4059 = vsel %vm3931, 1, 0
        %v4060 = vsel %vm3932, 1, 0
        %v4061 = vsel %vm3933, 1, 0
        %v4062 = vsel %vm3934, 1, 0
        %v4063 = vsel %vm3935, 1, 0
        %v4064 = vsel %vm3936, 1, 0
        %v4065 = vsel %vm3937, 1, 0
        %v4066 = vsel %vm3938, 1, 0
        %v4067 = vsel %vm3939, 1, 0
        %v4068 = vsel %vm3940, 1, 0
        %v4069 = vsel %vm3941, 1, 0
        %v4070 = vsel %vm3942, 1, 0
        %v4071 = vsel %vm3943, 1, 0
        %v4072 = vsel %vm3944, 1, 0
        %v4073 = vsel %vm3945, 1, 0
        %v4074 = vsel %vm3946, 1, 0
        %v4075 = vsel %vm3947, 1, 0
        %v4076 = vsel %vm3948, 1, 0
        %v4077 = vsel %vm3949, 1, 0
        %v4078 = vsel %vm3950, 1, 0
        %v4079 = vsel %vm3951, 1, 0
        %v4080 = vsel %vm3952, 1, 0
        %v4081 = vsel %vm3953, 1, 0
        %v4082 = vsel %vm3954, 1, 0
        %v4083 = vsel %vm3955, 1, 0
        %v4084 = vsel %vm3956, 1, 0
        %v4085 = vsel %vm3957, 1, 0
        %v4086 = vsel %vm3958, 1, 0
        %v4087 = vsel %vm3959, 1, 0
        %v4088 = vsel %vm3960, 1, 0
        %v4089 = vsel %vm3961, 1, 0
        %v4090 = vsel %vm3962, 1, 0
        %v4091 = vsel %vm3963, 1, 0
        %v4092 = vsel %vm3964, 1, 0
        %v4093 = vsel %vm3965, 1, 0
        %v4094 = vsel %vm3966, 1, 0
        %v4095 = vsel %vm3967, 1, 0
        %v4096 = vsel %vm3968, 1, 0
        %v4097 = vsel %vm3969, 1, 0
        %v4098 = vsel %vm3970, 1, 0
        %v4099 = vsel %vm3971, 1, 0
        %v4100 = vsel %vm3972, 1, 0
        %v4101 = vsel %vm3973, 1, 0
        %v4102 = vsel %vm3974, 1, 0
        %v4103 = vsel %vm3975, 1, 0
        %v4104 = vsel %vm3976, 1, 0
        %v4105 = vsel %vm3977, 1, 0
        %v4106 = vsel %vm3978, 1, 0
        %v4107 = vsel %vm3979, 1, 0
        %v4108 = vsel %vm3980, 1, 0
        %v4109 = vsel %vm3981, 1, 0
        %v4110 = vsel %vm3982, 1, 0
        %v4111 = vsel %vm3983, 1, 0
        %v4112 = vsel %vm3984, 1, 0
        %v4113 = vsel %vm3985, 1, 0
        %v4114 = vsel %vm3986, 1, 0
        %v4115 = vsel %vm3987, 1, 0
        %v4116 = vsel %vm3988, 1, 0
        %v4117 = vsel %vm3989, 1, 0
        %v4118 = vsel %vm3990, 1, 0
        %v4119 = vsel %vm3991, 1, 0
        %v4120 = vsel %vm3992, 1, 0
        %v4121 = vsel %vm3993, 1, 0
        %v4122 = vsel %vm3994, 1, 0
        %v4123 = vsel %vm3995, 1, 0
        %v4124 = vsel %vm3996, 1, 0
        %v4125 = vsel %vm3997, 1, 0
        %v4126 = vsel %vm3998, 1, 0
        %v4127 = vsel %vm3999, 1, 0
        %v4128 = vsel %vm4000, 1, 0
        %v4129 = vsel %vm4001, 1, 0
        %v4130 = vsel %vm4002, 1, 0
        %v4131 = vsel %vm4003, 1, 0
        %v4132 = vsel %vm4004, 1, 0
        %v4133 = vsel %vm4005, 1, 0
        %v4134 = vsel %vm4006, 1, 0
        %v4135 = vsel %vm4007, 1, 0
        %v4136 = vsel %vm4008, 1, 0
        %v4137 = vsel %vm4009, 1, 0
        %v4138 = vsel %vm4010, 1, 0
        %v4139 = vsel %vm4011, 1, 0
        %v4140 = vsel %vm4012, 1, 0
        %v4141 = vsel %vm4013, 1, 0
        %v4142 = vsel %vm4014, 1, 0
        %v4143 = vcvt.s32.f32 %v4015
        %v4144 = vcvt.s32.f32 %v4016
        %v4145 = vcvt.s32.f32 %v4017
        %v4146 = vcvt.s32.f32 %v4018
        %v4147 = vcvt.s32.f32 %v4019
        %v4148 = vcvt.s32.f32 %v4020
        %v4149 = vcvt.s32.f32 %v4021
        %v4150 = vcvt.s32.f32 %v4022
        %v4151 = vcvt.s32.f32 %v4023
        %v4152 = vcvt.s32.f32 %v4024
        %v4153 = vcvt.s32.f32 %v4025
        %v4154 = vcvt.s32.f32 %v4026
        %v4155 = vcvt.s32.f32 %v4027
        %v4156 = vcvt.s32.f32 %v4028
        %v4157 = vcvt.s32.f32 %v4029
        %v4158 = vcvt.s32.f32 %v4030
        %v4159 = vcvt.s32.f32 %v4031
        %v4160 = vcvt.s32.f32 %v4032
        %v4161 = vcvt.s32.f32 %v4033
        %v4162 = vcvt.s32.f32 %v4034
        %v4163 = vcvt.s32.f32 %v4035
        %v4164 = vcvt.s32.f32 %v4036
        %v4165 = vcvt.s32.f32 %v4037
        %v4166 = vcvt.s32.f32 %v4038
        %v4167 = vcvt.s32.f32 %v4039
        %v4168 = vcvt.s32.f32 %v4040
        %v4169 = vcvt.s32.f32 %v4041
        %v4170 = vcvt.s32.f32 %v4042
        %v4171 = vcvt.s32.f32 %v4043
        %v4172 = vcvt.s32.f32 %v4044
        %v4173 = vcvt.s32.f32 %v4045
        %v4174 = vcvt.s32.f32 %v4046
        %v4175 = vcvt.s32.f32 %v4047
        %v4176 = vcvt.s32.f32 %v4048
        %v4177 = vcvt.s32.f32 %v4049
        %v4178 = vcvt.s32.f32 %v4050
        %v4179 = vcvt.s32.f32 %v4051
        %v4180 = vcvt.s32.f32 %v4052
        %v4181 = vcvt.s32.f32 %v4053
        %v4182 = vcvt.s32.f32 %v4054
        %v4183 = vcvt.s32.f32 %v4055
        %v4184 = vcvt.s32.f32 %v4056
        %v4185 = vcvt.s32.f32 %v4057
        %v4186 = vcvt.s32.f32 %v4058
        %v4187 = vcvt.s32.f32 %v4059
        %v4188 = vcvt.s32.f32 %v4060
        %v4189 = vcvt.s32.f32 %v4061
        %v4190 = vcvt.s32.f32 %v4062
        %v4191 = vcvt.s32.f32 %v4063
        %v4192 = vcvt.s32.f32 %v4064
        %v4193 = vcvt.s32.f32 %v4065
        %v4194 = vcvt.s32.f32 %v4066
        %v4195 = vcvt.s32.f32 %v4067
        %v4196 = vcvt.s32.f32 %v4068
        %v4197 = vcvt.s32.f32 %v4069
        %v4198 = vcvt.s32.f32 %v4070
        %v4199 = vcvt.s32.f32 %v4071
        %v4200 = vcvt.s32.f32 %v4072
        %v4201 = vcvt.s32.f32 %v4073
        %v4202 = vcvt.s32.f32 %v4074
        %v4203 = vcvt.s32.f32 %v4075
        %v4204 = vcvt.s32.f32 %v4076
        %v4205 = vcvt.s32.f32 %v4077
        %v4206 = vcvt.s32.f32 %v4078
        %v4207 = vcvt.s32.f32 %v4079
        %v4208 = vcvt.s32.f32 %v4080
        %v4209 = vcvt.s32.f32 %v4081
        %v4210 = vcvt.s32.f32 %v4082
        %v4211 = vcvt.s32.f32 %v4083
        %v4212 = vcvt.s32.f32 %v4084
        %v4213 = vcvt.s32.f32 %v4085
        %v4214 = vcvt.s32.f32 %v4086
        %v4215 = vcvt.s32.f32 %v4087
        %v4216 = vcvt.s32.f32 %v4088
        %v4217 = vcvt.s32.f32 %v4089
        %v4218 = vcvt.s32.f32 %v4090
        %v4219 = vcvt.s32.f32 %v4091
        %v4220 = vcvt.s32.f32 %v4092
        %v4221 = vcvt.s32.f32 %v4093
        %v4222 = vcvt.s32.f32 %v4094
        %v4223 = vcvt.s32.f32 %v4095
        %v4224 = vcvt.s32.f32 %v4096
        %v4225 = vcvt.s32.f32 %v4097
        %v4226 = vcvt.s32.f32 %v4098
        %v4227 = vcvt.s32.f32 %v4099
        %v4228 = vcvt.s32.f32 %v4100
        %v4229 = vcvt.s32.f32 %v4101
        %v4230 = vcvt.s32.f32 %v4102
        %v4231 = vcvt.s32.f32 %v4103
        %v4232 = vcvt.s32.f32 %v4104
        %v4233 = vcvt.s32.f32 %v4105
        %v4234 = vcvt.s32.f32 %v4106
        %v4235 = vcvt.s32.f32 %v4107
        %v4236 = vcvt.s32.f32 %v4108
        %v4237 = vcvt.s32.f32 %v4109
        %v4238 = vcvt.s32.f32 %v4110
        %v4239 = vcvt.s32.f32 %v4111
        %v4240 = vcvt.s32.f32 %v4112
        %v4241 = vcvt.s32.f32 %v4113
        %v4242 = vcvt.s32.f32 %v4114
        %v4243 = vcvt.s32.f32 %v4115
        %v4244 = vcvt.s32.f32 %v4116
        %v4245 = vcvt.s32.f32 %v4117
        %v4246 = vcvt.s32.f32 %v4118
        %v4247 = vcvt.s32.f32 %v4119
        %v4248 = vcvt.s32.f32 %v4120
        %v4249 = vcvt.s32.f32 %v4121
        %v4250 = vcvt.s32.f32 %v4122
        %v4251 = vcvt.s32.f32 %v4123
        %v4252 = vcvt.s32.f32 %v4124
        %v4253 = vcvt.s32.f32 %v4125
        %v4254 = vcvt.s32.f32 %v4126
        %v4255 = vcvt.s32.f32 %v4127
        %v4256 = vcvt.s32.f32 %v4128
        %v4257 = vcvt.s32.f32 %v4129
        %v4258 = vcvt.s32.f32 %v4130
        %v4259 = vcvt.s32.f32 %v4131
        %v4260 = vcvt.s32.f32 %v4132
        %v4261 = vcvt.s32.f32 %v4133
        %v4262 = vcvt.s32.f32 %v4134
        %v4263 = vcvt.s32.f32 %v4135
        %v4264 = vcvt.s32.f32 %v4136
        %v4265 = vcvt.s32.f32 %v4137
        %v4266 = vcvt.s32.f32 %v4138
        %v4267 = vcvt.s32.f32 %v4139
        %v4268 = vcvt.s32.f32 %v4140
        %v4269 = vcvt.s32.f32 %v4141
        %v4270 = vcvt.s32.f32 %v4142
        %v4271 = vpack.c.bf16 %v4145, %v4143
        %v4272 = vpack.c.bf16 %v4146, %v4144
        %v4273 = vpack.c.bf16 %v4149, %v4147
        %v4274 = vpack.c.bf16 %v4150, %v4148
        %v4275 = vpack.c.bf16 %v4153, %v4151
        %v4276 = vpack.c.bf16 %v4154, %v4152
        %v4277 = vpack.c.bf16 %v4157, %v4155
        %v4278 = vpack.c.bf16 %v4158, %v4156
        %v4279 = vpack.c.bf16 %v4161, %v4159
        %v4280 = vpack.c.bf16 %v4162, %v4160
        %v4281 = vpack.c.bf16 %v4165, %v4163
        %v4282 = vpack.c.bf16 %v4166, %v4164
        %v4283 = vpack.c.bf16 %v4169, %v4167
        %v4284 = vpack.c.bf16 %v4170, %v4168
        %v4285 = vpack.c.bf16 %v4173, %v4171
        %v4286 = vpack.c.bf16 %v4174, %v4172
        %v4287 = vpack.c.bf16 %v4177, %v4175
        %v4288 = vpack.c.bf16 %v4178, %v4176
        %v4289 = vpack.c.bf16 %v4181, %v4179
        %v4290 = vpack.c.bf16 %v4182, %v4180
        %v4291 = vpack.c.bf16 %v4185, %v4183
        %v4292 = vpack.c.bf16 %v4186, %v4184
        %v4293 = vpack.c.bf16 %v4189, %v4187
        %v4294 = vpack.c.bf16 %v4190, %v4188
        %v4295 = vpack.c.bf16 %v4193, %v4191
        %v4296 = vpack.c.bf16 %v4194, %v4192
        %v4297 = vpack.c.bf16 %v4197, %v4195
        %v4298 = vpack.c.bf16 %v4198, %v4196
        %v4299 = vpack.c.bf16 %v4201, %v4199
        %v4300 = vpack.c.bf16 %v4202, %v4200
        %v4301 = vpack.c.bf16 %v4205, %v4203
        %v4302 = vpack.c.bf16 %v4206, %v4204
        %v4303 = vpack.c.bf16 %v4209, %v4207
        %v4304 = vpack.c.bf16 %v4210, %v4208
        %v4305 = vpack.c.bf16 %v4213, %v4211
        %v4306 = vpack.c.bf16 %v4214, %v4212
        %v4307 = vpack.c.bf16 %v4217, %v4215
        %v4308 = vpack.c.bf16 %v4218, %v4216
        %v4309 = vpack.c.bf16 %v4221, %v4219
        %v4310 = vpack.c.bf16 %v4222, %v4220
        %v4311 = vpack.c.bf16 %v4225, %v4223
        %v4312 = vpack.c.bf16 %v4226, %v4224
        %v4313 = vpack.c.bf16 %v4229, %v4227
        %v4314 = vpack.c.bf16 %v4230, %v4228
        %v4315 = vpack.c.bf16 %v4233, %v4231
        %v4316 = vpack.c.bf16 %v4234, %v4232
        %v4317 = vpack.c.bf16 %v4237, %v4235
        %v4318 = vpack.c.bf16 %v4238, %v4236
        %v4319 = vpack.c.bf16 %v4241, %v4239
        %v4320 = vpack.c.bf16 %v4242, %v4240
        %v4321 = vpack.c.bf16 %v4245, %v4243
        %v4322 = vpack.c.bf16 %v4246, %v4244
        %v4323 = vpack.c.bf16 %v4249, %v4247
        %v4324 = vpack.c.bf16 %v4250, %v4248
        %v4325 = vpack.c.bf16 %v4253, %v4251
        %v4326 = vpack.c.bf16 %v4254, %v4252
        %v4327 = vpack.c.bf16 %v4257, %v4255
        %v4328 = vpack.c.bf16 %v4258, %v4256
        %v4329 = vpack.c.bf16 %v4261, %v4259
        %v4330 = vpack.c.bf16 %v4262, %v4260
        %v4331 = vpack.c.bf16 %v4265, %v4263
        %v4332 = vpack.c.bf16 %v4266, %v4264
        %v4333 = vpack.c.bf16 %v4269, %v4267
        %v4334 = vpack.c.bf16 %v4270, %v4268
        %v4399 = vrot.slane %v4271, 2
        %v4400 = vrot.slane %v4272, 2
        %v4401 = vrot.slane %v4273, 2
        %v4402 = vrot.slane %v4274, 2
        %v4403 = vrot.slane %v4275, 2
        %v4404 = vrot.slane %v4276, 2
        %v4405 = vrot.slane %v4277, 2
        %v4406 = vrot.slane %v4278, 2
        %v4407 = vrot.slane %v4279, 2
        %v4408 = vrot.slane %v4280, 2
        %v4409 = vrot.slane %v4281, 2
        %v4410 = vrot.slane %v4282, 2
        %v4411 = vrot.slane %v4283, 2
        %v4412 = vrot.slane %v4284, 2
        %v4413 = vrot.slane %v4285, 2
        %v4414 = vrot.slane %v4286, 2
        %v4415 = vrot.slane %v4287, 2
        %v4416 = vrot.slane %v4288, 2
        %v4417 = vrot.slane %v4289, 2
        %v4418 = vrot.slane %v4290, 2
        %v4419 = vrot.slane %v4291, 2
        %v4420 = vrot.slane %v4292, 2
        %v4421 = vrot.slane %v4293, 2
        %v4422 = vrot.slane %v4294, 2
        %v4423 = vrot.slane %v4295, 2
        %v4424 = vrot.slane %v4296, 2
        %v4425 = vrot.slane %v4297, 2
        %v4426 = vrot.slane %v4298, 2
        %v4427 = vrot.slane %v4299, 2
        %v4428 = vrot.slane %v4300, 2
        %v4429 = vrot.slane %v4301, 2
        %v4430 = vrot.slane %v4302, 2
        %v4431 = vrot.slane %v4303, 2
        %v4432 = vrot.slane %v4304, 2
        %v4433 = vrot.slane %v4305, 2
        %v4434 = vrot.slane %v4306, 2
        %v4435 = vrot.slane %v4307, 2
        %v4436 = vrot.slane %v4308, 2
        %v4437 = vrot.slane %v4309, 2
        %v4438 = vrot.slane %v4310, 2
        %v4439 = vrot.slane %v4311, 2
        %v4440 = vrot.slane %v4312, 2
        %v4441 = vrot.slane %v4313, 2
        %v4442 = vrot.slane %v4314, 2
        %v4443 = vrot.slane %v4315, 2
        %v4444 = vrot.slane %v4316, 2
        %v4445 = vrot.slane %v4317, 2
        %v4446 = vrot.slane %v4318, 2
        %v4447 = vrot.slane %v4319, 2
        %v4448 = vrot.slane %v4320, 2
        %v4449 = vrot.slane %v4321, 2
        %v4450 = vrot.slane %v4322, 2
        %v4451 = vrot.slane %v4323, 2
        %v4452 = vrot.slane %v4324, 2
        %v4453 = vrot.slane %v4325, 2
        %v4454 = vrot.slane %v4326, 2
        %v4455 = vrot.slane %v4327, 2
        %v4456 = vrot.slane %v4328, 2
        %v4457 = vrot.slane %v4329, 2
        %v4458 = vrot.slane %v4330, 2
        %v4459 = vrot.slane %v4331, 2
        %v4460 = vrot.slane %v4332, 2
        %v4461 = vrot.slane %v4333, 2
        %v4462 = vrot.slane %v4334, 2
        %v4527 = vadd.bf16 %v3759, %v4399
        %v4528 = vadd.bf16 %v3760, %v4400
        %v4529 = vadd.bf16 %v3761, %v4401
        %v4530 = vadd.bf16 %v3762, %v4402
        %v4531 = vadd.bf16 %v3763, %v4403
        %v4532 = vadd.bf16 %v3764, %v4404
        %v4533 = vadd.bf16 %v3765, %v4405
        %v4534 = vadd.bf16 %v3766, %v4406
        %v4535 = vadd.bf16 %v3767, %v4407
        %v4536 = vadd.bf16 %v3768, %v4408
        %v4537 = vadd.bf16 %v3769, %v4409
        %v4538 = vadd.bf16 %v3770, %v4410
        %v4539 = vadd.bf16 %v3771, %v4411
        %v4540 = vadd.bf16 %v3772, %v4412
        %v4541 = vadd.bf16 %v3773, %v4413
        %v4542 = vadd.bf16 %v3774, %v4414
        %v4543 = vadd.bf16 %v3775, %v4415
        %v4544 = vadd.bf16 %v3776, %v4416
        %v4545 = vadd.bf16 %v3777, %v4417
        %v4546 = vadd.bf16 %v3778, %v4418
        %v4547 = vadd.bf16 %v3779, %v4419
        %v4548 = vadd.bf16 %v3780, %v4420
        %v4549 = vadd.bf16 %v3781, %v4421
        %v4550 = vadd.bf16 %v3782, %v4422
        %v4551 = vadd.bf16 %v3783, %v4423
        %v4552 = vadd.bf16 %v3784, %v4424
        %v4553 = vadd.bf16 %v3785, %v4425
        %v4554 = vadd.bf16 %v3786, %v4426
        %v4555 = vadd.bf16 %v3787, %v4427
        %v4556 = vadd.bf16 %v3788, %v4428
        %v4557 = vadd.bf16 %v3789, %v4429
        %v4558 = vadd.bf16 %v3790, %v4430
        %v4559 = vadd.bf16 %v3791, %v4431
        %v4560 = vadd.bf16 %v3792, %v4432
        %v4561 = vadd.bf16 %v3793, %v4433
        %v4562 = vadd.bf16 %v3794, %v4434
        %v4563 = vadd.bf16 %v3795, %v4435
        %v4564 = vadd.bf16 %v3796, %v4436
        %v4565 = vadd.bf16 %v3797, %v4437
        %v4566 = vadd.bf16 %v3798, %v4438
        %v4567 = vadd.bf16 %v3799, %v4439
        %v4568 = vadd.bf16 %v3800, %v4440
        %v4569 = vadd.bf16 %v3801, %v4441
        %v4570 = vadd.bf16 %v3802, %v4442
        %v4571 = vadd.bf16 %v3803, %v4443
        %v4572 = vadd.bf16 %v3804, %v4444
        %v4573 = vadd.bf16 %v3805, %v4445
        %v4574 = vadd.bf16 %v3806, %v4446
        %v4575 = vadd.bf16 %v3807, %v4447
        %v4576 = vadd.bf16 %v3808, %v4448
        %v4577 = vadd.bf16 %v3809, %v4449
        %v4578 = vadd.bf16 %v3810, %v4450
        %v4579 = vadd.bf16 %v3811, %v4451
        %v4580 = vadd.bf16 %v3812, %v4452
        %v4581 = vadd.bf16 %v3813, %v4453
        %v4582 = vadd.bf16 %v3814, %v4454
        %v4583 = vadd.bf16 %v3815, %v4455
        %v4584 = vadd.bf16 %v3816, %v4456
        %v4585 = vadd.bf16 %v3817, %v4457
        %v4586 = vadd.bf16 %v3818, %v4458
        %v4587 = vadd.bf16 %v3819, %v4459
        %v4588 = vadd.bf16 %v3820, %v4460
        %v4589 = vadd.bf16 %v3821, %v4461
        %v4590 = vadd.bf16 %v3822, %v4462
        %v4591 = vld [vmem:[%s1] sm:$0xf]
        %v4592 = vld [vmem:[%s1 + $0x4] sm:$0xf]
        %v4593 = vld [vmem:[%s1 + $0x8] sm:$0xf]
        %v4594 = vld [vmem:[%s1 + $0xc] sm:$0xf]
        %v4595 = vld [vmem:[%s1 + $0x10] sm:$0xf]
        %v4596 = vld [vmem:[%s1 + $0x14] sm:$0xf]
        %v4597 = vld [vmem:[%s1 + $0x18] sm:$0xf]
        %v4598 = vld [vmem:[%s1 + $0x1c] sm:$0xf]
        %v4599 = vld [vmem:[%s1 + $0x20] sm:$0xf]
        %v4600 = vld [vmem:[%s1 + $0x24] sm:$0xf]
        %v4601 = vld [vmem:[%s1 + $0x28] sm:$0xf]
        %v4602 = vld [vmem:[%s1 + $0x2c] sm:$0xf]
        %v4603 = vld [vmem:[%s1 + $0x30] sm:$0xf]
        %v4604 = vld [vmem:[%s1 + $0x34] sm:$0xf]
        %v4605 = vld [vmem:[%s1 + $0x38] sm:$0xf]
        %v4606 = vld [vmem:[%s1 + $0x3c] sm:$0xf]
        %v4607 = vld [vmem:[%s1 + $0x40] sm:$0xf]
        %v4608 = vld [vmem:[%s1 + $0x44] sm:$0xf]
        %v4609 = vld [vmem:[%s1 + $0x48] sm:$0x7]
        %v4674 = vunpack.c.l.b16 %v4527
        %v4675 = vunpack.c.l.b16 %v4528
        %v4676 = vunpack.c.l.b16 %v4529
        %v4677 = vunpack.c.l.b16 %v4530
        %v4678 = vunpack.c.l.b16 %v4531
        %v4679 = vunpack.c.l.b16 %v4532
        %v4680 = vunpack.c.l.b16 %v4533
        %v4681 = vunpack.c.l.b16 %v4534
        %v4682 = vunpack.c.l.b16 %v4535
        %v4683 = vunpack.c.l.b16 %v4536
        %v4684 = vunpack.c.l.b16 %v4537
        %v4685 = vunpack.c.l.b16 %v4538
        %v4686 = vunpack.c.l.b16 %v4539
        %v4687 = vunpack.c.l.b16 %v4540
        %v4688 = vunpack.c.l.b16 %v4541
        %v4689 = vunpack.c.l.b16 %v4542
        %v4690 = vunpack.c.l.b16 %v4543
        %v4691 = vunpack.c.l.b16 %v4544
        %v4692 = vunpack.c.l.b16 %v4545
        %v4693 = vunpack.c.l.b16 %v4546
        %v4694 = vunpack.c.l.b16 %v4547
        %v4695 = vunpack.c.l.b16 %v4548
        %v4696 = vunpack.c.l.b16 %v4549
        %v4697 = vunpack.c.l.b16 %v4550
        %v4698 = vunpack.c.l.b16 %v4551
        %v4699 = vunpack.c.l.b16 %v4552
        %v4700 = vunpack.c.l.b16 %v4553
        %v4701 = vunpack.c.l.b16 %v4554
        %v4702 = vunpack.c.l.b16 %v4555
        %v4703 = vunpack.c.l.b16 %v4556
        %v4704 = vunpack.c.l.b16 %v4557
        %v4705 = vunpack.c.l.b16 %v4558
        %v4706 = vunpack.c.l.b16 %v4559
        %v4707 = vunpack.c.l.b16 %v4560
        %v4708 = vunpack.c.l.b16 %v4561
        %v4709 = vunpack.c.l.b16 %v4562
        %v4710 = vunpack.c.l.b16 %v4563
        %v4711 = vunpack.c.l.b16 %v4564
        %v4712 = vunpack.c.l.b16 %v4565
        %v4713 = vunpack.c.l.b16 %v4566
        %v4714 = vunpack.c.l.b16 %v4567
        %v4715 = vunpack.c.l.b16 %v4568
        %v4716 = vunpack.c.l.b16 %v4569
        %v4717 = vunpack.c.l.b16 %v4570
        %v4718 = vunpack.c.l.b16 %v4571
        %v4719 = vunpack.c.l.b16 %v4572
        %v4720 = vunpack.c.l.b16 %v4573
        %v4721 = vunpack.c.l.b16 %v4574
        %v4722 = vunpack.c.l.b16 %v4575
        %v4723 = vunpack.c.l.b16 %v4576
        %v4724 = vunpack.c.l.b16 %v4577
        %v4725 = vunpack.c.l.b16 %v4578
        %v4726 = vunpack.c.l.b16 %v4579
        %v4727 = vunpack.c.l.b16 %v4580
        %v4728 = vunpack.c.l.b16 %v4581
        %v4729 = vunpack.c.l.b16 %v4582
        %v4730 = vunpack.c.l.b16 %v4583
        %v4731 = vunpack.c.l.b16 %v4584
        %v4732 = vunpack.c.l.b16 %v4585
        %v4733 = vunpack.c.l.b16 %v4586
        %v4734 = vunpack.c.l.b16 %v4587
        %v4735 = vunpack.c.l.b16 %v4588
        %v4736 = vunpack.c.l.b16 %v4589
        %v4737 = vunpack.c.l.b16 %v4590
        %v4738 = vpack.c.b16 %v4676, %v4674
        %v4739 = vpack.c.b16 %v4677, %v4675
        %v4740 = vpack.c.b16 %v4680, %v4678
        %v4741 = vpack.c.b16 %v4681, %v4679
        %v4742 = vpack.c.b16 %v4684, %v4682
        %v4743 = vpack.c.b16 %v4685, %v4683
        %v4744 = vpack.c.b16 %v4688, %v4686
        %v4745 = vpack.c.b16 %v4689, %v4687
        %v4746 = vpack.c.b16 %v4692, %v4690
        %v4747 = vpack.c.b16 %v4693, %v4691
        %v4748 = vpack.c.b16 %v4696, %v4694
        %v4749 = vpack.c.b16 %v4697, %v4695
        %v4750 = vpack.c.b16 %v4700, %v4698
        %v4751 = vpack.c.b16 %v4701, %v4699
        %v4752 = vpack.c.b16 %v4704, %v4702
        %v4753 = vpack.c.b16 %v4705, %v4703
        %v4754 = vpack.c.b16 %v4708, %v4706
        %v4755 = vpack.c.b16 %v4709, %v4707
        %v4756 = vpack.c.b16 %v4712, %v4710
        %v4757 = vpack.c.b16 %v4713, %v4711
        %v4758 = vpack.c.b16 %v4716, %v4714
        %v4759 = vpack.c.b16 %v4717, %v4715
        %v4760 = vpack.c.b16 %v4720, %v4718
        %v4761 = vpack.c.b16 %v4721, %v4719
        %v4762 = vpack.c.b16 %v4724, %v4722
        %v4763 = vpack.c.b16 %v4725, %v4723
        %v4764 = vpack.c.b16 %v4728, %v4726
        %v4765 = vpack.c.b16 %v4729, %v4727
        %v4766 = vpack.c.b16 %v4732, %v4730
        %v4767 = vpack.c.b16 %v4733, %v4731
        %v4768 = vpack.c.b16 %v4736, %v4734
        %v4769 = vpack.c.b16 %v4737, %v4735
        %v4805 = vunpack.c.l.b16 %v4591
        %v4806 = vunpack.c.l.b16 %v4592
        %v4807 = vunpack.c.l.b16 %v4593
        %v4808 = vunpack.c.l.b16 %v4594
        %v4809 = vunpack.c.l.b16 %v4595
        %v4810 = vunpack.c.l.b16 %v4596
        %v4811 = vunpack.c.l.b16 %v4597
        %v4812 = vunpack.c.l.b16 %v4598
        %v4813 = vunpack.c.l.b16 %v4599
        %v4814 = vunpack.c.l.b16 %v4600
        %v4815 = vunpack.c.l.b16 %v4601
        %v4816 = vunpack.c.l.b16 %v4602
        %v4817 = vunpack.c.l.b16 %v4603
        %v4818 = vunpack.c.l.b16 %v4604
        %v4819 = vunpack.c.l.b16 %v4605
        %v4820 = vunpack.c.l.b16 %v4606
        %v4821 = vunpack.c.l.b16 %v4607
        %v4822 = vunpack.c.l.b16 %v4608
        %v4823 = vunpack.c.l.b16 %v4609
        %v4824 = vpack.c.b16 %v4806, %v4805
        %v4825 = vpack.c.b16 %v4808, %v4807
        %v4826 = vpack.c.b16 %v4810, %v4809
        %v4827 = vpack.c.b16 %v4812, %v4811
        %v4828 = vpack.c.b16 %v4814, %v4813
        %v4829 = vpack.c.b16 %v4816, %v4815
        %v4830 = vpack.c.b16 %v4818, %v4817
        %v4831 = vpack.c.b16 %v4820, %v4819
        %v4832 = vpack.c.b16 %v4822, %v4821
        %v4833 = vpack.c.b16 %v4823, %v4823
        %vm4843 = vcmask 179200
        %v4845 = vsel %vm4843, %v4739, 0
        %v4848 = vsel %vm4843, %v4741, 0
        %v4851 = vsel %vm4843, %v4743, 0
        %v4854 = vsel %vm4843, %v4745, 0
        %v4857 = vsel %vm4843, %v4747, 0
        %v4860 = vsel %vm4843, %v4749, 0
        %v4863 = vsel %vm4843, %v4751, 0
        %v4866 = vsel %vm4843, %v4753, 0
        %v4869 = vsel %vm4843, %v4755, 0
        %v4872 = vsel %vm4843, %v4757, 0
        %v4875 = vsel %vm4843, %v4759, 0
        %v4878 = vsel %vm4843, %v4761, 0
        %v4881 = vsel %vm4843, %v4763, 0
        %v4884 = vsel %vm4843, %v4765, 0
        %v4887 = vsel %vm4843, %v4767, 0
        %v4890 = vsel %vm4843, %v4769, 0
        %vm4892 = vcmask 1042432
        %v4894 = vsel %vm4892, %v4833, 0
        %4896 = vmatprep.subr.bf16.mxu0 0
        %4897 = vmatpush1.bf16.msra.mxu0 %v4831
        %4898 = vmatprep.subr.bf16.mxu0 0
        %4899 = vmatpush1.bf16.msra.mxu0 %v4830
        %4900 = vmatprep.subr.bf16.mxu0 0
        %4901 = vmatpush1.bf16.msra.mxu0 %v4829
        %4902 = vmatprep.subr.bf16.mxu0 0
        %4903 = vmatpush1.bf16.msra.mxu0 %v4828
        %4904 = vmatprep.subr.bf16.mxu0 0
        %4905 = vmatpush1.bf16.msra.mxu0 %v4827
        %4906 = vmatprep.subr.bf16.mxu0 0
        %4907 = vmatpush1.bf16.msra.mxu0 %v4826
        %4908 = vmatprep.subr.bf16.mxu0 0
        %4909 = vmatpush1.bf16.msra.mxu0 %v4825
        %4910 = vmatprep.subr.bf16.mxu0 0
        %4911 = vmatpush1.bf16.msra.mxu0 %v4824
        %4912 = vmatprep.subr.bf16.mxu0 0
        %4913 = vmatpush2.bf16.msra.mxu0 0
        %4914 = vmatprep.subr.bf16.mxu0 0
        %4915 = vmatpush2.bf16.msra.mxu0 0
        %4916 = vmatprep.subr.bf16.mxu0 0
        %4917 = vmatpush2.bf16.msra.mxu0 0
        %4918 = vmatprep.subr.bf16.mxu0 0
        %4919 = vmatpush2.bf16.msra.mxu0 0
        %4920 = vmatprep.subr.bf16.mxu0 0
        %4921 = vmatpush2.bf16.msra.mxu0 0
        %4922 = vmatprep.subr.bf16.mxu0 0
        %4923 = vmatpush2.bf16.msra.mxu0 0
        %4924 = vmatprep.subr.bf16.mxu0 0
        %4925 = vmatpush2.bf16.msra.mxu0 %v4894
        %4926 = vmatprep.subr.bf16.mxu0 0
        %4927 = vmatpush2.bf16.msra.mxu0 %v4832
        %4928 = vmatprep.mubr.bf16.mxu0 %v4845
        %4929 = vmatmul.mubr.bf16.gmra.mxu0 %v4738
        %v4930 = vpop.f32.mrf.mxu0
        %v4931 = vadd.f32 0.0, %v4930
        %v4932 = vpop.f32.mrf.mxu0
        %v4933 = vpop.f32.mrf.mxu0
        %v4934 = vadd.f32 0.0, %v4933
        %v4935 = vpop.f32.mrf.mxu0
        %4936 = vmatprep.mubr.bf16.mxu0 %v4848
        %4937 = vmatmul.mubr.bf16.gmra.mxu0 %v4740
        %v4938 = vpop.f32.mrf.mxu0
        %v4939 = vadd.f32 0.0, %v4938
        %v4940 = vpop.f32.mrf.mxu0
        %v4941 = vpop.f32.mrf.mxu0
        %v4942 = vadd.f32 0.0, %v4941
        %v4943 = vpop.f32.mrf.mxu0
        %4944 = vmatprep.mubr.bf16.mxu0 %v4851
        %4945 = vmatmul.mubr.bf16.gmra.mxu0 %v4742
        %v4946 = vpop.f32.mrf.mxu0
        %v4947 = vadd.f32 0.0, %v4946
        %v4948 = vpop.f32.mrf.mxu0
        %v4949 = vpop.f32.mrf.mxu0
        %v4950 = vadd.f32 0.0, %v4949
        %v4951 = vpop.f32.mrf.mxu0
        %4952 = vmatprep.mubr.bf16.mxu0 %v4854
        %4953 = vmatmul.mubr.bf16.gmra.mxu0 %v4744
        %v4954 = vpop.f32.mrf.mxu0
        %v4955 = vadd.f32 0.0, %v4954
        %v4956 = vpop.f32.mrf.mxu0
        %v4957 = vpop.f32.mrf.mxu0
        %v4958 = vadd.f32 0.0, %v4957
        %v4959 = vpop.f32.mrf.mxu0
        %4960 = vmatprep.mubr.bf16.mxu0 %v4857
        %4961 = vmatmul.mubr.bf16.gmra.mxu0 %v4746
        %v4962 = vpop.f32.mrf.mxu0
        %v4963 = vadd.f32 0.0, %v4962
        %v4964 = vpop.f32.mrf.mxu0
        %v4965 = vpop.f32.mrf.mxu0
        %v4966 = vadd.f32 0.0, %v4965
        %v4967 = vpop.f32.mrf.mxu0
        %4968 = vmatprep.mubr.bf16.mxu0 %v4860
        %4969 = vmatmul.mubr.bf16.gmra.mxu0 %v4748
        %v4970 = vpop.f32.mrf.mxu0
        %v4971 = vadd.f32 0.0, %v4970
        %v4972 = vpop.f32.mrf.mxu0
        %v4973 = vpop.f32.mrf.mxu0
        %v4974 = vadd.f32 0.0, %v4973
        %v4975 = vpop.f32.mrf.mxu0
        %4976 = vmatprep.mubr.bf16.mxu0 %v4863
        %4977 = vmatmul.mubr.bf16.gmra.mxu0 %v4750
        %v4978 = vpop.f32.mrf.mxu0
        %v4979 = vadd.f32 0.0, %v4978
        %v4980 = vpop.f32.mrf.mxu0
        %v4981 = vpop.f32.mrf.mxu0
        %v4982 = vadd.f32 0.0, %v4981
        %v4983 = vpop.f32.mrf.mxu0
        %4984 = vmatprep.mubr.bf16.mxu0 %v4866
        %4985 = vmatmul.mubr.bf16.gmra.mxu0 %v4752
        %v4986 = vpop.f32.mrf.mxu0
        %v4987 = vadd.f32 0.0, %v4986
        %v4988 = vpop.f32.mrf.mxu0
        %v4989 = vpop.f32.mrf.mxu0
        %v4990 = vadd.f32 0.0, %v4989
        %v4991 = vpop.f32.mrf.mxu0
        %4992 = vmatprep.mubr.bf16.mxu0 %v4869
        %4993 = vmatmul.mubr.bf16.gmra.mxu0 %v4754
        %v4994 = vpop.f32.mrf.mxu0
        %v4995 = vadd.f32 0.0, %v4994
        %v4996 = vpop.f32.mrf.mxu0
        %v4997 = vpop.f32.mrf.mxu0
        %v4998 = vadd.f32 0.0, %v4997
        %v4999 = vpop.f32.mrf.mxu0
        %5000 = vmatprep.mubr.bf16.mxu0 %v4872
        %5001 = vmatmul.mubr.bf16.gmra.mxu0 %v4756
        %v5002 = vpop.f32.mrf.mxu0
        %v5003 = vadd.f32 0.0, %v5002
        %v5004 = vpop.f32.mrf.mxu0
        %v5005 = vpop.f32.mrf.mxu0
        %v5006 = vadd.f32 0.0, %v5005
        %v5007 = vpop.f32.mrf.mxu0
        %5008 = vmatprep.mubr.bf16.mxu0 %v4875
        %5009 = vmatmul.mubr.bf16.gmra.mxu0 %v4758
        %v5010 = vpop.f32.mrf.mxu0
        %v5011 = vadd.f32 0.0, %v5010
        %v5012 = vpop.f32.mrf.mxu0
        %v5013 = vpop.f32.mrf.mxu0
        %v5014 = vadd.f32 0.0, %v5013
        %v5015 = vpop.f32.mrf.mxu0
        %5016 = vmatprep.mubr.bf16.mxu0 %v4878
        %5017 = vmatmul.mubr.bf16.gmra.mxu0 %v4760
        %v5018 = vpop.f32.mrf.mxu0
        %v5019 = vadd.f32 0.0, %v5018
        %v5020 = vpop.f32.mrf.mxu0
        %v5021 = vpop.f32.mrf.mxu0
        %v5022 = vadd.f32 0.0, %v5021
        %v5023 = vpop.f32.mrf.mxu0
        %5024 = vmatprep.mubr.bf16.mxu0 %v4881
        %5025 = vmatmul.mubr.bf16.gmra.mxu0 %v4762
        %v5026 = vpop.f32.mrf.mxu0
        %v5027 = vadd.f32 0.0, %v5026
        %v5028 = vpop.f32.mrf.mxu0
        %v5029 = vpop.f32.mrf.mxu0
        %v5030 = vadd.f32 0.0, %v5029
        %v5031 = vpop.f32.mrf.mxu0
        %5032 = vmatprep.mubr.bf16.mxu0 %v4884
        %5033 = vmatmul.mubr.bf16.gmra.mxu0 %v4764
        %v5034 = vpop.f32.mrf.mxu0
        %v5035 = vadd.f32 0.0, %v5034
        %v5036 = vpop.f32.mrf.mxu0
        %v5037 = vpop.f32.mrf.mxu0
        %v5038 = vadd.f32 0.0, %v5037
        %v5039 = vpop.f32.mrf.mxu0
        %5040 = vmatprep.mubr.bf16.mxu0 %v4887
        %5041 = vmatmul.mubr.bf16.gmra.mxu0 %v4766
        %v5042 = vpop.f32.mrf.mxu0
        %v5043 = vadd.f32 0.0, %v5042
        %v5044 = vpop.f32.mrf.mxu0
        %v5045 = vpop.f32.mrf.mxu0
        %v5046 = vadd.f32 0.0, %v5045
        %v5047 = vpop.f32.mrf.mxu0
        %5048 = vmatprep.mubr.bf16.mxu0 %v4890
        %5049 = vmatmul.mubr.bf16.gmra.mxu0 %v4768
        %v5050 = vpop.f32.mrf.mxu0
        %v5051 = vadd.f32 0.0, %v5050
        %v5052 = vpop.f32.mrf.mxu0
        %v5053 = vpop.f32.mrf.mxu0
        %v5054 = vadd.f32 0.0, %v5053
        %v5055 = vpop.f32.mrf.mxu0
        %5056 = vdwg.mxu0
        %v5057 = vld [vmem:[%s3] sm:$0x7]
        %vm5058 = vcmask 261120
        %v5059 = vsel %vm5058, %v4931, -inf
        %v5060 = vrot.slane %v5059, 4
        %v5061 = vmax.f32 %v5059, %v5060
        %v5062 = vrot.slane %v5061, 2
        %v5063 = vmax.f32 %v5061, %v5062
        %v5064 = vrot.slane %v5063, 1
        %v5065 = vmax.f32 %v5063, %v5064
        %v5066 = vsel %vm5058, %v4934, -inf
        %v5067 = vrot.slane %v5066, 4
        %v5068 = vmax.f32 %v5066, %v5067
        %v5069 = vrot.slane %v5068, 2
        %v5070 = vmax.f32 %v5068, %v5069
        %v5071 = vrot.slane %v5070, 1
        %v5072 = vmax.f32 %v5070, %v5071
        %v5073 = vsel %vm5058, %v4939, -inf
        %v5074 = vrot.slane %v5073, 4
        %v5075 = vmax.f32 %v5073, %v5074
        %v5076 = vrot.slane %v5075, 2
        %v5077 = vmax.f32 %v5075, %v5076
        %v5078 = vrot.slane %v5077, 1
        %v5079 = vmax.f32 %v5077, %v5078
        %v5080 = vsel %vm5058, %v4942, -inf
        %v5081 = vrot.slane %v5080, 4
        %v5082 = vmax.f32 %v5080, %v5081
        %v5083 = vrot.slane %v5082, 2
        %v5084 = vmax.f32 %v5082, %v5083
        %v5085 = vrot.slane %v5084, 1
        %v5086 = vmax.f32 %v5084, %v5085
        %v5087 = vsel %vm5058, %v4947, -inf
        %v5088 = vrot.slane %v5087, 4
        %v5089 = vmax.f32 %v5087, %v5088
        %v5090 = vrot.slane %v5089, 2
        %v5091 = vmax.f32 %v5089, %v5090
        %v5092 = vrot.slane %v5091, 1
        %v5093 = vmax.f32 %v5091, %v5092
        %v5094 = vsel %vm5058, %v4950, -inf
        %v5095 = vrot.slane %v5094, 4
        %v5096 = vmax.f32 %v5094, %v5095
        %v5097 = vrot.slane %v5096, 2
        %v5098 = vmax.f32 %v5096, %v5097
        %v5099 = vrot.slane %v5098, 1
        %v5100 = vmax.f32 %v5098, %v5099
        %v5101 = vsel %vm5058, %v4955, -inf
        %v5102 = vrot.slane %v5101, 4
        %v5103 = vmax.f32 %v5101, %v5102
        %v5104 = vrot.slane %v5103, 2
        %v5105 = vmax.f32 %v5103, %v5104
        %v5106 = vrot.slane %v5105, 1
        %v5107 = vmax.f32 %v5105, %v5106
        %v5108 = vsel %vm5058, %v4958, -inf
        %v5109 = vrot.slane %v5108, 4
        %v5110 = vmax.f32 %v5108, %v5109
        %v5111 = vrot.slane %v5110, 2
        %v5112 = vmax.f32 %v5110, %v5111
        %v5113 = vrot.slane %v5112, 1
        %v5114 = vmax.f32 %v5112, %v5113
        %v5115 = vsel %vm5058, %v4963, -inf
        %v5116 = vrot.slane %v5115, 4
        %v5117 = vmax.f32 %v5115, %v5116
        %v5118 = vrot.slane %v5117, 2
        %v5119 = vmax.f32 %v5117, %v5118
        %v5120 = vrot.slane %v5119, 1
        %v5121 = vmax.f32 %v5119, %v5120
        %v5122 = vsel %vm5058, %v4966, -inf
        %v5123 = vrot.slane %v5122, 4
        %v5124 = vmax.f32 %v5122, %v5123
        %v5125 = vrot.slane %v5124, 2
        %v5126 = vmax.f32 %v5124, %v5125
        %v5127 = vrot.slane %v5126, 1
        %v5128 = vmax.f32 %v5126, %v5127
        %v5129 = vsel %vm5058, %v4971, -inf
        %v5130 = vrot.slane %v5129, 4
        %v5131 = vmax.f32 %v5129, %v5130
        %v5132 = vrot.slane %v5131, 2
        %v5133 = vmax.f32 %v5131, %v5132
        %v5134 = vrot.slane %v5133, 1
        %v5135 = vmax.f32 %v5133, %v5134
        %v5136 = vsel %vm5058, %v4974, -inf
        %v5137 = vrot.slane %v5136, 4
        %v5138 = vmax.f32 %v5136, %v5137
        %v5139 = vrot.slane %v5138, 2
        %v5140 = vmax.f32 %v5138, %v5139
        %v5141 = vrot.slane %v5140, 1
        %v5142 = vmax.f32 %v5140, %v5141
        %v5143 = vsel %vm5058, %v4979, -inf
        %v5144 = vrot.slane %v5143, 4
        %v5145 = vmax.f32 %v5143, %v5144
        %v5146 = vrot.slane %v5145, 2
        %v5147 = vmax.f32 %v5145, %v5146
        %v5148 = vrot.slane %v5147, 1
        %v5149 = vmax.f32 %v5147, %v5148
        %v5150 = vsel %vm5058, %v4982, -inf
        %v5151 = vrot.slane %v5150, 4
        %v5152 = vmax.f32 %v5150, %v5151
        %v5153 = vrot.slane %v5152, 2
        %v5154 = vmax.f32 %v5152, %v5153
        %v5155 = vrot.slane %v5154, 1
        %v5156 = vmax.f32 %v5154, %v5155
        %v5157 = vsel %vm5058, %v4987, -inf
        %v5158 = vrot.slane %v5157, 4
        %v5159 = vmax.f32 %v5157, %v5158
        %v5160 = vrot.slane %v5159, 2
        %v5161 = vmax.f32 %v5159, %v5160
        %v5162 = vrot.slane %v5161, 1
        %v5163 = vmax.f32 %v5161, %v5162
        %v5164 = vsel %vm5058, %v4990, -inf
        %v5165 = vrot.slane %v5164, 4
        %v5166 = vmax.f32 %v5164, %v5165
        %v5167 = vrot.slane %v5166, 2
        %v5168 = vmax.f32 %v5166, %v5167
        %v5169 = vrot.slane %v5168, 1
        %v5170 = vmax.f32 %v5168, %v5169
        %v5171 = vsel %vm5058, %v4995, -inf
        %v5172 = vrot.slane %v5171, 4
        %v5173 = vmax.f32 %v5171, %v5172
        %v5174 = vrot.slane %v5173, 2
        %v5175 = vmax.f32 %v5173, %v5174
        %v5176 = vrot.slane %v5175, 1
        %v5177 = vmax.f32 %v5175, %v5176
        %v5178 = vsel %vm5058, %v4998, -inf
        %v5179 = vrot.slane %v5178, 4
        %v5180 = vmax.f32 %v5178, %v5179
        %v5181 = vrot.slane %v5180, 2
        %v5182 = vmax.f32 %v5180, %v5181
        %v5183 = vrot.slane %v5182, 1
        %v5184 = vmax.f32 %v5182, %v5183
        %v5185 = vsel %vm5058, %v5003, -inf
        %v5186 = vrot.slane %v5185, 4
        %v5187 = vmax.f32 %v5185, %v5186
        %v5188 = vrot.slane %v5187, 2
        %v5189 = vmax.f32 %v5187, %v5188
        %v5190 = vrot.slane %v5189, 1
        %v5191 = vmax.f32 %v5189, %v5190
        %v5192 = vsel %vm5058, %v5006, -inf
        %v5193 = vrot.slane %v5192, 4
        %v5194 = vmax.f32 %v5192, %v5193
        %v5195 = vrot.slane %v5194, 2
        %v5196 = vmax.f32 %v5194, %v5195
        %v5197 = vrot.slane %v5196, 1
        %v5198 = vmax.f32 %v5196, %v5197
        %v5199 = vsel %vm5058, %v5011, -inf
        %v5200 = vrot.slane %v5199, 4
        %v5201 = vmax.f32 %v5199, %v5200
        %v5202 = vrot.slane %v5201, 2
        %v5203 = vmax.f32 %v5201, %v5202
        %v5204 = vrot.slane %v5203, 1
        %v5205 = vmax.f32 %v5203, %v5204
        %v5206 = vsel %vm5058, %v5014, -inf
        %v5207 = vrot.slane %v5206, 4
        %v5208 = vmax.f32 %v5206, %v5207
        %v5209 = vrot.slane %v5208, 2
        %v5210 = vmax.f32 %v5208, %v5209
        %v5211 = vrot.slane %v5210, 1
        %v5212 = vmax.f32 %v5210, %v5211
        %v5213 = vsel %vm5058, %v5019, -inf
        %v5214 = vrot.slane %v5213, 4
        %v5215 = vmax.f32 %v5213, %v5214
        %v5216 = vrot.slane %v5215, 2
        %v5217 = vmax.f32 %v5215, %v5216
        %v5218 = vrot.slane %v5217, 1
        %v5219 = vmax.f32 %v5217, %v5218
        %v5220 = vsel %vm5058, %v5022, -inf
        %v5221 = vrot.slane %v5220, 4
        %v5222 = vmax.f32 %v5220, %v5221
        %v5223 = vrot.slane %v5222, 2
        %v5224 = vmax.f32 %v5222, %v5223
        %v5225 = vrot.slane %v5224, 1
        %v5226 = vmax.f32 %v5224, %v5225
        %v5227 = vsel %vm5058, %v5027, -inf
        %v5228 = vrot.slane %v5227, 4
        %v5229 = vmax.f32 %v5227, %v5228
        %v5230 = vrot.slane %v5229, 2
        %v5231 = vmax.f32 %v5229, %v5230
        %v5232 = vrot.slane %v5231, 1
        %v5233 = vmax.f32 %v5231, %v5232
        %v5234 = vsel %vm5058, %v5030, -inf
        %v5235 = vrot.slane %v5234, 4
        %v5236 = vmax.f32 %v5234, %v5235
        %v5237 = vrot.slane %v5236, 2
        %v5238 = vmax.f32 %v5236, %v5237
        %v5239 = vrot.slane %v5238, 1
        %v5240 = vmax.f32 %v5238, %v5239
        %v5241 = vsel %vm5058, %v5035, -inf
        %v5242 = vrot.slane %v5241, 4
        %v5243 = vmax.f32 %v5241, %v5242
        %v5244 = vrot.slane %v5243, 2
        %v5245 = vmax.f32 %v5243, %v5244
        %v5246 = vrot.slane %v5245, 1
        %v5247 = vmax.f32 %v5245, %v5246
        %v5248 = vsel %vm5058, %v5038, -inf
        %v5249 = vrot.slane %v5248, 4
        %v5250 = vmax.f32 %v5248, %v5249
        %v5251 = vrot.slane %v5250, 2
        %v5252 = vmax.f32 %v5250, %v5251
        %v5253 = vrot.slane %v5252, 1
        %v5254 = vmax.f32 %v5252, %v5253
        %v5255 = vsel %vm5058, %v5043, -inf
        %v5256 = vrot.slane %v5255, 4
        %v5257 = vmax.f32 %v5255, %v5256
        %v5258 = vrot.slane %v5257, 2
        %v5259 = vmax.f32 %v5257, %v5258
        %v5260 = vrot.slane %v5259, 1
        %v5261 = vmax.f32 %v5259, %v5260
        %v5262 = vsel %vm5058, %v5046, -inf
        %v5263 = vrot.slane %v5262, 4
        %v5264 = vmax.f32 %v5262, %v5263
        %v5265 = vrot.slane %v5264, 2
        %v5266 = vmax.f32 %v5264, %v5265
        %v5267 = vrot.slane %v5266, 1
        %v5268 = vmax.f32 %v5266, %v5267
        %v5269 = vsel %vm5058, %v5051, -inf
        %v5270 = vrot.slane %v5269, 4
        %v5271 = vmax.f32 %v5269, %v5270
        %v5272 = vrot.slane %v5271, 2
        %v5273 = vmax.f32 %v5271, %v5272
        %v5274 = vrot.slane %v5273, 1
        %v5275 = vmax.f32 %v5273, %v5274
        %v5276 = vsel %vm5058, %v5054, -inf
        %v5277 = vrot.slane %v5276, 4
        %v5278 = vmax.f32 %v5276, %v5277
        %v5279 = vrot.slane %v5278, 2
        %v5280 = vmax.f32 %v5278, %v5279
        %v5281 = vrot.slane %v5280, 1
        %v5282 = vmax.f32 %v5280, %v5281
        %v5283 = vlaneseq
        %v5284 = vshrl.u32 %v5283, 7
        %v5285 = vsub.s32 0, %v5284
        %v5286 = vrot.slane %v5057, %v5285
        %v5287 = vadd.f32 %v5065, %v5286
        %v5288 = vadd.f32 %v5072, %v5286
        %v5289 = vadd.f32 %v5079, %v5286
        %v5290 = vadd.f32 %v5086, %v5286
        %v5291 = vadd.f32 %v5093, %v5286
        %v5292 = vadd.f32 %v5100, %v5286
        %v5293 = vadd.f32 %v5107, %v5286
        %v5294 = vadd.f32 %v5114, %v5286
        %v5295 = vadd.f32 %v5121, %v5286
        %v5296 = vadd.f32 %v5128, %v5286
        %v5297 = vadd.f32 %v5135, %v5286
        %v5298 = vadd.f32 %v5142, %v5286
        %v5299 = vadd.f32 %v5149, %v5286
        %v5300 = vadd.f32 %v5156, %v5286
        %v5301 = vadd.f32 %v5163, %v5286
        %v5302 = vadd.f32 %v5170, %v5286
        %v5303 = vadd.f32 %v5177, %v5286
        %v5304 = vadd.f32 %v5184, %v5286
        %v5305 = vadd.f32 %v5191, %v5286
        %v5306 = vadd.f32 %v5198, %v5286
        %v5307 = vadd.f32 %v5205, %v5286
        %v5308 = vadd.f32 %v5212, %v5286
        %v5309 = vadd.f32 %v5219, %v5286
        %v5310 = vadd.f32 %v5226, %v5286
        %v5311 = vadd.f32 %v5233, %v5286
        %v5312 = vadd.f32 %v5240, %v5286
        %v5313 = vadd.f32 %v5247, %v5286
        %v5314 = vadd.f32 %v5254, %v5286
        %v5315 = vadd.f32 %v5261, %v5286
        %v5316 = vadd.f32 %v5268, %v5286
        %v5317 = vadd.f32 %v5275, %v5286
        %v5318 = vadd.f32 %v5282, %v5286
        %v5319 = vmax.f32 %v5287, 0.0
        %v5320 = vmax.f32 %v5288, 0.0
        %v5321 = vmax.f32 %v5289, 0.0
        %v5322 = vmax.f32 %v5290, 0.0
        %v5323 = vmax.f32 %v5291, 0.0
        %v5324 = vmax.f32 %v5292, 0.0
        %v5325 = vmax.f32 %v5293, 0.0
        %v5326 = vmax.f32 %v5294, 0.0
        %v5327 = vmax.f32 %v5295, 0.0
        %v5328 = vmax.f32 %v5296, 0.0
        %v5329 = vmax.f32 %v5297, 0.0
        %v5330 = vmax.f32 %v5298, 0.0
        %v5331 = vmax.f32 %v5299, 0.0
        %v5332 = vmax.f32 %v5300, 0.0
        %v5333 = vmax.f32 %v5301, 0.0
        %v5334 = vmax.f32 %v5302, 0.0
        %v5335 = vmax.f32 %v5303, 0.0
        %v5336 = vmax.f32 %v5304, 0.0
        %v5337 = vmax.f32 %v5305, 0.0
        %v5338 = vmax.f32 %v5306, 0.0
        %v5339 = vmax.f32 %v5307, 0.0
        %v5340 = vmax.f32 %v5308, 0.0
        %v5341 = vmax.f32 %v5309, 0.0
        %v5342 = vmax.f32 %v5310, 0.0
        %v5343 = vmax.f32 %v5311, 0.0
        %v5344 = vmax.f32 %v5312, 0.0
        %v5345 = vmax.f32 %v5313, 0.0
        %v5346 = vmax.f32 %v5314, 0.0
        %v5347 = vmax.f32 %v5315, 0.0
        %v5348 = vmax.f32 %v5316, 0.0
        %v5349 = vmax.f32 %v5317, 0.0
        %v5350 = vmax.f32 %v5318, 0.0
        %v5351 = vpack.c.bf16 %v5319, %v5319
        %v5352 = vpack.c.bf16 %v5320, %v5320
        %v5353 = vpack.c.bf16 %v5321, %v5321
        %v5354 = vpack.c.bf16 %v5322, %v5322
        %v5355 = vpack.c.bf16 %v5323, %v5323
        %v5356 = vpack.c.bf16 %v5324, %v5324
        %v5357 = vpack.c.bf16 %v5325, %v5325
        %v5358 = vpack.c.bf16 %v5326, %v5326
        %v5359 = vpack.c.bf16 %v5327, %v5327
        %v5360 = vpack.c.bf16 %v5328, %v5328
        %v5361 = vpack.c.bf16 %v5329, %v5329
        %v5362 = vpack.c.bf16 %v5330, %v5330
        %v5363 = vpack.c.bf16 %v5331, %v5331
        %v5364 = vpack.c.bf16 %v5332, %v5332
        %v5365 = vpack.c.bf16 %v5333, %v5333
        %v5366 = vpack.c.bf16 %v5334, %v5334
        %v5367 = vpack.c.bf16 %v5335, %v5335
        %v5368 = vpack.c.bf16 %v5336, %v5336
        %v5369 = vpack.c.bf16 %v5337, %v5337
        %v5370 = vpack.c.bf16 %v5338, %v5338
        %v5371 = vpack.c.bf16 %v5339, %v5339
        %v5372 = vpack.c.bf16 %v5340, %v5340
        %v5373 = vpack.c.bf16 %v5341, %v5341
        %v5374 = vpack.c.bf16 %v5342, %v5342
        %v5375 = vpack.c.bf16 %v5343, %v5343
        %v5376 = vpack.c.bf16 %v5344, %v5344
        %v5377 = vpack.c.bf16 %v5345, %v5345
        %v5378 = vpack.c.bf16 %v5346, %v5346
        %v5379 = vpack.c.bf16 %v5347, %v5347
        %v5380 = vpack.c.bf16 %v5348, %v5348
        %v5381 = vpack.c.bf16 %v5349, %v5349
        %v5382 = vpack.c.bf16 %v5350, %v5350
        %v5383 = vld [vmem:[%s2] sm:$0xf]
        %v5384 = vld [vmem:[%s2 + $0x4] sm:$0xf]
        %v5385 = vld [vmem:[%s2 + $0x8] sm:$0xf]
        %v5386 = vld [vmem:[%s2 + $0xc] sm:$0xf]
        %v5419 = vunpack.c.l.b16 %v5351
        %v5420 = vunpack.c.l.b16 %v5352
        %v5421 = vunpack.c.l.b16 %v5353
        %v5422 = vunpack.c.l.b16 %v5354
        %v5423 = vunpack.c.l.b16 %v5355
        %v5424 = vunpack.c.l.b16 %v5356
        %v5425 = vunpack.c.l.b16 %v5357
        %v5426 = vunpack.c.l.b16 %v5358
        %v5427 = vunpack.c.l.b16 %v5359
        %v5428 = vunpack.c.l.b16 %v5360
        %v5429 = vunpack.c.l.b16 %v5361
        %v5430 = vunpack.c.l.b16 %v5362
        %v5431 = vunpack.c.l.b16 %v5363
        %v5432 = vunpack.c.l.b16 %v5364
        %v5433 = vunpack.c.l.b16 %v5365
        %v5434 = vunpack.c.l.b16 %v5366
        %v5435 = vunpack.c.l.b16 %v5367
        %v5436 = vunpack.c.l.b16 %v5368
        %v5437 = vunpack.c.l.b16 %v5369
        %v5438 = vunpack.c.l.b16 %v5370
        %v5439 = vunpack.c.l.b16 %v5371
        %v5440 = vunpack.c.l.b16 %v5372
        %v5441 = vunpack.c.l.b16 %v5373
        %v5442 = vunpack.c.l.b16 %v5374
        %v5443 = vunpack.c.l.b16 %v5375
        %v5444 = vunpack.c.l.b16 %v5376
        %v5445 = vunpack.c.l.b16 %v5377
        %v5446 = vunpack.c.l.b16 %v5378
        %v5447 = vunpack.c.l.b16 %v5379
        %v5448 = vunpack.c.l.b16 %v5380
        %v5449 = vunpack.c.l.b16 %v5381
        %v5450 = vunpack.c.l.b16 %v5382
        %v5451 = vrot.slane %v5420, 7
        %vm5452 = vcmask 1041409
        %v5453 = vsel %vm5452, %v5451, %v5419
        %v5454 = vrot.slane %v5421, 6
        %vm5455 = vcmask 1042434
        %v5456 = vsel %vm5455, %v5454, %v5453
        %v5457 = vrot.slane %v5422, 5
        %vm5458 = vcmask 1043459
        %v5459 = vsel %vm5458, %v5457, %v5456
        %v5460 = vrot.slane %v5423, 4
        %vm5461 = vcmask 1044484
        %v5462 = vsel %vm5461, %v5460, %v5459
        %v5463 = vrot.slane %v5424, 3
        %vm5464 = vcmask 1045509
        %v5465 = vsel %vm5464, %v5463, %v5462
        %v5466 = vrot.slane %v5425, 2
        %vm5467 = vcmask 1046534
        %v5468 = vsel %vm5467, %v5466, %v5465
        %v5469 = vrot.slane %v5426, 1
        %vm5470 = vcmask 1047559
        %v5471 = vsel %vm5470, %v5469, %v5468
        %v5472 = vrot.slane %v5428, 7
        %v5473 = vsel %vm5452, %v5472, %v5427
        %v5474 = vrot.slane %v5429, 6
        %v5475 = vsel %vm5455, %v5474, %v5473
        %v5476 = vrot.slane %v5430, 5
        %v5477 = vsel %vm5458, %v5476, %v5475
        %v5478 = vrot.slane %v5431, 4
        %v5479 = vsel %vm5461, %v5478, %v5477
        %v5480 = vrot.slane %v5432, 3
        %v5481 = vsel %vm5464, %v5480, %v5479
        %v5482 = vrot.slane %v5433, 2
        %v5483 = vsel %vm5467, %v5482, %v5481
        %v5484 = vrot.slane %v5434, 1
        %v5485 = vsel %vm5470, %v5484, %v5483
        %v5486 = vrot.slane %v5436, 7
        %v5487 = vsel %vm5452, %v5486, %v5435
        %v5488 = vrot.slane %v5437, 6
        %v5489 = vsel %vm5455, %v5488, %v5487
        %v5490 = vrot.slane %v5438, 5
        %v5491 = vsel %vm5458, %v5490, %v5489
        %v5492 = vrot.slane %v5439, 4
        %v5493 = vsel %vm5461, %v5492, %v5491
        %v5494 = vrot.slane %v5440, 3
        %v5495 = vsel %vm5464, %v5494, %v5493
        %v5496 = vrot.slane %v5441, 2
        %v5497 = vsel %vm5467, %v5496, %v5495
        %v5498 = vrot.slane %v5442, 1
        %v5499 = vsel %vm5470, %v5498, %v5497
        %v5500 = vrot.slane %v5444, 7
        %v5501 = vsel %vm5452, %v5500, %v5443
        %v5502 = vrot.slane %v5445, 6
        %v5503 = vsel %vm5455, %v5502, %v5501
        %v5504 = vrot.slane %v5446, 5
        %v5505 = vsel %vm5458, %v5504, %v5503
        %v5506 = vrot.slane %v5447, 4
        %v5507 = vsel %vm5461, %v5506, %v5505
        %v5508 = vrot.slane %v5448, 3
        %v5509 = vsel %vm5464, %v5508, %v5507
        %v5510 = vrot.slane %v5449, 2
        %v5511 = vsel %vm5467, %v5510, %v5509
        %v5512 = vrot.slane %v5450, 1
        %v5513 = vsel %vm5470, %v5512, %v5511
        %v5514 = vpack.c.b16 %v5485, %v5471
        %v5515 = vpack.c.b16 %v5513, %v5499
        %v5520 = vunpack.c.l.b16 %v5383
        %v5521 = vunpack.c.l.b16 %v5384
        %v5522 = vunpack.c.l.b16 %v5385
        %v5523 = vunpack.c.l.b16 %v5386
        %v5524 = vpack.c.b16 %v5521, %v5520
        %v5525 = vpack.c.b16 %v5523, %v5522
        %v5529 = vsel %vm5058, %v5514, 0
        %v5532 = vsel %vm5058, %v5515, 0
        %5534 = vmatprep.subr.bf16.mxu0 0
        %5535 = vmatpush1.bf16.msra.mxu0 0
        %5536 = vmatprep.subr.bf16.mxu0 0
        %5537 = vmatpush1.bf16.msra.mxu0 0
        %5538 = vmatprep.subr.bf16.mxu0 0
        %5539 = vmatpush1.bf16.msra.mxu0 0
        %5540 = vmatprep.subr.bf16.mxu0 0
        %5541 = vmatpush1.bf16.msra.mxu0 0
        %5542 = vmatprep.subr.bf16.mxu0 0
        %5543 = vmatpush1.bf16.msra.mxu0 0
        %5544 = vmatprep.subr.bf16.mxu0 0
        %5545 = vmatpush1.bf16.msra.mxu0 0
        %5546 = vmatprep.subr.bf16.mxu0 0
        %5547 = vmatpush1.bf16.msra.mxu0 %v5525
        %5548 = vmatprep.subr.bf16.mxu0 0
        %5549 = vmatpush1.bf16.msra.mxu0 %v5524
        %5550 = vmatprep.subr.bf16.mxu0 0
        %5551 = vmatpush2.bf16.msra.mxu0 0
        %5552 = vmatprep.subr.bf16.mxu0 0
        %5553 = vmatpush2.bf16.msra.mxu0 0
        %5554 = vmatprep.subr.bf16.mxu0 0
        %5555 = vmatpush2.bf16.msra.mxu0 0
        %5556 = vmatprep.subr.bf16.mxu0 0
        %5557 = vmatpush2.bf16.msra.mxu0 0
        %5558 = vmatprep.subr.bf16.mxu0 0
        %5559 = vmatpush2.bf16.msra.mxu0 0
        %5560 = vmatprep.subr.bf16.mxu0 0
        %5561 = vmatpush2.bf16.msra.mxu0 0
        %5562 = vmatprep.subr.bf16.mxu0 0
        %5563 = vmatpush2.bf16.msra.mxu0 0
        %5564 = vmatprep.subr.bf16.mxu0 0
        %5565 = vmatpush2.bf16.msra.mxu0 0
        %5566 = vmatprep.mubr.bf16.mxu0 0
        %5567 = vmatmul.mubr.bf16.gmra.mxu0 %v5529
        %v5568 = vpop.f32.mrf.mxu0
        %v5569 = vadd.f32 0.0, %v5568
        %v5570 = vpop.f32.mrf.mxu0
        %v5571 = vpop.f32.mrf.mxu0
        %v5572 = vadd.f32 0.0, %v5571
        %v5573 = vpop.f32.mrf.mxu0
        %5574 = vmatprep.mubr.bf16.mxu0 0
        %5575 = vmatmul.mubr.bf16.gmra.mxu0 %v5532
        %v5576 = vpop.f32.mrf.mxu0
        %v5577 = vadd.f32 0.0, %v5576
        %v5578 = vpop.f32.mrf.mxu0
        %v5579 = vpop.f32.mrf.mxu0
        %v5580 = vadd.f32 0.0, %v5579
        %v5581 = vpop.f32.mrf.mxu0
        %5582 = vdwg.mxu0
        %v5583 = vlaneseq
        %v5584 = vshrl.u32 %v5583, 7
        %v5585 = vsub.s32 1, %v5584
        %v5586 = vrot.slane %v5057, %v5585
        %v5587 = vadd.f32 %v5569, %v5586
        %v5588 = vadd.f32 %v5572, %v5586
        %v5589 = vadd.f32 %v5577, %v5586
        %v5590 = vadd.f32 %v5580, %v5586
        %v5591 = vmax.f32 %v5587, 0.0
        %v5592 = vmax.f32 %v5588, 0.0
        %v5593 = vmax.f32 %v5589, 0.0
        %v5594 = vmax.f32 %v5590, 0.0
        %v5595 = vlaneseq
        %v5596 = vshrl.u32 %v5595, 7
        %v5597 = vsub.s32 2, %v5596
        %v5598 = vrot.slane %v5057, %v5597
        %5600 = vrot.lane.b32.xlu0 %v5598, 32
        %v5601 = vpop.permute.xlu0 %5600
        %v5603 = vadd.f32 %v5569, %v5601
        %v5604 = vadd.f32 %v5572, %v5601
        %v5605 = vadd.f32 %v5577, %v5601
        %v5606 = vadd.f32 %v5580, %v5601
        %v5607 = vxor.u32 %v5603, 2147483648
        %v5608 = vxor.u32 %v5604, 2147483648
        %v5609 = vxor.u32 %v5605, 2147483648
        %v5610 = vxor.u32 %v5606, 2147483648
        %v5611 = vmul.f32 %v5607, 1.442695
        %v5612 = vpow.pop %v5611
        %v5613 = vmul.f32 %v5608, 1.442695
        %v5614 = vpow.pop %v5613
        %v5615 = vmul.f32 %v5609, 1.442695
        %v5616 = vpow.pop %v5615
        %v5617 = vmul.f32 %v5610, 1.442695
        %v5618 = vpow.pop %v5617
        %v5619 = vadd.f32 %v5612, 1.0
        %v5620 = vadd.f32 %v5614, 1.0
        %v5621 = vadd.f32 %v5616, 1.0
        %v5622 = vadd.f32 %v5618, 1.0
        %v5623 = vrcp.pop %v5619
        %v5624 = vmul.f32 1.0, %v5623
        %v5625 = vrcp.pop %v5620
        %v5626 = vmul.f32 1.0, %v5625
        %v5627 = vrcp.pop %v5621
        %v5628 = vmul.f32 1.0, %v5627
        %v5629 = vrcp.pop %v5622
        %v5630 = vmul.f32 1.0, %v5629
        %5635 = vrot.lane.b32.xlu0 %v5591, 32
        %v5636 = vpop.permute.xlu0 %5635
        %5637 = vrot.lane.b32.xlu0 %v5592, 32
        %v5638 = vpop.permute.xlu0 %5637
        %5639 = vrot.lane.b32.xlu0 %v5593, 32
        %v5640 = vpop.permute.xlu0 %5639
        %5641 = vrot.lane.b32.xlu0 %v5594, 32
        %v5642 = vpop.permute.xlu0 %5641
        %v5647 = vmul.f32 %v5624, %v5636
        %v5648 = vmul.f32 %v5626, %v5638
        %v5649 = vmul.f32 %v5628, %v5640
        %v5650 = vmul.f32 %v5630, %v5642
        %v5651 = vsub.f32 1.0, %v5624
        %v5652 = vsub.f32 1.0, %v5626
        %v5653 = vsub.f32 1.0, %v5628
        %v5654 = vsub.f32 1.0, %v5630
        %v5687 = vrot.slane %v5320, 7
        %v5688 = vsel %vm5452, %v5687, %v5319
        %v5689 = vrot.slane %v5321, 6
        %v5690 = vsel %vm5455, %v5689, %v5688
        %v5691 = vrot.slane %v5322, 5
        %v5692 = vsel %vm5458, %v5691, %v5690
        %v5693 = vrot.slane %v5323, 4
        %v5694 = vsel %vm5461, %v5693, %v5692
        %v5695 = vrot.slane %v5324, 3
        %v5696 = vsel %vm5464, %v5695, %v5694
        %v5697 = vrot.slane %v5325, 2
        %v5698 = vsel %vm5467, %v5697, %v5696
        %v5699 = vrot.slane %v5326, 1
        %v5700 = vsel %vm5470, %v5699, %v5698
        %v5701 = vrot.slane %v5328, 7
        %v5702 = vsel %vm5452, %v5701, %v5327
        %v5703 = vrot.slane %v5329, 6
        %v5704 = vsel %vm5455, %v5703, %v5702
        %v5705 = vrot.slane %v5330, 5
        %v5706 = vsel %vm5458, %v5705, %v5704
        %v5707 = vrot.slane %v5331, 4
        %v5708 = vsel %vm5461, %v5707, %v5706
        %v5709 = vrot.slane %v5332, 3
        %v5710 = vsel %vm5464, %v5709, %v5708
        %v5711 = vrot.slane %v5333, 2
        %v5712 = vsel %vm5467, %v5711, %v5710
        %v5713 = vrot.slane %v5334, 1
        %v5714 = vsel %vm5470, %v5713, %v5712
        %v5715 = vrot.slane %v5336, 7
        %v5716 = vsel %vm5452, %v5715, %v5335
        %v5717 = vrot.slane %v5337, 6
        %v5718 = vsel %vm5455, %v5717, %v5716
        %v5719 = vrot.slane %v5338, 5
        %v5720 = vsel %vm5458, %v5719, %v5718
        %v5721 = vrot.slane %v5339, 4
        %v5722 = vsel %vm5461, %v5721, %v5720
        %v5723 = vrot.slane %v5340, 3
        %v5724 = vsel %vm5464, %v5723, %v5722
        %v5725 = vrot.slane %v5341, 2
        %v5726 = vsel %vm5467, %v5725, %v5724
        %v5727 = vrot.slane %v5342, 1
        %v5728 = vsel %vm5470, %v5727, %v5726
        %v5729 = vrot.slane %v5344, 7
        %v5730 = vsel %vm5452, %v5729, %v5343
        %v5731 = vrot.slane %v5345, 6
        %v5732 = vsel %vm5455, %v5731, %v5730
        %v5733 = vrot.slane %v5346, 5
        %v5734 = vsel %vm5458, %v5733, %v5732
        %v5735 = vrot.slane %v5347, 4
        %v5736 = vsel %vm5461, %v5735, %v5734
        %v5737 = vrot.slane %v5348, 3
        %v5738 = vsel %vm5464, %v5737, %v5736
        %v5739 = vrot.slane %v5349, 2
        %v5740 = vsel %vm5467, %v5739, %v5738
        %v5741 = vrot.slane %v5350, 1
        %v5742 = vsel %vm5470, %v5741, %v5740
        %5743 = vrot.lane.b32.xlu0 %v5700, 32
        %v5744 = vpop.permute.xlu0 %5743
        %5745 = vrot.lane.b32.xlu0 %v5714, 32
        %v5746 = vpop.permute.xlu0 %5745
        %5747 = vrot.lane.b32.xlu0 %v5728, 32
        %v5748 = vpop.permute.xlu0 %5747
        %5749 = vrot.lane.b32.xlu0 %v5742, 32
        %v5750 = vpop.permute.xlu0 %5749
        %v5755 = vmul.f32 %v5651, %v5744
        %v5756 = vmul.f32 %v5652, %v5746
        %v5757 = vmul.f32 %v5653, %v5748
        %v5758 = vmul.f32 %v5654, %v5750
        %v5759 = vadd.f32 %v5647, %v5755
        %v5760 = vadd.f32 %v5648, %v5756
        %v5761 = vadd.f32 %v5649, %v5757
        %v5762 = vadd.f32 %v5650, %v5758
        %5767 = vrot.lane.b32.xlu0 %v5759, 96
        %v5768 = vpop.permute.xlu0 %5767
        %5769 = vrot.lane.b32.xlu0 %v5760, 96
        %v5770 = vpop.permute.xlu0 %5769
        %5771 = vrot.lane.b32.xlu0 %v5761, 96
        %v5772 = vpop.permute.xlu0 %5771
        %5773 = vrot.lane.b32.xlu0 %v5762, 96
        %v5774 = vpop.permute.xlu0 %5773
        %5779 = vst.msk [vmem:[%s191] sm:$0xff] %vm5058, %v5768
        %5780 = vst.msk [vmem:[%s191 + $0x8] sm:$0xff] %vm5058, %v5770
        %5781 = vst.msk [vmem:[%s191 + $0x10] sm:$0xff] %vm5058, %v5772
        %5782 = vst.msk [vmem:[%s191 + $0x18] sm:$0xff] %vm5058, %v5774
        %s5783 = sand.u32 %s115, 1
        %s5784 = scalar_lea.sflag [#allocation3], %s5783
        %s5785 = sand.u32 %s115, 1
        %s5786 = smul.addr %s5785, 32
        %s5787 = scalar_lea.vmem [#allocation2], %s5786
        // Predicated region
        $region37: #{model_embeddings_forward.1} parent=35 // pred_check
          %p5788 = pneg %p125
        $region38: #{model_embeddings_forward.1} parent=35 // pred_check_branch
          %5790 = sbr.rel (%p5788) target = $region40
        $region39: #{model_embeddings_forward.1} parent=35 // pred_region
          %s5791 = smul.u32 4, %s18
          %s5793 = ssub.s32 512, 512
          %5794 = vsyncadd %s5784, %s5793
          %s5795 = smul.addr %s5791, 128
          %s5796 = scalar_lea.hbm %s4, %s5795
          %s5797 = sshll.u32 %s5787, 4
          %s5798 = int_to_ptr.vmem [resolvable:$true] %s5797
          %5803 = dma.vmem_to_hbm [thread:$0]  %s5798, 512, %s5796, %s5784, 128, 128, 8
        $region40: #{model_embeddings_forward.1} parent=35 // pred_fallthru
          _
      $region36: #{model_embeddings_forward.1} parent=5 // pred_fallthru
        _
      %p5804 = scmp.le.s32.totalorder 2, %s13
      // Predicated region
      $region41: #{model_embeddings_forward.1} parent=5 // pred_check
        %p5805 = pneg %p5804
      $region42: #{model_embeddings_forward.1} parent=5 // pred_check_branch
        %5807 = sbr.rel (%p5805) target = $region44
      $region43: #{model_embeddings_forward.1} parent=5 // pred_region
        %s5808 = ssub.s32 %s13, 2
        // Predicated region
        $region45: #{model_embeddings_forward.1} parent=43 // pred_check
          %p5809 = pneg %p131
        $region46: #{model_embeddings_forward.1} parent=43 // pred_check_branch
          %5811 = sbr.rel (%p5809) target = $region48
        $region47: #{model_embeddings_forward.1} parent=43 // pred_region
          %s5812 = sand.u32 %s116, 1
          %s5813 = scalar_lea.sflag [#allocation3], %s5812
          %s5814 = sand.u32 %s116, 1
          %s5815 = smul.addr %s5814, 32
          %s5816 = scalar_lea.vmem [#allocation2], %s5815
          %5817 = dma.done %s5813, 512
        $region48: #{model_embeddings_forward.1} parent=43 // pred_fallthru
          _
      $region44: #{model_embeddings_forward.1} parent=5 // pred_fallthru
        _
    $region6: #{model_embeddings_forward.1} parent=1 // loop_footer
      %s17 = sadd.s32 1, %s13
    $region7: #{model_embeddings_forward.1} parent=1 // loop_footer_branch
      %12 = sbr.rel target = $region3
    $region8: #{model_embeddings_forward.1} parent=1 // loop_exit
      _
    %5818 = vsyncpa [#allocation3], 1
    %s5819 = scalar_lea.sflag [#allocation3], 1
    %5820 = vsyncpa %s5819, 1

</llo_original>
